<compile_context>
chip_gen: v7x
topology: tpu7x:2x2x1
jax: 0.10.0
libtpu: 0.0.40
codegen_flags: <defaults>
</compile_context>

<pallas_src>
import numpy as np
import jax
import jax.numpy as jnp
from jax import lax
from jax.experimental import pallas as pl
from jax.experimental.pallas import tpu as pltpu

H = 128  # LSTM hidden size (fixed by the module)


def wgan_generator_kernel(
    x_ref,                          # (B, noise_dim)
    w1_ref, b1_ref,                 # (noise_dim, 512), (1, 512)
    w2_ref, b2_ref,                 # (512, 256),       (1, 256)
    w3_ref, b3_ref,                 # (256, 128),       (1, 128)
    wih0_ref, whh0_ref, bl0_ref,    # (128, 512), (128, 512), (1, 512)
    wl1_ref, bl1_ref,               # (256, 512) = [wih1.T ; whh1.T], (1, 512)
    wout_ref, bout_ref,             # (T, 128), (T, 1)
    o_ref,                          # out: (T, B)
):
    f32 = jnp.float32
    B = x_ref.shape[0]
    T = o_ref.shape[0]

    # --- MLP stack (no activations in the reference forward) ---
    x = x_ref[...]
    h = jnp.dot(x, w1_ref[...], preferred_element_type=f32) + b1_ref[...]
    h = jnp.dot(h, w2_ref[...], preferred_element_type=f32) + b2_ref[...]
    feat = jnp.dot(h, w3_ref[...], preferred_element_type=f32) + b3_ref[...]   # (B, 128)

    # Layer-0 LSTM input is identical at every timestep -> hoist input gates.
    gx0 = jnp.dot(feat, wih0_ref[...], preferred_element_type=f32) + bl0_ref[...]  # (B, 4H)

    whh0 = whh0_ref[...]
    wl1 = wl1_ref[...]
    bl1 = bl1_ref[...]

    def lstm_cell(gates, c):
        i = jax.nn.sigmoid(gates[:, 0 * H:1 * H])
        f = jax.nn.sigmoid(gates[:, 1 * H:2 * H])
        g = jnp.tanh(gates[:, 2 * H:3 * H])
        o = jax.nn.sigmoid(gates[:, 3 * H:4 * H])
        c_new = f * c + i * g
        h_new = o * jnp.tanh(c_new)
        return h_new, c_new

    def body(t, carry):
        h0, c0, h1, c1 = carry
        # Layer 0: input term hoisted, only the recurrent matmul per step.
        g0 = gx0 + jnp.dot(h0, whh0, preferred_element_type=f32)
        h0, c0 = lstm_cell(g0, c0)
        # Layer 1: single fused (B,256)x(256,512) MXU push (K=256 matches the
        # v6e/v7x MXU depth); the lane-dim concat of two (B,128) vregs is free.
        hh = jnp.concatenate([h0, h1], axis=1)                           # (B, 2H)
        g1 = jnp.dot(hh, wl1, preferred_element_type=f32) + bl1
        h1, c1 = lstm_cell(g1, c1)
        # Per-timestep Linear(128, 1) head, done in-loop (XLU lane reduce is
        # free filler while the step is MXU/EUP latency bound).
        w_t = wout_ref[pl.ds(t, 1), :]                                   # (1, H)
        y_t = jnp.sum(h1 * w_t, axis=-1)                                 # (B,)
        o_ref[pl.ds(t, 1), :] = y_t[None, :] + bout_ref[pl.ds(t, 1), :]  # (1, B)
        return (h0, c0, h1, c1)

    zeros = jnp.zeros((B, H), f32)
    # T is static: fully unroll short sequences so the scheduler sees across
    # timesteps; partially unroll long ones to bound code size.
    unroll = T if T <= 32 else 8
    lax.fori_loop(0, T, body, (zeros, zeros, zeros, zeros), unroll=unroll)


def prepare_params(params):
    """One-time preprocessing (hoisted out of the per-call path):
    transpose weights to (in, out), fuse the LSTM bias pairs, and stack
    layer-1's input+recurrent weights into a single (256, 512) matrix."""
    (w1, b1, w2, b2, w3, b3,
     wih0, whh0, bih0, bhh0,
     wih1, whh1, bih1, bhh1,
     wout, bout) = params
    wl1 = jnp.concatenate([wih1.T, whh1.T], axis=0)          # (2H, 4H)
    return (
        w1.T, b1[None, :],
        w2.T, b2[None, :],
        w3.T, b3[None, :],
        wih0.T, whh0.T, (bih0 + bhh0)[None, :],
        wl1, (bih1 + bhh1)[None, :],
        wout, bout[:, None],
    )


@jax.jit
def wgan_generator_forward(x, prepped):
    B, nd = x.shape
    wout = prepped[-2]
    T = wout.shape[0]

    # Advisory cost estimate so XLA schedules/overlaps this kernel sensibly.
    flops = int(2 * B * (nd * 512 + 512 * 256 + 256 * 128 + 128 * 4 * H)
                + T * 2 * B * (H * 4 * H + 2 * H * 4 * H + H))
    transcendentals = int(T * B * 10 * H)     # 4 gates + tanh(c), two layers
    bytes_accessed = int(4 * (B * nd + T * B
                              + sum(int(np.prod(p.shape)) for p in prepped)))

    vmem = pl.BlockSpec(memory_space=pltpu.MemorySpace.VMEM)
    # TODO(synk): for large batch, add a grid over B with
    # dimension_semantics=("parallel",) so the two v7x TensorCores split the
    # work and per-core live VMEM stays bounded.
    y_tb = pl.pallas_call(
        wgan_generator_kernel,
        out_shape=jax.ShapeDtypeStruct((T, B), jnp.float32),
        in_specs=[vmem] * (1 + len(prepped)),
        out_specs=vmem,
        compiler_params=pltpu.CompilerParams(vmem_limit_bytes=32 * 1024 * 1024),
        cost_estimate=pl.CostEstimate(flops=flops,
                                      transcendentals=transcendentals,
                                      bytes_accessed=bytes_accessed),
    )(x, *prepped)
    return jnp.transpose(y_tb, (1, 0))[:, :, None]   # (B, T, 1), matches PyTorch


def init_params(key, noise_dim, time_steps):
    """Deterministic init mimicking PyTorch default uniform(-1/sqrt(fan_in), ...)."""
    def unif(k, shape, fan_in):
        bound = 1.0 / np.sqrt(fan_in)
        return jax.random.uniform(k, shape, jnp.float32, -bound, bound)

    ks = jax.random.split(key, 16)
    w1 = unif(ks[0], (512, noise_dim), noise_dim); b1 = unif(ks[1], (512,), noise_dim)
    w2 = unif(ks[2], (256, 512), 512);             b2 = unif(ks[3], (256,), 512)
    w3 = unif(ks[4], (128, 256), 256);             b3 = unif(ks[5], (128,), 256)
    wih0 = unif(ks[6], (4 * H, 128), H); whh0 = unif(ks[7], (4 * H, H), H)
    bih0 = unif(ks[8], (4 * H,), H);     bhh0 = unif(ks[9], (4 * H,), H)
    wih1 = unif(ks[10], (4 * H, H), H);  whh1 = unif(ks[11], (4 * H, H), H)
    bih1 = unif(ks[12], (4 * H,), H);    bhh1 = unif(ks[13], (4 * H,), H)
    wout = unif(ks[14], (time_steps, 128), 128)    # stacked (1,128) head weights
    bout = unif(ks[15], (time_steps,), 128)        # stacked head biases
    return (w1, b1, w2, b2, w3, b3,
            wih0, whh0, bih0, bhh0,
            wih1, whh1, bih1, bhh1,
            wout, bout)


def reference_forward_np(x, params, time_steps):
    """Pure NumPy reference of the PyTorch forward pass."""
    (w1, b1, w2, b2, w3, b3,
     wih0, whh0, bih0, bhh0,
     wih1, whh1, bih1, bhh1,
     wout, bout) = [np.asarray(p, dtype=np.float64) for p in params]
    x = np.asarray(x, dtype=np.float64)

    def sigmoid(z):
        return 1.0 / (1.0 + np.exp(-z))

    h = x @ w1.T + b1
    h = h @ w2.T + b2
    feat = h @ w3.T + b3
    B = x.shape[0]
    h0 = c0 = h1 = c1 = np.zeros((B, H))
    ys = []
    for t in range(time_steps):
        g0 = feat @ wih0.T + bih0 + h0 @ whh0.T + bhh0
        i, f, g, o = np.split(g0, 4, axis=1)
        c0 = sigmoid(f) * c0 + sigmoid(i) * np.tanh(g)
        h0 = sigmoid(o) * np.tanh(c0)
        g1 = h0 @ wih1.T + bih1 + h1 @ whh1.T + bhh1
        i, f, g, o = np.split(g1, 4, axis=1)
        c1 = sigmoid(f) * c1 + sigmoid(i) * np.tanh(g)
        h1 = sigmoid(o) * np.tanh(c1)
        ys.append(h1 @ wout[t] + bout[t])
    return np.stack(ys, axis=1)[:, :, None]   # (B, T, 1)


if __name__ == "__main__":
    B, NOISE_DIM, TIME_STEPS = 2, 32, 8

    key = jax.random.PRNGKey(0)
    k_x, k_p = jax.random.split(key)
    x = jax.random.normal(k_x, (B, NOISE_DIM), dtype=jnp.float32)
    params = init_params(k_p, NOISE_DIM, TIME_STEPS)

    prepped = prepare_params(params)          # one-time weight preprocessing
    y = wgan_generator_forward(x, prepped)
    y = jax.block_until_ready(y)

    assert y.shape == (B, TIME_STEPS, 1), y.shape
    y_ref = reference_forward_np(x, params, TIME_STEPS)
    assert np.allclose(np.asarray(y, dtype=np.float64), y_ref, atol=2e-3, rtol=2e-3), \
        f"max abs err {np.max(np.abs(np.asarray(y) - y_ref))}"
    print("KERNEL_OK")
</pallas_src>

<mosaic_0001>
module attributes {stable_mosaic.version = 11 : i64} {
  func.func @wgan_generator_kernel(%arg0: memref<2x32xf32, #tpu.memory_space<vmem>>, %arg1: memref<32x512xf32, #tpu.memory_space<vmem>>, %arg2: memref<1x512xf32, #tpu.memory_space<vmem>>, %arg3: memref<512x256xf32, #tpu.memory_space<vmem>>, %arg4: memref<1x256xf32, #tpu.memory_space<vmem>>, %arg5: memref<256x128xf32, #tpu.memory_space<vmem>>, %arg6: memref<1x128xf32, #tpu.memory_space<vmem>>, %arg7: memref<128x512xf32, #tpu.memory_space<vmem>>, %arg8: memref<128x512xf32, #tpu.memory_space<vmem>>, %arg9: memref<1x512xf32, #tpu.memory_space<vmem>>, %arg10: memref<256x512xf32, #tpu.memory_space<vmem>>, %arg11: memref<1x512xf32, #tpu.memory_space<vmem>>, %arg12: memref<8x128xf32, #tpu.memory_space<vmem>>, %arg13: memref<8x1xf32, #tpu.memory_space<vmem>>, %arg14: memref<8x2xf32, #tpu.memory_space<vmem>>) attributes {dimension_semantics = [], scalar_prefetch = 0 : i64, scratch_operands = 0 : i64, tpu.core_type = #tpu.core_type<tc>} {
    %c0 = arith.constant 0 : index
    %c0_0 = arith.constant 0 : index
    %0 = vector.load %arg0[%c0, %c0_0] : memref<2x32xf32, #tpu.memory_space<vmem>>, vector<2x32xf32>
    %c0_1 = arith.constant 0 : index
    %c0_2 = arith.constant 0 : index
    %1 = vector.load %arg1[%c0_1, %c0_2] : memref<32x512xf32, #tpu.memory_space<vmem>>, vector<32x512xf32>
    %cst = arith.constant dense<0.000000e+00> : vector<2x512xf32>
    %2 = tpu.matmul %0, %1, %cst {dimension_numbers = #tpu.dot_dimension_numbers<[1], [0], [0], [1], [0, 0, 1, 1], [], []>} : vector<2x32xf32>, vector<32x512xf32>, vector<2x512xf32> -> vector<2x512xf32>
    %c0_3 = arith.constant 0 : index
    %c0_4 = arith.constant 0 : index
    %3 = vector.load %arg2[%c0_3, %c0_4] : memref<1x512xf32, #tpu.memory_space<vmem>>, vector<1x512xf32>
    %4 = vector.broadcast %3 : vector<1x512xf32> to vector<2x512xf32>
    %5 = arith.addf %2, %4 : vector<2x512xf32>
    %c0_5 = arith.constant 0 : index
    %c0_6 = arith.constant 0 : index
    %6 = vector.load %arg3[%c0_5, %c0_6] : memref<512x256xf32, #tpu.memory_space<vmem>>, vector<512x256xf32>
    %cst_7 = arith.constant dense<0.000000e+00> : vector<2x256xf32>
    %7 = tpu.matmul %5, %6, %cst_7 {dimension_numbers = #tpu.dot_dimension_numbers<[1], [0], [0], [1], [0, 0, 1, 1], [], []>} : vector<2x512xf32>, vector<512x256xf32>, vector<2x256xf32> -> vector<2x256xf32>
    %c0_8 = arith.constant 0 : index
    %c0_9 = arith.constant 0 : index
    %8 = vector.load %arg4[%c0_8, %c0_9] : memref<1x256xf32, #tpu.memory_space<vmem>>, vector<1x256xf32>
    %9 = vector.broadcast %8 : vector<1x256xf32> to vector<2x256xf32>
    %10 = arith.addf %7, %9 : vector<2x256xf32>
    %c0_10 = arith.constant 0 : index
    %c0_11 = arith.constant 0 : index
    %11 = vector.load %arg5[%c0_10, %c0_11] : memref<256x128xf32, #tpu.memory_space<vmem>>, vector<256x128xf32>
    %cst_12 = arith.constant dense<0.000000e+00> : vector<2x128xf32>
    %12 = tpu.matmul %10, %11, %cst_12 {dimension_numbers = #tpu.dot_dimension_numbers<[1], [0], [0], [1], [0, 0, 1, 1], [], []>} : vector<2x256xf32>, vector<256x128xf32>, vector<2x128xf32> -> vector<2x128xf32>
    %c0_13 = arith.constant 0 : index
    %c0_14 = arith.constant 0 : index
    %13 = vector.load %arg6[%c0_13, %c0_14] : memref<1x128xf32, #tpu.memory_space<vmem>>, vector<1x128xf32>
    %14 = vector.broadcast %13 : vector<1x128xf32> to vector<2x128xf32>
    %15 = arith.addf %12, %14 : vector<2x128xf32>
    %c0_15 = arith.constant 0 : index
    %c0_16 = arith.constant 0 : index
    %16 = vector.load %arg7[%c0_15, %c0_16] : memref<128x512xf32, #tpu.memory_space<vmem>>, vector<128x512xf32>
    %cst_17 = arith.constant dense<0.000000e+00> : vector<2x512xf32>
    %17 = tpu.matmul %15, %16, %cst_17 {dimension_numbers = #tpu.dot_dimension_numbers<[1], [0], [0], [1], [0, 0, 1, 1], [], []>} : vector<2x128xf32>, vector<128x512xf32>, vector<2x512xf32> -> vector<2x512xf32>
    %c0_18 = arith.constant 0 : index
    %c0_19 = arith.constant 0 : index
    %18 = vector.load %arg9[%c0_18, %c0_19] : memref<1x512xf32, #tpu.memory_space<vmem>>, vector<1x512xf32>
    %19 = vector.broadcast %18 : vector<1x512xf32> to vector<2x512xf32>
    %20 = arith.addf %17, %19 : vector<2x512xf32>
    %c0_20 = arith.constant 0 : index
    %c0_21 = arith.constant 0 : index
    %21 = vector.load %arg8[%c0_20, %c0_21] : memref<128x512xf32, #tpu.memory_space<vmem>>, vector<128x512xf32>
    %c0_22 = arith.constant 0 : index
    %c0_23 = arith.constant 0 : index
    %22 = vector.load %arg10[%c0_22, %c0_23] : memref<256x512xf32, #tpu.memory_space<vmem>>, vector<256x512xf32>
    %c0_24 = arith.constant 0 : index
    %c0_25 = arith.constant 0 : index
    %23 = vector.load %arg11[%c0_24, %c0_25] : memref<1x512xf32, #tpu.memory_space<vmem>>, vector<1x512xf32>
    %cst_26 = arith.constant 0.000000e+00 : f32
    %24 = vector.broadcast %cst_26 : f32 to vector<2x128xf32>
    %c0_i32 = arith.constant 0 : i32
    %cst_27 = arith.constant dense<0.000000e+00> : vector<2x512xf32>
    %25 = tpu.matmul %24, %21, %cst_27 {dimension_numbers = #tpu.dot_dimension_numbers<[1], [0], [0], [1], [0, 0, 1, 1], [], []>} : vector<2x128xf32>, vector<128x512xf32>, vector<2x512xf32> -> vector<2x512xf32>
    %26 = arith.addf %20, %25 : vector<2x512xf32>
    %27 = vector.extract_strided_slice %26 {offsets = [0, 0], sizes = [2, 128], strides = [1, 1]} : vector<2x512xf32> to vector<2x128xf32>
    %28 = arith.negf %27 : vector<2x128xf32>
    %29 = math.exp %28 : vector<2x128xf32>
    %cst_28 = arith.constant 1.000000e+00 : f32
    %30 = vector.broadcast %cst_28 : f32 to vector<2x128xf32>
    %31 = arith.addf %30, %29 : vector<2x128xf32>
    %32 = arith.divf %30, %31 : vector<2x128xf32>
    %33 = vector.extract_strided_slice %26 {offsets = [0, 128], sizes = [2, 128], strides = [1, 1]} : vector<2x512xf32> to vector<2x128xf32>
    %34 = arith.negf %33 : vector<2x128xf32>
    %35 = math.exp %34 : vector<2x128xf32>
    %cst_29 = arith.constant 1.000000e+00 : f32
    %36 = vector.broadcast %cst_29 : f32 to vector<2x128xf32>
    %37 = arith.addf %36, %35 : vector<2x128xf32>
    %38 = arith.divf %36, %37 : vector<2x128xf32>
    %39 = vector.extract_strided_slice %26 {offsets = [0, 256], sizes = [2, 128], strides = [1, 1]} : vector<2x512xf32> to vector<2x128xf32>
    %40 = math.tanh %39 : vector<2x128xf32>
    %41 = vector.extract_strided_slice %26 {offsets = [0, 384], sizes = [2, 128], strides = [1, 1]} : vector<2x512xf32> to vector<2x128xf32>
    %42 = arith.negf %41 : vector<2x128xf32>
    %43 = math.exp %42 : vector<2x128xf32>
    %cst_30 = arith.constant 1.000000e+00 : f32
    %44 = vector.broadcast %cst_30 : f32 to vector<2x128xf32>
    %45 = arith.addf %44, %43 : vector<2x128xf32>
    %46 = arith.divf %44, %45 : vector<2x128xf32>
    %47 = arith.mulf %38, %24 : vector<2x128xf32>
    %48 = arith.mulf %32, %40 : vector<2x128xf32>
    %49 = arith.addf %47, %48 : vector<2x128xf32>
    %50 = math.tanh %49 : vector<2x128xf32>
    %51 = arith.mulf %46, %50 : vector<2x128xf32>
    %52 = tpu.concatenate %51, %24 in 1 : vector<2x128xf32>, vector<2x128xf32> -> vector<2x256xf32>
    %cst_31 = arith.constant dense<0.000000e+00> : vector<2x512xf32>
    %53 = tpu.matmul %52, %22, %cst_31 {dimension_numbers = #tpu.dot_dimension_numbers<[1], [0], [0], [1], [0, 0, 1, 1], [], []>} : vector<2x256xf32>, vector<256x512xf32>, vector<2x512xf32> -> vector<2x512xf32>
    %54 = vector.broadcast %23 : vector<1x512xf32> to vector<2x512xf32>
    %55 = arith.addf %53, %54 : vector<2x512xf32>
    %56 = vector.extract_strided_slice %55 {offsets = [0, 0], sizes = [2, 128], strides = [1, 1]} : vector<2x512xf32> to vector<2x128xf32>
    %57 = arith.negf %56 : vector<2x128xf32>
    %58 = math.exp %57 : vector<2x128xf32>
    %cst_32 = arith.constant 1.000000e+00 : f32
    %59 = vector.broadcast %cst_32 : f32 to vector<2x128xf32>
    %60 = arith.addf %59, %58 : vector<2x128xf32>
    %61 = arith.divf %59, %60 : vector<2x128xf32>
    %62 = vector.extract_strided_slice %55 {offsets = [0, 128], sizes = [2, 128], strides = [1, 1]} : vector<2x512xf32> to vector<2x128xf32>
    %63 = arith.negf %62 : vector<2x128xf32>
    %64 = math.exp %63 : vector<2x128xf32>
    %cst_33 = arith.constant 1.000000e+00 : f32
    %65 = vector.broadcast %cst_33 : f32 to vector<2x128xf32>
    %66 = arith.addf %65, %64 : vector<2x128xf32>
    %67 = arith.divf %65, %66 : vector<2x128xf32>
    %68 = vector.extract_strided_slice %55 {offsets = [0, 256], sizes = [2, 128], strides = [1, 1]} : vector<2x512xf32> to vector<2x128xf32>
    %69 = math.tanh %68 : vector<2x128xf32>
    %70 = vector.extract_strided_slice %55 {offsets = [0, 384], sizes = [2, 128], strides = [1, 1]} : vector<2x512xf32> to vector<2x128xf32>
    %71 = arith.negf %70 : vector<2x128xf32>
    %72 = math.exp %71 : vector<2x128xf32>
    %cst_34 = arith.constant 1.000000e+00 : f32
    %73 = vector.broadcast %cst_34 : f32 to vector<2x128xf32>
    %74 = arith.addf %73, %72 : vector<2x128xf32>
    %75 = arith.divf %73, %74 : vector<2x128xf32>
    %76 = arith.mulf %67, %24 : vector<2x128xf32>
    %77 = arith.mulf %61, %69 : vector<2x128xf32>
    %78 = arith.addf %76, %77 : vector<2x128xf32>
    %79 = math.tanh %78 : vector<2x128xf32>
    %80 = arith.mulf %75, %79 : vector<2x128xf32>
    %81 = arith.index_cast %c0_i32 : i32 to index
    %c0_35 = arith.constant 0 : index
    %82 = vector.load %arg12[%81, %c0_35] : memref<8x128xf32, #tpu.memory_space<vmem>>, vector<1x128xf32>
    %83 = vector.broadcast %82 : vector<1x128xf32> to vector<2x128xf32>
    %84 = arith.mulf %80, %83 : vector<2x128xf32>
    %cst_36 = arith.constant dense<0.000000e+00> : vector<2xf32>
    %85 = vector.multi_reduction <add>, %84, %cst_36 [1] : vector<2x128xf32> to vector<2xf32>
    %86 = vector.shape_cast %85 : vector<2xf32> to vector<1x2xf32>
    %87 = arith.index_cast %c0_i32 : i32 to index
    %c0_37 = arith.constant 0 : index
    %88 = vector.load %arg13[%87, %c0_37] : memref<8x1xf32, #tpu.memory_space<vmem>>, vector<1x1xf32>
    %89 = vector.broadcast %88 : vector<1x1xf32> to vector<1x2xf32>
    %90 = arith.addf %86, %89 : vector<1x2xf32>
    %91 = arith.index_cast %c0_i32 : i32 to index
    %c0_38 = arith.constant 0 : index
    %92 = vector.load %arg14[%91, %c0_38] : memref<8x2xf32, #tpu.memory_space<vmem>>, vector<1x2xf32>
    tpu.vector_store %arg14[%91, %c0_38], %90 {strides = array<i32>} : memref<8x2xf32, #tpu.memory_space<vmem>>, vector<1x2xf32>,
    %c1_i32 = arith.constant 1 : i32
    %cst_39 = arith.constant dense<0.000000e+00> : vector<2x512xf32>
    %93 = tpu.matmul %51, %21, %cst_39 {dimension_numbers = #tpu.dot_dimension_numbers<[1], [0], [0], [1], [0, 0, 1, 1], [], []>} : vector<2x128xf32>, vector<128x512xf32>, vector<2x512xf32> -> vector<2x512xf32>
    %94 = arith.addf %20, %93 : vector<2x512xf32>
    %95 = vector.extract_strided_slice %94 {offsets = [0, 0], sizes = [2, 128], strides = [1, 1]} : vector<2x512xf32> to vector<2x128xf32>
    %96 = arith.negf %95 : vector<2x128xf32>
    %97 = math.exp %96 : vector<2x128xf32>
    %cst_40 = arith.constant 1.000000e+00 : f32
    %98 = vector.broadcast %cst_40 : f32 to vector<2x128xf32>
    %99 = arith.addf %98, %97 : vector<2x128xf32>
    %100 = arith.divf %98, %99 : vector<2x128xf32>
    %101 = vector.extract_strided_slice %94 {offsets = [0, 128], sizes = [2, 128], strides = [1, 1]} : vector<2x512xf32> to vector<2x128xf32>
    %102 = arith.negf %101 : vector<2x128xf32>
    %103 = math.exp %102 : vector<2x128xf32>
    %cst_41 = arith.constant 1.000000e+00 : f32
    %104 = vector.broadcast %cst_41 : f32 to vector<2x128xf32>
    %105 = arith.addf %104, %103 : vector<2x128xf32>
    %106 = arith.divf %104, %105 : vector<2x128xf32>
    %107 = vector.extract_strided_slice %94 {offsets = [0, 256], sizes = [2, 128], strides = [1, 1]} : vector<2x512xf32> to vector<2x128xf32>
    %108 = math.tanh %107 : vector<2x128xf32>
    %109 = vector.extract_strided_slice %94 {offsets = [0, 384], sizes = [2, 128], strides = [1, 1]} : vector<2x512xf32> to vector<2x128xf32>
    %110 = arith.negf %109 : vector<2x128xf32>
    %111 = math.exp %110 : vector<2x128xf32>
    %cst_42 = arith.constant 1.000000e+00 : f32
    %112 = vector.broadcast %cst_42 : f32 to vector<2x128xf32>
    %113 = arith.addf %112, %111 : vector<2x128xf32>
    %114 = arith.divf %112, %113 : vector<2x128xf32>
    %115 = arith.mulf %106, %49 : vector<2x128xf32>
    %116 = arith.mulf %100, %108 : vector<2x128xf32>
    %117 = arith.addf %115, %116 : vector<2x128xf32>
    %118 = math.tanh %117 : vector<2x128xf32>
    %119 = arith.mulf %114, %118 : vector<2x128xf32>
    %120 = tpu.concatenate %119, %80 in 1 : vector<2x128xf32>, vector<2x128xf32> -> vector<2x256xf32>
    %cst_43 = arith.constant dense<0.000000e+00> : vector<2x512xf32>
    %121 = tpu.matmul %120, %22, %cst_43 {dimension_numbers = #tpu.dot_dimension_numbers<[1], [0], [0], [1], [0, 0, 1, 1], [], []>} : vector<2x256xf32>, vector<256x512xf32>, vector<2x512xf32> -> vector<2x512xf32>
    %122 = vector.broadcast %23 : vector<1x512xf32> to vector<2x512xf32>
    %123 = arith.addf %121, %122 : vector<2x512xf32>
    %124 = vector.extract_strided_slice %123 {offsets = [0, 0], sizes = [2, 128], strides = [1, 1]} : vector<2x512xf32> to vector<2x128xf32>
    %125 = arith.negf %124 : vector<2x128xf32>
    %126 = math.exp %125 : vector<2x128xf32>
    %cst_44 = arith.constant 1.000000e+00 : f32
    %127 = vector.broadcast %cst_44 : f32 to vector<2x128xf32>
    %128 = arith.addf %127, %126 : vector<2x128xf32>
    %129 = arith.divf %127, %128 : vector<2x128xf32>
    %130 = vector.extract_strided_slice %123 {offsets = [0, 128], sizes = [2, 128], strides = [1, 1]} : vector<2x512xf32> to vector<2x128xf32>
    %131 = arith.negf %130 : vector<2x128xf32>
    %132 = math.exp %131 : vector<2x128xf32>
    %cst_45 = arith.constant 1.000000e+00 : f32
    %133 = vector.broadcast %cst_45 : f32 to vector<2x128xf32>
    %134 = arith.addf %133, %132 : vector<2x128xf32>
    %135 = arith.divf %133, %134 : vector<2x128xf32>
    %136 = vector.extract_strided_slice %123 {offsets = [0, 256], sizes = [2, 128], strides = [1, 1]} : vector<2x512xf32> to vector<2x128xf32>
    %137 = math.tanh %136 : vector<2x128xf32>
    %138 = vector.extract_strided_slice %123 {offsets = [0, 384], sizes = [2, 128], strides = [1, 1]} : vector<2x512xf32> to vector<2x128xf32>
    %139 = arith.negf %138 : vector<2x128xf32>
    %140 = math.exp %139 : vector<2x128xf32>
    %cst_46 = arith.constant 1.000000e+00 : f32
    %141 = vector.broadcast %cst_46 : f32 to vector<2x128xf32>
    %142 = arith.addf %141, %140 : vector<2x128xf32>
    %143 = arith.divf %141, %142 : vector<2x128xf32>
    %144 = arith.mulf %135, %78 : vector<2x128xf32>
    %145 = arith.mulf %129, %137 : vector<2x128xf32>
    %146 = arith.addf %144, %145 : vector<2x128xf32>
    %147 = math.tanh %146 : vector<2x128xf32>
    %148 = arith.mulf %143, %147 : vector<2x128xf32>
    %149 = arith.index_cast %c1_i32 : i32 to index
    %c0_47 = arith.constant 0 : index
    %150 = vector.load %arg12[%149, %c0_47] : memref<8x128xf32, #tpu.memory_space<vmem>>, vector<1x128xf32>
    %151 = vector.broadcast %150 : vector<1x128xf32> to vector<2x128xf32>
    %152 = arith.mulf %148, %151 : vector<2x128xf32>
    %cst_48 = arith.constant dense<0.000000e+00> : vector<2xf32>
    %153 = vector.multi_reduction <add>, %152, %cst_48 [1] : vector<2x128xf32> to vector<2xf32>
    %154 = vector.shape_cast %153 : vector<2xf32> to vector<1x2xf32>
    %155 = arith.index_cast %c1_i32 : i32 to index
    %c0_49 = arith.constant 0 : index
    %156 = vector.load %arg13[%155, %c0_49] : memref<8x1xf32, #tpu.memory_space<vmem>>, vector<1x1xf32>
    %157 = vector.broadcast %156 : vector<1x1xf32> to vector<1x2xf32>
    %158 = arith.addf %154, %157 : vector<1x2xf32>
    %159 = arith.index_cast %c1_i32 : i32 to index
    %c0_50 = arith.constant 0 : index
    %160 = vector.load %arg14[%159, %c0_50] : memref<8x2xf32, #tpu.memory_space<vmem>>, vector<1x2xf32>
    tpu.vector_store %arg14[%159, %c0_50], %158 {strides = array<i32>} : memref<8x2xf32, #tpu.memory_space<vmem>>, vector<1x2xf32>,
    %c2_i32 = arith.constant 2 : i32
    %cst_51 = arith.constant dense<0.000000e+00> : vector<2x512xf32>
    %161 = tpu.matmul %119, %21, %cst_51 {dimension_numbers = #tpu.dot_dimension_numbers<[1], [0], [0], [1], [0, 0, 1, 1], [], []>} : vector<2x128xf32>, vector<128x512xf32>, vector<2x512xf32> -> vector<2x512xf32>
    %162 = arith.addf %20, %161 : vector<2x512xf32>
    %163 = vector.extract_strided_slice %162 {offsets = [0, 0], sizes = [2, 128], strides = [1, 1]} : vector<2x512xf32> to vector<2x128xf32>
    %164 = arith.negf %163 : vector<2x128xf32>
    %165 = math.exp %164 : vector<2x128xf32>
    %cst_52 = arith.constant 1.000000e+00 : f32
    %166 = vector.broadcast %cst_52 : f32 to vector<2x128xf32>
    %167 = arith.addf %166, %165 : vector<2x128xf32>
    %168 = arith.divf %166, %167 : vector<2x128xf32>
    %169 = vector.extract_strided_slice %162 {offsets = [0, 128], sizes = [2, 128], strides = [1, 1]} : vector<2x512xf32> to vector<2x128xf32>
    %170 = arith.negf %169 : vector<2x128xf32>
    %171 = math.exp %170 : vector<2x128xf32>
    %cst_53 = arith.constant 1.000000e+00 : f32
    %172 = vector.broadcast %cst_53 : f32 to vector<2x128xf32>
    %173 = arith.addf %172, %171 : vector<2x128xf32>
    %174 = arith.divf %172, %173 : vector<2x128xf32>
    %175 = vector.extract_strided_slice %162 {offsets = [0, 256], sizes = [2, 128], strides = [1, 1]} : vector<2x512xf32> to vector<2x128xf32>
    %176 = math.tanh %175 : vector<2x128xf32>
    %177 = vector.extract_strided_slice %162 {offsets = [0, 384], sizes = [2, 128], strides = [1, 1]} : vector<2x512xf32> to vector<2x128xf32>
    %178 = arith.negf %177 : vector<2x128xf32>
    %179 = math.exp %178 : vector<2x128xf32>
    %cst_54 = arith.constant 1.000000e+00 : f32
    %180 = vector.broadcast %cst_54 : f32 to vector<2x128xf32>
    %181 = arith.addf %180, %179 : vector<2x128xf32>
    %182 = arith.divf %180, %181 : vector<2x128xf32>
    %183 = arith.mulf %174, %117 : vector<2x128xf32>
    %184 = arith.mulf %168, %176 : vector<2x128xf32>
    %185 = arith.addf %183, %184 : vector<2x128xf32>
    %186 = math.tanh %185 : vector<2x128xf32>
    %187 = arith.mulf %182, %186 : vector<2x128xf32>
    %188 = tpu.concatenate %187, %148 in 1 : vector<2x128xf32>, vector<2x128xf32> -> vector<2x256xf32>
    %cst_55 = arith.constant dense<0.000000e+00> : vector<2x512xf32>
    %189 = tpu.matmul %188, %22, %cst_55 {dimension_numbers = #tpu.dot_dimension_numbers<[1], [0], [0], [1], [0, 0, 1, 1], [], []>} : vector<2x256xf32>, vector<256x512xf32>, vector<2x512xf32> -> vector<2x512xf32>
    %190 = vector.broadcast %23 : vector<1x512xf32> to vector<2x512xf32>
    %191 = arith.addf %189, %190 : vector<2x512xf32>
    %192 = vector.extract_strided_slice %191 {offsets = [0, 0], sizes = [2, 128], strides = [1, 1]} : vector<2x512xf32> to vector<2x128xf32>
    %193 = arith.negf %192 : vector<2x128xf32>
    %194 = math.exp %193 : vector<2x128xf32>
    %cst_56 = arith.constant 1.000000e+00 : f32
    %195 = vector.broadcast %cst_56 : f32 to vector<2x128xf32>
    %196 = arith.addf %195, %194 : vector<2x128xf32>
    %197 = arith.divf %195, %196 : vector<2x128xf32>
    %198 = vector.extract_strided_slice %191 {offsets = [0, 128], sizes = [2, 128], strides = [1, 1]} : vector<2x512xf32> to vector<2x128xf32>
    %199 = arith.negf %198 : vector<2x128xf32>
    %200 = math.exp %199 : vector<2x128xf32>
    %cst_57 = arith.constant 1.000000e+00 : f32
    %201 = vector.broadcast %cst_57 : f32 to vector<2x128xf32>
    %202 = arith.addf %201, %200 : vector<2x128xf32>
    %203 = arith.divf %201, %202 : vector<2x128xf32>
    %204 = vector.extract_strided_slice %191 {offsets = [0, 256], sizes = [2, 128], strides = [1, 1]} : vector<2x512xf32> to vector<2x128xf32>
    %205 = math.tanh %204 : vector<2x128xf32>
    %206 = vector.extract_strided_slice %191 {offsets = [0, 384], sizes = [2, 128], strides = [1, 1]} : vector<2x512xf32> to vector<2x128xf32>
    %207 = arith.negf %206 : vector<2x128xf32>
    %208 = math.exp %207 : vector<2x128xf32>
    %cst_58 = arith.constant 1.000000e+00 : f32
    %209 = vector.broadcast %cst_58 : f32 to vector<2x128xf32>
    %210 = arith.addf %209, %208 : vector<2x128xf32>
    %211 = arith.divf %209, %210 : vector<2x128xf32>
    %212 = arith.mulf %203, %146 : vector<2x128xf32>
    %213 = arith.mulf %197, %205 : vector<2x128xf32>
    %214 = arith.addf %212, %213 : vector<2x128xf32>
    %215 = math.tanh %214 : vector<2x128xf32>
    %216 = arith.mulf %211, %215 : vector<2x128xf32>
    %217 = arith.index_cast %c2_i32 : i32 to index
    %c0_59 = arith.constant 0 : index
    %218 = vector.load %arg12[%217, %c0_59] : memref<8x128xf32, #tpu.memory_space<vmem>>, vector<1x128xf32>
    %219 = vector.broadcast %218 : vector<1x128xf32> to vector<2x128xf32>
    %220 = arith.mulf %216, %219 : vector<2x128xf32>
    %cst_60 = arith.constant dense<0.000000e+00> : vector<2xf32>
    %221 = vector.multi_reduction <add>, %220, %cst_60 [1] : vector<2x128xf32> to vector<2xf32>
    %222 = vector.shape_cast %221 : vector<2xf32> to vector<1x2xf32>
    %223 = arith.index_cast %c2_i32 : i32 to index
    %c0_61 = arith.constant 0 : index
    %224 = vector.load %arg13[%223, %c0_61] : memref<8x1xf32, #tpu.memory_space<vmem>>, vector<1x1xf32>
    %225 = vector.broadcast %224 : vector<1x1xf32> to vector<1x2xf32>
    %226 = arith.addf %222, %225 : vector<1x2xf32>
    %227 = arith.index_cast %c2_i32 : i32 to index
    %c0_62 = arith.constant 0 : index
    %228 = vector.load %arg14[%227, %c0_62] : memref<8x2xf32, #tpu.memory_space<vmem>>, vector<1x2xf32>
    tpu.vector_store %arg14[%227, %c0_62], %226 {strides = array<i32>} : memref<8x2xf32, #tpu.memory_space<vmem>>, vector<1x2xf32>,
    %c3_i32 = arith.constant 3 : i32
    %cst_63 = arith.constant dense<0.000000e+00> : vector<2x512xf32>
    %229 = tpu.matmul %187, %21, %cst_63 {dimension_numbers = #tpu.dot_dimension_numbers<[1], [0], [0], [1], [0, 0, 1, 1], [], []>} : vector<2x128xf32>, vector<128x512xf32>, vector<2x512xf32> -> vector<2x512xf32>
    %230 = arith.addf %20, %229 : vector<2x512xf32>
    %231 = vector.extract_strided_slice %230 {offsets = [0, 0], sizes = [2, 128], strides = [1, 1]} : vector<2x512xf32> to vector<2x128xf32>
    %232 = arith.negf %231 : vector<2x128xf32>
    %233 = math.exp %232 : vector<2x128xf32>
    %cst_64 = arith.constant 1.000000e+00 : f32
    %234 = vector.broadcast %cst_64 : f32 to vector<2x128xf32>
    %235 = arith.addf %234, %233 : vector<2x128xf32>
    %236 = arith.divf %234, %235 : vector<2x128xf32>
    %237 = vector.extract_strided_slice %230 {offsets = [0, 128], sizes = [2, 128], strides = [1, 1]} : vector<2x512xf32> to vector<2x128xf32>
    %238 = arith.negf %237 : vector<2x128xf32>
    %239 = math.exp %238 : vector<2x128xf32>
    %cst_65 = arith.constant 1.000000e+00 : f32
    %240 = vector.broadcast %cst_65 : f32 to vector<2x128xf32>
    %241 = arith.addf %240, %239 : vector<2x128xf32>
    %242 = arith.divf %240, %241 : vector<2x128xf32>
    %243 = vector.extract_strided_slice %230 {offsets = [0, 256], sizes = [2, 128], strides = [1, 1]} : vector<2x512xf32> to vector<2x128xf32>
    %244 = math.tanh %243 : vector<2x128xf32>
    %245 = vector.extract_strided_slice %230 {offsets = [0, 384], sizes = [2, 128], strides = [1, 1]} : vector<2x512xf32> to vector<2x128xf32>
    %246 = arith.negf %245 : vector<2x128xf32>
    %247 = math.exp %246 : vector<2x128xf32>
    %cst_66 = arith.constant 1.000000e+00 : f32
    %248 = vector.broadcast %cst_66 : f32 to vector<2x128xf32>
    %249 = arith.addf %248, %247 : vector<2x128xf32>
    %250 = arith.divf %248, %249 : vector<2x128xf32>
    %251 = arith.mulf %242, %185 : vector<2x128xf32>
    %252 = arith.mulf %236, %244 : vector<2x128xf32>
    %253 = arith.addf %251, %252 : vector<2x128xf32>
    %254 = math.tanh %253 : vector<2x128xf32>
    %255 = arith.mulf %250, %254 : vector<2x128xf32>
    %256 = tpu.concatenate %255, %216 in 1 : vector<2x128xf32>, vector<2x128xf32> -> vector<2x256xf32>
    %cst_67 = arith.constant dense<0.000000e+00> : vector<2x512xf32>
    %257 = tpu.matmul %256, %22, %cst_67 {dimension_numbers = #tpu.dot_dimension_numbers<[1], [0], [0], [1], [0, 0, 1, 1], [], []>} : vector<2x256xf32>, vector<256x512xf32>, vector<2x512xf32> -> vector<2x512xf32>
    %258 = vector.broadcast %23 : vector<1x512xf32> to vector<2x512xf32>
    %259 = arith.addf %257, %258 : vector<2x512xf32>
    %260 = vector.extract_strided_slice %259 {offsets = [0, 0], sizes = [2, 128], strides = [1, 1]} : vector<2x512xf32> to vector<2x128xf32>
    %261 = arith.negf %260 : vector<2x128xf32>
    %262 = math.exp %261 : vector<2x128xf32>
    %cst_68 = arith.constant 1.000000e+00 : f32
    %263 = vector.broadcast %cst_68 : f32 to vector<2x128xf32>
    %264 = arith.addf %263, %262 : vector<2x128xf32>
    %265 = arith.divf %263, %264 : vector<2x128xf32>
    %266 = vector.extract_strided_slice %259 {offsets = [0, 128], sizes = [2, 128], strides = [1, 1]} : vector<2x512xf32> to vector<2x128xf32>
    %267 = arith.negf %266 : vector<2x128xf32>
    %268 = math.exp %267 : vector<2x128xf32>
    %cst_69 = arith.constant 1.000000e+00 : f32
    %269 = vector.broadcast %cst_69 : f32 to vector<2x128xf32>
    %270 = arith.addf %269, %268 : vector<2x128xf32>
    %271 = arith.divf %269, %270 : vector<2x128xf32>
    %272 = vector.extract_strided_slice %259 {offsets = [0, 256], sizes = [2, 128], strides = [1, 1]} : vector<2x512xf32> to vector<2x128xf32>
    %273 = math.tanh %272 : vector<2x128xf32>
    %274 = vector.extract_strided_slice %259 {offsets = [0, 384], sizes = [2, 128], strides = [1, 1]} : vector<2x512xf32> to vector<2x128xf32>
    %275 = arith.negf %274 : vector<2x128xf32>
    %276 = math.exp %275 : vector<2x128xf32>
    %cst_70 = arith.constant 1.000000e+00 : f32
    %277 = vector.broadcast %cst_70 : f32 to vector<2x128xf32>
    %278 = arith.addf %277, %276 : vector<2x128xf32>
    %279 = arith.divf %277, %278 : vector<2x128xf32>
    %280 = arith.mulf %271, %214 : vector<2x128xf32>
    %281 = arith.mulf %265, %273 : vector<2x128xf32>
    %282 = arith.addf %280, %281 : vector<2x128xf32>
    %283 = math.tanh %282 : vector<2x128xf32>
    %284 = arith.mulf %279, %283 : vector<2x128xf32>
    %285 = arith.index_cast %c3_i32 : i32 to index
    %c0_71 = arith.constant 0 : index
    %286 = vector.load %arg12[%285, %c0_71] : memref<8x128xf32, #tpu.memory_space<vmem>>, vector<1x128xf32>
    %287 = vector.broadcast %286 : vector<1x128xf32> to vector<2x128xf32>
    %288 = arith.mulf %284, %287 : vector<2x128xf32>
    %cst_72 = arith.constant dense<0.000000e+00> : vector<2xf32>
    %289 = vector.multi_reduction <add>, %288, %cst_72 [1] : vector<2x128xf32> to vector<2xf32>
    %290 = vector.shape_cast %289 : vector<2xf32> to vector<1x2xf32>
    %291 = arith.index_cast %c3_i32 : i32 to index
    %c0_73 = arith.constant 0 : index
    %292 = vector.load %arg13[%291, %c0_73] : memref<8x1xf32, #tpu.memory_space<vmem>>, vector<1x1xf32>
    %293 = vector.broadcast %292 : vector<1x1xf32> to vector<1x2xf32>
    %294 = arith.addf %290, %293 : vector<1x2xf32>
    %295 = arith.index_cast %c3_i32 : i32 to index
    %c0_74 = arith.constant 0 : index
    %296 = vector.load %arg14[%295, %c0_74] : memref<8x2xf32, #tpu.memory_space<vmem>>, vector<1x2xf32>
    tpu.vector_store %arg14[%295, %c0_74], %294 {strides = array<i32>} : memref<8x2xf32, #tpu.memory_space<vmem>>, vector<1x2xf32>,
    %c4_i32 = arith.constant 4 : i32
    %cst_75 = arith.constant dense<0.000000e+00> : vector<2x512xf32>
    %297 = tpu.matmul %255, %21, %cst_75 {dimension_numbers = #tpu.dot_dimension_numbers<[1], [0], [0], [1], [0, 0, 1, 1], [], []>} : vector<2x128xf32>, vector<128x512xf32>, vector<2x512xf32> -> vector<2x512xf32>
    %298 = arith.addf %20, %297 : vector<2x512xf32>
    %299 = vector.extract_strided_slice %298 {offsets = [0, 0], sizes = [2, 128], strides = [1, 1]} : vector<2x512xf32> to vector<2x128xf32>
    %300 = arith.negf %299 : vector<2x128xf32>
    %301 = math.exp %300 : vector<2x128xf32>
    %cst_76 = arith.constant 1.000000e+00 : f32
    %302 = vector.broadcast %cst_76 : f32 to vector<2x128xf32>
    %303 = arith.addf %302, %301 : vector<2x128xf32>
    %304 = arith.divf %302, %303 : vector<2x128xf32>
    %305 = vector.extract_strided_slice %298 {offsets = [0, 128], sizes = [2, 128], strides = [1, 1]} : vector<2x512xf32> to vector<2x128xf32>
    %306 = arith.negf %305 : vector<2x128xf32>
    %307 = math.exp %306 : vector<2x128xf32>
    %cst_77 = arith.constant 1.000000e+00 : f32
    %308 = vector.broadcast %cst_77 : f32 to vector<2x128xf32>
    %309 = arith.addf %308, %307 : vector<2x128xf32>
    %310 = arith.divf %308, %309 : vector<2x128xf32>
    %311 = vector.extract_strided_slice %298 {offsets = [0, 256], sizes = [2, 128], strides = [1, 1]} : vector<2x512xf32> to vector<2x128xf32>
    %312 = math.tanh %311 : vector<2x128xf32>
    %313 = vector.extract_strided_slice %298 {offsets = [0, 384], sizes = [2, 128], strides = [1, 1]} : vector<2x512xf32> to vector<2x128xf32>
    %314 = arith.negf %313 : vector<2x128xf32>
    %315 = math.exp %314 : vector<2x128xf32>
    %cst_78 = arith.constant 1.000000e+00 : f32
    %316 = vector.broadcast %cst_78 : f32 to vector<2x128xf32>
    %317 = arith.addf %316, %315 : vector<2x128xf32>
    %318 = arith.divf %316, %317 : vector<2x128xf32>
    %319 = arith.mulf %310, %253 : vector<2x128xf32>
    %320 = arith.mulf %304, %312 : vector<2x128xf32>
    %321 = arith.addf %319, %320 : vector<2x128xf32>
    %322 = math.tanh %321 : vector<2x128xf32>
    %323 = arith.mulf %318, %322 : vector<2x128xf32>
    %324 = tpu.concatenate %323, %284 in 1 : vector<2x128xf32>, vector<2x128xf32> -> vector<2x256xf32>
    %cst_79 = arith.constant dense<0.000000e+00> : vector<2x512xf32>
    %325 = tpu.matmul %324, %22, %cst_79 {dimension_numbers = #tpu.dot_dimension_numbers<[1], [0], [0], [1], [0, 0, 1, 1], [], []>} : vector<2x256xf32>, vector<256x512xf32>, vector<2x512xf32> -> vector<2x512xf32>
    %326 = vector.broadcast %23 : vector<1x512xf32> to vector<2x512xf32>
    %327 = arith.addf %325, %326 : vector<2x512xf32>
    %328 = vector.extract_strided_slice %327 {offsets = [0, 0], sizes = [2, 128], strides = [1, 1]} : vector<2x512xf32> to vector<2x128xf32>
    %329 = arith.negf %328 : vector<2x128xf32>
    %330 = math.exp %329 : vector<2x128xf32>
    %cst_80 = arith.constant 1.000000e+00 : f32
    %331 = vector.broadcast %cst_80 : f32 to vector<2x128xf32>
    %332 = arith.addf %331, %330 : vector<2x128xf32>
    %333 = arith.divf %331, %332 : vector<2x128xf32>
    %334 = vector.extract_strided_slice %327 {offsets = [0, 128], sizes = [2, 128], strides = [1, 1]} : vector<2x512xf32> to vector<2x128xf32>
    %335 = arith.negf %334 : vector<2x128xf32>
    %336 = math.exp %335 : vector<2x128xf32>
    %cst_81 = arith.constant 1.000000e+00 : f32
    %337 = vector.broadcast %cst_81 : f32 to vector<2x128xf32>
    %338 = arith.addf %337, %336 : vector<2x128xf32>
    %339 = arith.divf %337, %338 : vector<2x128xf32>
    %340 = vector.extract_strided_slice %327 {offsets = [0, 256], sizes = [2, 128], strides = [1, 1]} : vector<2x512xf32> to vector<2x128xf32>
    %341 = math.tanh %340 : vector<2x128xf32>
    %342 = vector.extract_strided_slice %327 {offsets = [0, 384], sizes = [2, 128], strides = [1, 1]} : vector<2x512xf32> to vector<2x128xf32>
    %343 = arith.negf %342 : vector<2x128xf32>
    %344 = math.exp %343 : vector<2x128xf32>
    %cst_82 = arith.constant 1.000000e+00 : f32
    %345 = vector.broadcast %cst_82 : f32 to vector<2x128xf32>
    %346 = arith.addf %345, %344 : vector<2x128xf32>
    %347 = arith.divf %345, %346 : vector<2x128xf32>
    %348 = arith.mulf %339, %282 : vector<2x128xf32>
    %349 = arith.mulf %333, %341 : vector<2x128xf32>
    %350 = arith.addf %348, %349 : vector<2x128xf32>
    %351 = math.tanh %350 : vector<2x128xf32>
    %352 = arith.mulf %347, %351 : vector<2x128xf32>
    %353 = arith.index_cast %c4_i32 : i32 to index
    %c0_83 = arith.constant 0 : index
    %354 = vector.load %arg12[%353, %c0_83] : memref<8x128xf32, #tpu.memory_space<vmem>>, vector<1x128xf32>
    %355 = vector.broadcast %354 : vector<1x128xf32> to vector<2x128xf32>
    %356 = arith.mulf %352, %355 : vector<2x128xf32>
    %cst_84 = arith.constant dense<0.000000e+00> : vector<2xf32>
    %357 = vector.multi_reduction <add>, %356, %cst_84 [1] : vector<2x128xf32> to vector<2xf32>
    %358 = vector.shape_cast %357 : vector<2xf32> to vector<1x2xf32>
    %359 = arith.index_cast %c4_i32 : i32 to index
    %c0_85 = arith.constant 0 : index
    %360 = vector.load %arg13[%359, %c0_85] : memref<8x1xf32, #tpu.memory_space<vmem>>, vector<1x1xf32>
    %361 = vector.broadcast %360 : vector<1x1xf32> to vector<1x2xf32>
    %362 = arith.addf %358, %361 : vector<1x2xf32>
    %363 = arith.index_cast %c4_i32 : i32 to index
    %c0_86 = arith.constant 0 : index
    %364 = vector.load %arg14[%363, %c0_86] : memref<8x2xf32, #tpu.memory_space<vmem>>, vector<1x2xf32>
    tpu.vector_store %arg14[%363, %c0_86], %362 {strides = array<i32>} : memref<8x2xf32, #tpu.memory_space<vmem>>, vector<1x2xf32>,
    %c5_i32 = arith.constant 5 : i32
    %cst_87 = arith.constant dense<0.000000e+00> : vector<2x512xf32>
    %365 = tpu.matmul %323, %21, %cst_87 {dimension_numbers = #tpu.dot_dimension_numbers<[1], [0], [0], [1], [0, 0, 1, 1], [], []>} : vector<2x128xf32>, vector<128x512xf32>, vector<2x512xf32> -> vector<2x512xf32>
    %366 = arith.addf %20, %365 : vector<2x512xf32>
    %367 = vector.extract_strided_slice %366 {offsets = [0, 0], sizes = [2, 128], strides = [1, 1]} : vector<2x512xf32> to vector<2x128xf32>
    %368 = arith.negf %367 : vector<2x128xf32>
    %369 = math.exp %368 : vector<2x128xf32>
    %cst_88 = arith.constant 1.000000e+00 : f32
    %370 = vector.broadcast %cst_88 : f32 to vector<2x128xf32>
    %371 = arith.addf %370, %369 : vector<2x128xf32>
    %372 = arith.divf %370, %371 : vector<2x128xf32>
    %373 = vector.extract_strided_slice %366 {offsets = [0, 128], sizes = [2, 128], strides = [1, 1]} : vector<2x512xf32> to vector<2x128xf32>
    %374 = arith.negf %373 : vector<2x128xf32>
    %375 = math.exp %374 : vector<2x128xf32>
    %cst_89 = arith.constant 1.000000e+00 : f32
    %376 = vector.broadcast %cst_89 : f32 to vector<2x128xf32>
    %377 = arith.addf %376, %375 : vector<2x128xf32>
    %378 = arith.divf %376, %377 : vector<2x128xf32>
    %379 = vector.extract_strided_slice %366 {offsets = [0, 256], sizes = [2, 128], strides = [1, 1]} : vector<2x512xf32> to vector<2x128xf32>
    %380 = math.tanh %379 : vector<2x128xf32>
    %381 = vector.extract_strided_slice %366 {offsets = [0, 384], sizes = [2, 128], strides = [1, 1]} : vector<2x512xf32> to vector<2x128xf32>
    %382 = arith.negf %381 : vector<2x128xf32>
    %383 = math.exp %382 : vector<2x128xf32>
    %cst_90 = arith.constant 1.000000e+00 : f32
    %384 = vector.broadcast %cst_90 : f32 to vector<2x128xf32>
    %385 = arith.addf %384, %383 : vector<2x128xf32>
    %386 = arith.divf %384, %385 : vector<2x128xf32>
    %387 = arith.mulf %378, %321 : vector<2x128xf32>
    %388 = arith.mulf %372, %380 : vector<2x128xf32>
    %389 = arith.addf %387, %388 : vector<2x128xf32>
    %390 = math.tanh %389 : vector<2x128xf32>
    %391 = arith.mulf %386, %390 : vector<2x128xf32>
    %392 = tpu.concatenate %391, %352 in 1 : vector<2x128xf32>, vector<2x128xf32> -> vector<2x256xf32>
    %cst_91 = arith.constant dense<0.000000e+00> : vector<2x512xf32>
    %393 = tpu.matmul %392, %22, %cst_91 {dimension_numbers = #tpu.dot_dimension_numbers<[1], [0], [0], [1], [0, 0, 1, 1], [], []>} : vector<2x256xf32>, vector<256x512xf32>, vector<2x512xf32> -> vector<2x512xf32>
    %394 = vector.broadcast %23 : vector<1x512xf32> to vector<2x512xf32>
    %395 = arith.addf %393, %394 : vector<2x512xf32>
    %396 = vector.extract_strided_slice %395 {offsets = [0, 0], sizes = [2, 128], strides = [1, 1]} : vector<2x512xf32> to vector<2x128xf32>
    %397 = arith.negf %396 : vector<2x128xf32>
    %398 = math.exp %397 : vector<2x128xf32>
    %cst_92 = arith.constant 1.000000e+00 : f32
    %399 = vector.broadcast %cst_92 : f32 to vector<2x128xf32>
    %400 = arith.addf %399, %398 : vector<2x128xf32>
    %401 = arith.divf %399, %400 : vector<2x128xf32>
    %402 = vector.extract_strided_slice %395 {offsets = [0, 128], sizes = [2, 128], strides = [1, 1]} : vector<2x512xf32> to vector<2x128xf32>
    %403 = arith.negf %402 : vector<2x128xf32>
    %404 = math.exp %403 : vector<2x128xf32>
    %cst_93 = arith.constant 1.000000e+00 : f32
    %405 = vector.broadcast %cst_93 : f32 to vector<2x128xf32>
    %406 = arith.addf %405, %404 : vector<2x128xf32>
    %407 = arith.divf %405, %406 : vector<2x128xf32>
    %408 = vector.extract_strided_slice %395 {offsets = [0, 256], sizes = [2, 128], strides = [1, 1]} : vector<2x512xf32> to vector<2x128xf32>
    %409 = math.tanh %408 : vector<2x128xf32>
    %410 = vector.extract_strided_slice %395 {offsets = [0, 384], sizes = [2, 128], strides = [1, 1]} : vector<2x512xf32> to vector<2x128xf32>
    %411 = arith.negf %410 : vector<2x128xf32>
    %412 = math.exp %411 : vector<2x128xf32>
    %cst_94 = arith.constant 1.000000e+00 : f32
    %413 = vector.broadcast %cst_94 : f32 to vector<2x128xf32>
    %414 = arith.addf %413, %412 : vector<2x128xf32>
    %415 = arith.divf %413, %414 : vector<2x128xf32>
    %416 = arith.mulf %407, %350 : vector<2x128xf32>
    %417 = arith.mulf %401, %409 : vector<2x128xf32>
    %418 = arith.addf %416, %417 : vector<2x128xf32>
    %419 = math.tanh %418 : vector<2x128xf32>
    %420 = arith.mulf %415, %419 : vector<2x128xf32>
    %421 = arith.index_cast %c5_i32 : i32 to index
    %c0_95 = arith.constant 0 : index
    %422 = vector.load %arg12[%421, %c0_95] : memref<8x128xf32, #tpu.memory_space<vmem>>, vector<1x128xf32>
    %423 = vector.broadcast %422 : vector<1x128xf32> to vector<2x128xf32>
    %424 = arith.mulf %420, %423 : vector<2x128xf32>
    %cst_96 = arith.constant dense<0.000000e+00> : vector<2xf32>
    %425 = vector.multi_reduction <add>, %424, %cst_96 [1] : vector<2x128xf32> to vector<2xf32>
    %426 = vector.shape_cast %425 : vector<2xf32> to vector<1x2xf32>
    %427 = arith.index_cast %c5_i32 : i32 to index
    %c0_97 = arith.constant 0 : index
    %428 = vector.load %arg13[%427, %c0_97] : memref<8x1xf32, #tpu.memory_space<vmem>>, vector<1x1xf32>
    %429 = vector.broadcast %428 : vector<1x1xf32> to vector<1x2xf32>
    %430 = arith.addf %426, %429 : vector<1x2xf32>
    %431 = arith.index_cast %c5_i32 : i32 to index
    %c0_98 = arith.constant 0 : index
    %432 = vector.load %arg14[%431, %c0_98] : memref<8x2xf32, #tpu.memory_space<vmem>>, vector<1x2xf32>
    tpu.vector_store %arg14[%431, %c0_98], %430 {strides = array<i32>} : memref<8x2xf32, #tpu.memory_space<vmem>>, vector<1x2xf32>,
    %c6_i32 = arith.constant 6 : i32
    %cst_99 = arith.constant dense<0.000000e+00> : vector<2x512xf32>
    %433 = tpu.matmul %391, %21, %cst_99 {dimension_numbers = #tpu.dot_dimension_numbers<[1], [0], [0], [1], [0, 0, 1, 1], [], []>} : vector<2x128xf32>, vector<128x512xf32>, vector<2x512xf32> -> vector<2x512xf32>
    %434 = arith.addf %20, %433 : vector<2x512xf32>
    %435 = vector.extract_strided_slice %434 {offsets = [0, 0], sizes = [2, 128], strides = [1, 1]} : vector<2x512xf32> to vector<2x128xf32>
    %436 = arith.negf %435 : vector<2x128xf32>
    %437 = math.exp %436 : vector<2x128xf32>
    %cst_100 = arith.constant 1.000000e+00 : f32
    %438 = vector.broadcast %cst_100 : f32 to vector<2x128xf32>
    %439 = arith.addf %438, %437 : vector<2x128xf32>
    %440 = arith.divf %438, %439 : vector<2x128xf32>
    %441 = vector.extract_strided_slice %434 {offsets = [0, 128], sizes = [2, 128], strides = [1, 1]} : vector<2x512xf32> to vector<2x128xf32>
    %442 = arith.negf %441 : vector<2x128xf32>
    %443 = math.exp %442 : vector<2x128xf32>
    %cst_101 = arith.constant 1.000000e+00 : f32
    %444 = vector.broadcast %cst_101 : f32 to vector<2x128xf32>
    %445 = arith.addf %444, %443 : vector<2x128xf32>
    %446 = arith.divf %444, %445 : vector<2x128xf32>
    %447 = vector.extract_strided_slice %434 {offsets = [0, 256], sizes = [2, 128], strides = [1, 1]} : vector<2x512xf32> to vector<2x128xf32>
    %448 = math.tanh %447 : vector<2x128xf32>
    %449 = vector.extract_strided_slice %434 {offsets = [0, 384], sizes = [2, 128], strides = [1, 1]} : vector<2x512xf32> to vector<2x128xf32>
    %450 = arith.negf %449 : vector<2x128xf32>
    %451 = math.exp %450 : vector<2x128xf32>
    %cst_102 = arith.constant 1.000000e+00 : f32
    %452 = vector.broadcast %cst_102 : f32 to vector<2x128xf32>
    %453 = arith.addf %452, %451 : vector<2x128xf32>
    %454 = arith.divf %452, %453 : vector<2x128xf32>
    %455 = arith.mulf %446, %389 : vector<2x128xf32>
    %456 = arith.mulf %440, %448 : vector<2x128xf32>
    %457 = arith.addf %455, %456 : vector<2x128xf32>
    %458 = math.tanh %457 : vector<2x128xf32>
    %459 = arith.mulf %454, %458 : vector<2x128xf32>
    %460 = tpu.concatenate %459, %420 in 1 : vector<2x128xf32>, vector<2x128xf32> -> vector<2x256xf32>
    %cst_103 = arith.constant dense<0.000000e+00> : vector<2x512xf32>
    %461 = tpu.matmul %460, %22, %cst_103 {dimension_numbers = #tpu.dot_dimension_numbers<[1], [0], [0], [1], [0, 0, 1, 1], [], []>} : vector<2x256xf32>, vector<256x512xf32>, vector<2x512xf32> -> vector<2x512xf32>
    %462 = vector.broadcast %23 : vector<1x512xf32> to vector<2x512xf32>
    %463 = arith.addf %461, %462 : vector<2x512xf32>
    %464 = vector.extract_strided_slice %463 {offsets = [0, 0], sizes = [2, 128], strides = [1, 1]} : vector<2x512xf32> to vector<2x128xf32>
    %465 = arith.negf %464 : vector<2x128xf32>
    %466 = math.exp %465 : vector<2x128xf32>
    %cst_104 = arith.constant 1.000000e+00 : f32
    %467 = vector.broadcast %cst_104 : f32 to vector<2x128xf32>
    %468 = arith.addf %467, %466 : vector<2x128xf32>
    %469 = arith.divf %467, %468 : vector<2x128xf32>
    %470 = vector.extract_strided_slice %463 {offsets = [0, 128], sizes = [2, 128], strides = [1, 1]} : vector<2x512xf32> to vector<2x128xf32>
    %471 = arith.negf %470 : vector<2x128xf32>
    %472 = math.exp %471 : vector<2x128xf32>
    %cst_105 = arith.constant 1.000000e+00 : f32
    %473 = vector.broadcast %cst_105 : f32 to vector<2x128xf32>
    %474 = arith.addf %473, %472 : vector<2x128xf32>
    %475 = arith.divf %473, %474 : vector<2x128xf32>
    %476 = vector.extract_strided_slice %463 {offsets = [0, 256], sizes = [2, 128], strides = [1, 1]} : vector<2x512xf32> to vector<2x128xf32>
    %477 = math.tanh %476 : vector<2x128xf32>
    %478 = vector.extract_strided_slice %463 {offsets = [0, 384], sizes = [2, 128], strides = [1, 1]} : vector<2x512xf32> to vector<2x128xf32>
    %479 = arith.negf %478 : vector<2x128xf32>
    %480 = math.exp %479 : vector<2x128xf32>
    %cst_106 = arith.constant 1.000000e+00 : f32
    %481 = vector.broadcast %cst_106 : f32 to vector<2x128xf32>
    %482 = arith.addf %481, %480 : vector<2x128xf32>
    %483 = arith.divf %481, %482 : vector<2x128xf32>
    %484 = arith.mulf %475, %418 : vector<2x128xf32>
    %485 = arith.mulf %469, %477 : vector<2x128xf32>
    %486 = arith.addf %484, %485 : vector<2x128xf32>
    %487 = math.tanh %486 : vector<2x128xf32>
    %488 = arith.mulf %483, %487 : vector<2x128xf32>
    %489 = arith.index_cast %c6_i32 : i32 to index
    %c0_107 = arith.constant 0 : index
    %490 = vector.load %arg12[%489, %c0_107] : memref<8x128xf32, #tpu.memory_space<vmem>>, vector<1x128xf32>
    %491 = vector.broadcast %490 : vector<1x128xf32> to vector<2x128xf32>
    %492 = arith.mulf %488, %491 : vector<2x128xf32>
    %cst_108 = arith.constant dense<0.000000e+00> : vector<2xf32>
    %493 = vector.multi_reduction <add>, %492, %cst_108 [1] : vector<2x128xf32> to vector<2xf32>
    %494 = vector.shape_cast %493 : vector<2xf32> to vector<1x2xf32>
    %495 = arith.index_cast %c6_i32 : i32 to index
    %c0_109 = arith.constant 0 : index
    %496 = vector.load %arg13[%495, %c0_109] : memref<8x1xf32, #tpu.memory_space<vmem>>, vector<1x1xf32>
    %497 = vector.broadcast %496 : vector<1x1xf32> to vector<1x2xf32>
    %498 = arith.addf %494, %497 : vector<1x2xf32>
    %499 = arith.index_cast %c6_i32 : i32 to index
    %c0_110 = arith.constant 0 : index
    %500 = vector.load %arg14[%499, %c0_110] : memref<8x2xf32, #tpu.memory_space<vmem>>, vector<1x2xf32>
    tpu.vector_store %arg14[%499, %c0_110], %498 {strides = array<i32>} : memref<8x2xf32, #tpu.memory_space<vmem>>, vector<1x2xf32>,
    %c7_i32 = arith.constant 7 : i32
    %cst_111 = arith.constant dense<0.000000e+00> : vector<2x512xf32>
    %501 = tpu.matmul %459, %21, %cst_111 {dimension_numbers = #tpu.dot_dimension_numbers<[1], [0], [0], [1], [0, 0, 1, 1], [], []>} : vector<2x128xf32>, vector<128x512xf32>, vector<2x512xf32> -> vector<2x512xf32>
    %502 = arith.addf %20, %501 : vector<2x512xf32>
    %503 = vector.extract_strided_slice %502 {offsets = [0, 0], sizes = [2, 128], strides = [1, 1]} : vector<2x512xf32> to vector<2x128xf32>
    %504 = arith.negf %503 : vector<2x128xf32>
    %505 = math.exp %504 : vector<2x128xf32>
    %cst_112 = arith.constant 1.000000e+00 : f32
    %506 = vector.broadcast %cst_112 : f32 to vector<2x128xf32>
    %507 = arith.addf %506, %505 : vector<2x128xf32>
    %508 = arith.divf %506, %507 : vector<2x128xf32>
    %509 = vector.extract_strided_slice %502 {offsets = [0, 128], sizes = [2, 128], strides = [1, 1]} : vector<2x512xf32> to vector<2x128xf32>
    %510 = arith.negf %509 : vector<2x128xf32>
    %511 = math.exp %510 : vector<2x128xf32>
    %cst_113 = arith.constant 1.000000e+00 : f32
    %512 = vector.broadcast %cst_113 : f32 to vector<2x128xf32>
    %513 = arith.addf %512, %511 : vector<2x128xf32>
    %514 = arith.divf %512, %513 : vector<2x128xf32>
    %515 = vector.extract_strided_slice %502 {offsets = [0, 256], sizes = [2, 128], strides = [1, 1]} : vector<2x512xf32> to vector<2x128xf32>
    %516 = math.tanh %515 : vector<2x128xf32>
    %517 = vector.extract_strided_slice %502 {offsets = [0, 384], sizes = [2, 128], strides = [1, 1]} : vector<2x512xf32> to vector<2x128xf32>
    %518 = arith.negf %517 : vector<2x128xf32>
    %519 = math.exp %518 : vector<2x128xf32>
    %cst_114 = arith.constant 1.000000e+00 : f32
    %520 = vector.broadcast %cst_114 : f32 to vector<2x128xf32>
    %521 = arith.addf %520, %519 : vector<2x128xf32>
    %522 = arith.divf %520, %521 : vector<2x128xf32>
    %523 = arith.mulf %514, %457 : vector<2x128xf32>
    %524 = arith.mulf %508, %516 : vector<2x128xf32>
    %525 = arith.addf %523, %524 : vector<2x128xf32>
    %526 = math.tanh %525 : vector<2x128xf32>
    %527 = arith.mulf %522, %526 : vector<2x128xf32>
    %528 = tpu.concatenate %527, %488 in 1 : vector<2x128xf32>, vector<2x128xf32> -> vector<2x256xf32>
    %cst_115 = arith.constant dense<0.000000e+00> : vector<2x512xf32>
    %529 = tpu.matmul %528, %22, %cst_115 {dimension_numbers = #tpu.dot_dimension_numbers<[1], [0], [0], [1], [0, 0, 1, 1], [], []>} : vector<2x256xf32>, vector<256x512xf32>, vector<2x512xf32> -> vector<2x512xf32>
    %530 = vector.broadcast %23 : vector<1x512xf32> to vector<2x512xf32>
    %531 = arith.addf %529, %530 : vector<2x512xf32>
    %532 = vector.extract_strided_slice %531 {offsets = [0, 0], sizes = [2, 128], strides = [1, 1]} : vector<2x512xf32> to vector<2x128xf32>
    %533 = arith.negf %532 : vector<2x128xf32>
    %534 = math.exp %533 : vector<2x128xf32>
    %cst_116 = arith.constant 1.000000e+00 : f32
    %535 = vector.broadcast %cst_116 : f32 to vector<2x128xf32>
    %536 = arith.addf %535, %534 : vector<2x128xf32>
    %537 = arith.divf %535, %536 : vector<2x128xf32>
    %538 = vector.extract_strided_slice %531 {offsets = [0, 128], sizes = [2, 128], strides = [1, 1]} : vector<2x512xf32> to vector<2x128xf32>
    %539 = arith.negf %538 : vector<2x128xf32>
    %540 = math.exp %539 : vector<2x128xf32>
    %cst_117 = arith.constant 1.000000e+00 : f32
    %541 = vector.broadcast %cst_117 : f32 to vector<2x128xf32>
    %542 = arith.addf %541, %540 : vector<2x128xf32>
    %543 = arith.divf %541, %542 : vector<2x128xf32>
    %544 = vector.extract_strided_slice %531 {offsets = [0, 256], sizes = [2, 128], strides = [1, 1]} : vector<2x512xf32> to vector<2x128xf32>
    %545 = math.tanh %544 : vector<2x128xf32>
    %546 = vector.extract_strided_slice %531 {offsets = [0, 384], sizes = [2, 128], strides = [1, 1]} : vector<2x512xf32> to vector<2x128xf32>
    %547 = arith.negf %546 : vector<2x128xf32>
    %548 = math.exp %547 : vector<2x128xf32>
    %cst_118 = arith.constant 1.000000e+00 : f32
    %549 = vector.broadcast %cst_118 : f32 to vector<2x128xf32>
    %550 = arith.addf %549, %548 : vector<2x128xf32>
    %551 = arith.divf %549, %550 : vector<2x128xf32>
    %552 = arith.mulf %543, %486 : vector<2x128xf32>
    %553 = arith.mulf %537, %545 : vector<2x128xf32>
    %554 = arith.addf %552, %553 : vector<2x128xf32>
    %555 = math.tanh %554 : vector<2x128xf32>
    %556 = arith.mulf %551, %555 : vector<2x128xf32>
    %557 = arith.index_cast %c7_i32 : i32 to index
    %c0_119 = arith.constant 0 : index
    %558 = vector.load %arg12[%557, %c0_119] : memref<8x128xf32, #tpu.memory_space<vmem>>, vector<1x128xf32>
    %559 = vector.broadcast %558 : vector<1x128xf32> to vector<2x128xf32>
    %560 = arith.mulf %556, %559 : vector<2x128xf32>
    %cst_120 = arith.constant dense<0.000000e+00> : vector<2xf32>
    %561 = vector.multi_reduction <add>, %560, %cst_120 [1] : vector<2x128xf32> to vector<2xf32>
    %562 = vector.shape_cast %561 : vector<2xf32> to vector<1x2xf32>
    %563 = arith.index_cast %c7_i32 : i32 to index
    %c0_121 = arith.constant 0 : index
    %564 = vector.load %arg13[%563, %c0_121] : memref<8x1xf32, #tpu.memory_space<vmem>>, vector<1x1xf32>
    %565 = vector.broadcast %564 : vector<1x1xf32> to vector<1x2xf32>
    %566 = arith.addf %562, %565 : vector<1x2xf32>
    %567 = arith.index_cast %c7_i32 : i32 to index
    %c0_122 = arith.constant 0 : index
    %568 = vector.load %arg14[%567, %c0_122] : memref<8x2xf32, #tpu.memory_space<vmem>>, vector<1x2xf32>
    tpu.vector_store %arg14[%567, %c0_122], %566 {strides = array<i32>} : memref<8x2xf32, #tpu.memory_space<vmem>>, vector<1x2xf32>,
    %c8_i32 = arith.constant 8 : i32
    return
  }
}

</mosaic_0001>

<llo_original>
// kernel: wgan_generator_forward.1
$region0: #{wgan_generator_forward.1}
  #allocation0 [shape = 'u32[]', space=smem, size = 0x4, offset = 0x4, fixed_abs, tag = 'smem constant byte address 0x4 - core index']
  #allocation1 [shape = 'u32[144,128]{1,0:T(1,128)}', space=vmem, size = 0x12000, scoped, tag = 'internal scratch']
  %s0 = inlined_call_operand.hbm [shape: f32[2,32], index: 0, kind: input, shape index: {}]
  %s1 = inlined_call_operand.hbm [shape: f32[32,512], index: 1, kind: input, shape index: {}]
  %s2 = inlined_call_operand.vmem [shape: f32[1,512], index: 2, kind: input, shape index: {}]
  %s3 = inlined_call_operand.hbm [shape: f32[512,256], index: 3, kind: input, shape index: {}]
  %s4 = inlined_call_operand.vmem [shape: f32[1,256], index: 4, kind: input, shape index: {}]
  %s5 = inlined_call_operand.hbm [shape: f32[256,128], index: 5, kind: input, shape index: {}]
  %s6 = inlined_call_operand.vmem [shape: f32[1,128], index: 6, kind: input, shape index: {}]
  %s7 = inlined_call_operand.hbm [shape: f32[128,512], index: 7, kind: input, shape index: {}]
  %s8 = inlined_call_operand.hbm [shape: f32[128,512], index: 8, kind: input, shape index: {}]
  %s9 = inlined_call_operand.vmem [shape: f32[1,512], index: 9, kind: input, shape index: {}]
  %s10 = inlined_call_operand.hbm [shape: f32[256,512], index: 10, kind: input, shape index: {}]
  %s11 = inlined_call_operand.vmem [shape: f32[1,512], index: 11, kind: input, shape index: {}]
  %s12 = inlined_call_operand.vmem [shape: f32[8,128], index: 12, kind: input, shape index: {}]
  %s13 = inlined_call_operand.vmem [shape: f32[8,1], index: 13, kind: input, shape index: {}]
  %s14 = inlined_call_operand.vmem [shape: f32[8,2], index: 14, kind: output, shape index: {}]
  %s15 = sld [smem:[#allocation0]]
  $region94: #{wgan_generator_forward.1} parent=0
    _
  %s17 = ssub.s32 1, %s15
  %s18 = scalar_select 0, %s17, %s15
  $region1: #{wgan_generator_forward.1} parent=0
    #allocation2 [shape = 'u8[1024]{0}', space=vmem, size = 0x400, scoped, tag = 'input window, operand 0, single buffered']
    #allocation3 [shape = 's32[1]{0}', space=sflag, size = 0x4, scoped, tag = 'scoped memory for wgan_generator_forward.1']
    #allocation4 [shape = 'u8[65536]{0}', space=vmem, size = 0x10000, scoped, tag = 'input window, operand 1, single buffered']
    #allocation5 [shape = 's32[1]{0}', space=sflag, size = 0x4, scoped, tag = 'scoped memory for wgan_generator_forward.1']
    #allocation6 [shape = 'u8[524288]{0}', space=vmem, size = 0x80000, scoped, tag = 'input window, operand 3, single buffered']
    #allocation7 [shape = 'u8[131072]{0}', space=vmem, size = 0x20000, scoped, tag = 'input window, operand 5, single buffered']
    #allocation8 [shape = 's32[1]{0}', space=sflag, size = 0x4, scoped, tag = 'scoped memory for wgan_generator_forward.1']
    #allocation9 [shape = 'u8[262144]{0}', space=vmem, size = 0x40000, scoped, tag = 'input window, operand 7, single buffered']
    #allocation10 [shape = 'u8[262144]{0}', space=vmem, size = 0x40000, scoped, tag = 'input window, operand 8, single buffered']
    #allocation11 [shape = 's32[1]{0}', space=sflag, size = 0x4, scoped, tag = 'scoped memory for wgan_generator_forward.1']
    #allocation12 [shape = 'u8[524288]{0}', space=vmem, size = 0x80000, scoped, tag = 'input window, operand 10, single buffered']
    %19 = vsyncpa [#allocation3], 0
    %20 = vsyncpa [#allocation5], 0
    %21 = vsyncpa [#allocation8], 0
    %22 = vsyncpa [#allocation11], 0
    // Predicated region
    $region2: #{wgan_generator_forward.1} parent=1 // pred_check
      _
    $region3: #{wgan_generator_forward.1} parent=1 // pred_check_branch
      %24 = sbr.rel (0) target = $region5
    $region4: #{wgan_generator_forward.1} parent=1 // pred_region
      %s26 = ssub.s32 32, 32
      %27 = vsyncadd [#allocation3], %s26
      %s29 = sshll.u32 [#allocation2], 4
      %s30 = int_to_ptr.vmem [resolvable:$true] %s29
      %32 = dma.hbm_to_vmem [thread:$0]  %s0, 32, %s30, [#allocation3]
    $region5: #{wgan_generator_forward.1} parent=1 // pred_fallthru
      _
    // Predicated region
    $region6: #{wgan_generator_forward.1} parent=1 // pred_check
      _
    $region7: #{wgan_generator_forward.1} parent=1 // pred_check_branch
      %34 = sbr.rel (0) target = $region9
    $region8: #{wgan_generator_forward.1} parent=1 // pred_region
      %s36 = ssub.s32 2048, 2048
      %37 = vsyncadd [#allocation5], %s36
      %s38 = sshll.u32 [#allocation4], 4
      %s39 = int_to_ptr.vmem [resolvable:$true] %s38
      %44 = dma.hbm_to_vmem [thread:$0]  %s1, 2048, %s39, [#allocation5], 512, 512, 32
    $region9: #{wgan_generator_forward.1} parent=1 // pred_fallthru
      _
    // Predicated region
    $region10: #{wgan_generator_forward.1} parent=1 // pred_check
      _
    $region11: #{wgan_generator_forward.1} parent=1 // pred_check_branch
      %46 = sbr.rel (0) target = $region13
    $region12: #{wgan_generator_forward.1} parent=1 // pred_region
      _
    $region13: #{wgan_generator_forward.1} parent=1 // pred_fallthru
      _
    // Predicated region
    $region14: #{wgan_generator_forward.1} parent=1 // pred_check
      _
    $region15: #{wgan_generator_forward.1} parent=1 // pred_check_branch
      %48 = sbr.rel (0) target = $region17
    $region16: #{wgan_generator_forward.1} parent=1 // pred_region
      %s50 = ssub.s32 16384, 16384
      %51 = vsyncadd [#allocation5], %s50
      %s52 = sshll.u32 [#allocation6], 4
      %s53 = int_to_ptr.vmem [resolvable:$true] %s52
      %58 = dma.hbm_to_vmem [thread:$0]  %s3, 16384, %s53, [#allocation5], 256, 256, 16
    $region17: #{wgan_generator_forward.1} parent=1 // pred_fallthru
      _
    // Predicated region
    $region18: #{wgan_generator_forward.1} parent=1 // pred_check
      _
    $region19: #{wgan_generator_forward.1} parent=1 // pred_check_branch
      %60 = sbr.rel (0) target = $region21
    $region20: #{wgan_generator_forward.1} parent=1 // pred_region
      _
    $region21: #{wgan_generator_forward.1} parent=1 // pred_fallthru
      _
    // Predicated region
    $region22: #{wgan_generator_forward.1} parent=1 // pred_check
      _
    $region23: #{wgan_generator_forward.1} parent=1 // pred_check_branch
      %62 = sbr.rel (0) target = $region25
    $region24: #{wgan_generator_forward.1} parent=1 // pred_region
      %s64 = ssub.s32 4096, 4096
      %65 = vsyncadd [#allocation8], %s64
      %s66 = sshll.u32 [#allocation7], 4
      %s67 = int_to_ptr.vmem [resolvable:$true] %s66
      %72 = dma.hbm_to_vmem [thread:$0]  %s5, 4096, %s67, [#allocation8], 128, 128, 8
    $region25: #{wgan_generator_forward.1} parent=1 // pred_fallthru
      _
    // Predicated region
    $region26: #{wgan_generator_forward.1} parent=1 // pred_check
      _
    $region27: #{wgan_generator_forward.1} parent=1 // pred_check_branch
      %74 = sbr.rel (0) target = $region29
    $region28: #{wgan_generator_forward.1} parent=1 // pred_region
      _
    $region29: #{wgan_generator_forward.1} parent=1 // pred_fallthru
      _
    // Predicated region
    $region30: #{wgan_generator_forward.1} parent=1 // pred_check
      _
    $region31: #{wgan_generator_forward.1} parent=1 // pred_check_branch
      %76 = sbr.rel (0) target = $region33
    $region32: #{wgan_generator_forward.1} parent=1 // pred_region
      %s78 = ssub.s32 8192, 8192
      %79 = vsyncadd [#allocation8], %s78
      %s80 = sshll.u32 [#allocation9], 4
      %s81 = int_to_ptr.vmem [resolvable:$true] %s80
      %86 = dma.hbm_to_vmem [thread:$0]  %s7, 8192, %s81, [#allocation8], 512, 512, 32
    $region33: #{wgan_generator_forward.1} parent=1 // pred_fallthru
      _
    // Predicated region
    $region34: #{wgan_generator_forward.1} parent=1 // pred_check
      _
    $region35: #{wgan_generator_forward.1} parent=1 // pred_check_branch
      %88 = sbr.rel (0) target = $region37
    $region36: #{wgan_generator_forward.1} parent=1 // pred_region
      %s90 = ssub.s32 8192, 8192
      %91 = vsyncadd [#allocation11], %s90
      %s92 = sshll.u32 [#allocation10], 4
      %s93 = int_to_ptr.vmem [resolvable:$true] %s92
      %98 = dma.hbm_to_vmem [thread:$0]  %s8, 8192, %s93, [#allocation11], 512, 512, 32
    $region37: #{wgan_generator_forward.1} parent=1 // pred_fallthru
      _
    // Predicated region
    $region38: #{wgan_generator_forward.1} parent=1 // pred_check
      _
    $region39: #{wgan_generator_forward.1} parent=1 // pred_check_branch
      %100 = sbr.rel (0) target = $region41
    $region40: #{wgan_generator_forward.1} parent=1 // pred_region
      _
    $region41: #{wgan_generator_forward.1} parent=1 // pred_fallthru
      _
    // Predicated region
    $region42: #{wgan_generator_forward.1} parent=1 // pred_check
      _
    $region43: #{wgan_generator_forward.1} parent=1 // pred_check_branch
      %102 = sbr.rel (0) target = $region45
    $region44: #{wgan_generator_forward.1} parent=1 // pred_region
      %s104 = ssub.s32 16384, 16384
      %105 = vsyncadd [#allocation11], %s104
      %s106 = sshll.u32 [#allocation12], 4
      %s107 = int_to_ptr.vmem [resolvable:$true] %s106
      %112 = dma.hbm_to_vmem [thread:$0]  %s10, 16384, %s107, [#allocation11], 512, 512, 32
    $region45: #{wgan_generator_forward.1} parent=1 // pred_fallthru
      _
    // Predicated region
    $region46: #{wgan_generator_forward.1} parent=1 // pred_check
      _
    $region47: #{wgan_generator_forward.1} parent=1 // pred_check_branch
      %114 = sbr.rel (0) target = $region49
    $region48: #{wgan_generator_forward.1} parent=1 // pred_region
      _
    $region49: #{wgan_generator_forward.1} parent=1 // pred_fallthru
      _
    // Predicated region
    $region50: #{wgan_generator_forward.1} parent=1 // pred_check
      _
    $region51: #{wgan_generator_forward.1} parent=1 // pred_check_branch
      %116 = sbr.rel (0) target = $region53
    $region52: #{wgan_generator_forward.1} parent=1 // pred_region
      _
    $region53: #{wgan_generator_forward.1} parent=1 // pred_fallthru
      _
    // Predicated region
    $region54: #{wgan_generator_forward.1} parent=1 // pred_check
      _
    $region55: #{wgan_generator_forward.1} parent=1 // pred_check_branch
      %118 = sbr.rel (0) target = $region57
    $region56: #{wgan_generator_forward.1} parent=1 // pred_region
      _
    $region57: #{wgan_generator_forward.1} parent=1 // pred_fallthru
      _
    // Predicated region
    $region58: #{wgan_generator_forward.1} parent=1 // pred_check
      _
    $region59: #{wgan_generator_forward.1} parent=1 // pred_check_branch
      %120 = sbr.rel (0) target = $region61
    $region60: #{wgan_generator_forward.1} parent=1 // pred_region
      %121 = dma.done [#allocation3], 32
    $region61: #{wgan_generator_forward.1} parent=1 // pred_fallthru
      _
    // Predicated region
    $region62: #{wgan_generator_forward.1} parent=1 // pred_check
      _
    $region63: #{wgan_generator_forward.1} parent=1 // pred_check_branch
      %123 = sbr.rel (0) target = $region65
    $region64: #{wgan_generator_forward.1} parent=1 // pred_region
      %124 = dma.done [#allocation5], 2048
    $region65: #{wgan_generator_forward.1} parent=1 // pred_fallthru
      _
    // Predicated region
    $region66: #{wgan_generator_forward.1} parent=1 // pred_check
      _
    $region67: #{wgan_generator_forward.1} parent=1 // pred_check_branch
      %126 = sbr.rel (0) target = $region69
    $region68: #{wgan_generator_forward.1} parent=1 // pred_region
      %127 = dma.done [#allocation5], 16384
    $region69: #{wgan_generator_forward.1} parent=1 // pred_fallthru
      _
    // Predicated region
    $region70: #{wgan_generator_forward.1} parent=1 // pred_check
      _
    $region71: #{wgan_generator_forward.1} parent=1 // pred_check_branch
      %129 = sbr.rel (0) target = $region73
    $region72: #{wgan_generator_forward.1} parent=1 // pred_region
      %130 = dma.done [#allocation8], 4096
    $region73: #{wgan_generator_forward.1} parent=1 // pred_fallthru
      _
    // Predicated region
    $region74: #{wgan_generator_forward.1} parent=1 // pred_check
      _
    $region75: #{wgan_generator_forward.1} parent=1 // pred_check_branch
      %132 = sbr.rel (0) target = $region77
    $region76: #{wgan_generator_forward.1} parent=1 // pred_region
      %133 = dma.done [#allocation8], 8192
    $region77: #{wgan_generator_forward.1} parent=1 // pred_fallthru
      _
    // Predicated region
    $region78: #{wgan_generator_forward.1} parent=1 // pred_check
      _
    $region79: #{wgan_generator_forward.1} parent=1 // pred_check_branch
      %135 = sbr.rel (0) target = $region81
    $region80: #{wgan_generator_forward.1} parent=1 // pred_region
      %136 = dma.done [#allocation11], 8192
    $region81: #{wgan_generator_forward.1} parent=1 // pred_fallthru
      _
    // Predicated region
    $region82: #{wgan_generator_forward.1} parent=1 // pred_check
      _
    $region83: #{wgan_generator_forward.1} parent=1 // pred_check_branch
      %138 = sbr.rel (0) target = $region85
    $region84: #{wgan_generator_forward.1} parent=1 // pred_region
      %139 = dma.done [#allocation11], 16384
    $region85: #{wgan_generator_forward.1} parent=1 // pred_fallthru
      _
    %v140 = vld [vmem:[#allocation2] sm:$0x3]
    %v141 = vld [vmem:[#allocation4] sm:$0xff]
    %v142 = vld [vmem:[#allocation4 + $0x8] sm:$0xff]
    %v143 = vld [vmem:[#allocation4 + $0x10] sm:$0xff]
    %v144 = vld [vmem:[#allocation4 + $0x18] sm:$0xff]
    %v145 = vld [vmem:[#allocation4 + $0x20] sm:$0xff]
    %v146 = vld [vmem:[#allocation4 + $0x28] sm:$0xff]
    %v147 = vld [vmem:[#allocation4 + $0x30] sm:$0xff]
    %v148 = vld [vmem:[#allocation4 + $0x38] sm:$0xff]
    %v149 = vld [vmem:[#allocation4 + $0x40] sm:$0xff]
    %v150 = vld [vmem:[#allocation4 + $0x48] sm:$0xff]
    %v151 = vld [vmem:[#allocation4 + $0x50] sm:$0xff]
    %v152 = vld [vmem:[#allocation4 + $0x58] sm:$0xff]
    %v153 = vld [vmem:[#allocation4 + $0x60] sm:$0xff]
    %v154 = vld [vmem:[#allocation4 + $0x68] sm:$0xff]
    %v155 = vld [vmem:[#allocation4 + $0x70] sm:$0xff]
    %v156 = vld [vmem:[#allocation4 + $0x78] sm:$0xff]
    %v157 = vld [vmem:[%s2] sm:$0xf]
    %v159 = vlaneseq
    %v160 = vshrl.u32 %v159, 7
    %v161 = vsub.s32 0, %v160
    %v162 = vrot.slane %v157, %v161
    %v163 = vlaneseq
    %v164 = vshrl.u32 %v163, 7
    %v165 = vsub.s32 1, %v164
    %v166 = vrot.slane %v157, %v165
    %v167 = vlaneseq
    %v168 = vshrl.u32 %v167, 7
    %v169 = vsub.s32 2, %v168
    %v170 = vrot.slane %v157, %v169
    %v171 = vlaneseq
    %v172 = vshrl.u32 %v171, 7
    %v173 = vsub.s32 3, %v172
    %v174 = vrot.slane %v157, %v173
    %vm179 = vcmask 261120
    %v181 = vsel %vm179, %v140, 0
    %183 = vmatprep.subr.mxu0 %v142
    %184 = vmatpush1.msra.mxu0 %v141
    %185 = vmatprep.subr.mxu0 %v146
    %186 = vmatpush1.msra.mxu0 %v145
    %187 = vmatprep.subr.mxu0 %v150
    %188 = vmatpush1.msra.mxu0 %v149
    %189 = vmatprep.subr.mxu0 %v154
    %190 = vmatpush1.msra.mxu0 %v153
    %191 = vmatprep.subr.mxu0 0.0
    %192 = vmatpush1.msra.mxu0 0.0
    %193 = vmatprep.subr.mxu0 0.0
    %194 = vmatpush1.msra.mxu0 0.0
    %195 = vmatprep.subr.mxu0 0.0
    %196 = vmatpush1.msra.mxu0 0.0
    %197 = vmatprep.subr.mxu0 0.0
    %198 = vmatpush1.msra.mxu0 0.0
    %199 = vmatprep.subr.mxu0 0.0
    %200 = vmatpush1.msra.mxu0 0.0
    %201 = vmatprep.subr.mxu0 0.0
    %202 = vmatpush1.msra.mxu0 0.0
    %203 = vmatprep.subr.mxu0 0.0
    %204 = vmatpush1.msra.mxu0 0.0
    %205 = vmatprep.subr.mxu0 0.0
    %206 = vmatpush1.msra.mxu0 0.0
    %207 = vmatprep.subr.mxu0 0.0
    %208 = vmatpush1.msra.mxu0 0.0
    %209 = vmatprep.subr.mxu0 0.0
    %210 = vmatpush1.msra.mxu0 0.0
    %211 = vmatprep.subr.mxu0 0.0
    %212 = vmatpush1.msra.mxu0 0.0
    %213 = vmatprep.subr.mxu0 0.0
    %214 = vmatpush1.msra.mxu0 0.0
    %215 = vmatprep.subr.mxu0 0.0
    %216 = vmatpush1.msra.mxu0 0.0
    %217 = vmatprep.subr.mxu0 0.0
    %218 = vmatpush1.msra.mxu0 0.0
    %219 = vmatprep.subr.mxu0 0.0
    %220 = vmatpush1.msra.mxu0 0.0
    %221 = vmatprep.subr.mxu0 0.0
    %222 = vmatpush1.msra.mxu0 0.0
    %223 = vmatprep.subr.mxu0 0.0
    %224 = vmatpush1.msra.mxu0 0.0
    %225 = vmatprep.subr.mxu0 0.0
    %226 = vmatpush1.msra.mxu0 0.0
    %227 = vmatprep.subr.mxu0 0.0
    %228 = vmatpush1.msra.mxu0 0.0
    %229 = vmatprep.subr.mxu0 0.0
    %230 = vmatpush1.msra.mxu0 0.0
    %231 = vmatprep.subr.mxu0 0.0
    %232 = vmatpush1.msra.mxu0 0.0
    %233 = vmatprep.subr.mxu0 0.0
    %234 = vmatpush1.msra.mxu0 0.0
    %235 = vmatprep.subr.mxu0 0.0
    %236 = vmatpush1.msra.mxu0 0.0
    %237 = vmatprep.subr.mxu0 0.0
    %238 = vmatpush1.msra.mxu0 0.0
    %239 = vmatprep.subr.mxu0 0.0
    %240 = vmatpush1.msra.mxu0 0.0
    %241 = vmatprep.subr.mxu0 0.0
    %242 = vmatpush1.msra.mxu0 0.0
    %243 = vmatprep.subr.mxu0 0.0
    %244 = vmatpush1.msra.mxu0 0.0
    %245 = vmatprep.subr.mxu0 0.0
    %246 = vmatpush1.msra.mxu0 0.0
    %247 = vmatprep.mubr.f32.mxu0 0.0
    %248 = vmatmul.mubr.f32.gmra.mrb[0].mxu0 %v181
    %v249 = vpop.f32.mrb[0].mxu0
    %v250 = vadd.f32 %v162, %v249
    %v251 = vpop.f32.mrb[0].mxu0
    %v252 = vadd.f32 %v166, %v251
    %253 = vdwg.mxu0
    %254 = vmatprep.subr.mxu0 %v144
    %255 = vmatpush1.msra.mxu0 %v143
    %256 = vmatprep.subr.mxu0 %v148
    %257 = vmatpush1.msra.mxu0 %v147
    %258 = vmatprep.subr.mxu0 %v152
    %259 = vmatpush1.msra.mxu0 %v151
    %260 = vmatprep.subr.mxu0 %v156
    %261 = vmatpush1.msra.mxu0 %v155
    %262 = vmatprep.subr.mxu0 0.0
    %263 = vmatpush1.msra.mxu0 0.0
    %264 = vmatprep.subr.mxu0 0.0
    %265 = vmatpush1.msra.mxu0 0.0
    %266 = vmatprep.subr.mxu0 0.0
    %267 = vmatpush1.msra.mxu0 0.0
    %268 = vmatprep.subr.mxu0 0.0
    %269 = vmatpush1.msra.mxu0 0.0
    %270 = vmatprep.subr.mxu0 0.0
    %271 = vmatpush1.msra.mxu0 0.0
    %272 = vmatprep.subr.mxu0 0.0
    %273 = vmatpush1.msra.mxu0 0.0
    %274 = vmatprep.subr.mxu0 0.0
    %275 = vmatpush1.msra.mxu0 0.0
    %276 = vmatprep.subr.mxu0 0.0
    %277 = vmatpush1.msra.mxu0 0.0
    %278 = vmatprep.subr.mxu0 0.0
    %279 = vmatpush1.msra.mxu0 0.0
    %280 = vmatprep.subr.mxu0 0.0
    %281 = vmatpush1.msra.mxu0 0.0
    %282 = vmatprep.subr.mxu0 0.0
    %283 = vmatpush1.msra.mxu0 0.0
    %284 = vmatprep.subr.mxu0 0.0
    %285 = vmatpush1.msra.mxu0 0.0
    %286 = vmatprep.subr.mxu0 0.0
    %287 = vmatpush1.msra.mxu0 0.0
    %288 = vmatprep.subr.mxu0 0.0
    %289 = vmatpush1.msra.mxu0 0.0
    %290 = vmatprep.subr.mxu0 0.0
    %291 = vmatpush1.msra.mxu0 0.0
    %292 = vmatprep.subr.mxu0 0.0
    %293 = vmatpush1.msra.mxu0 0.0
    %294 = vmatprep.subr.mxu0 0.0
    %295 = vmatpush1.msra.mxu0 0.0
    %296 = vmatprep.subr.mxu0 0.0
    %297 = vmatpush1.msra.mxu0 0.0
    %298 = vmatprep.subr.mxu0 0.0
    %299 = vmatpush1.msra.mxu0 0.0
    %300 = vmatprep.subr.mxu0 0.0
    %301 = vmatpush1.msra.mxu0 0.0
    %302 = vmatprep.subr.mxu0 0.0
    %303 = vmatpush1.msra.mxu0 0.0
    %304 = vmatprep.subr.mxu0 0.0
    %305 = vmatpush1.msra.mxu0 0.0
    %306 = vmatprep.subr.mxu0 0.0
    %307 = vmatpush1.msra.mxu0 0.0
    %308 = vmatprep.subr.mxu0 0.0
    %309 = vmatpush1.msra.mxu0 0.0
    %310 = vmatprep.subr.mxu0 0.0
    %311 = vmatpush1.msra.mxu0 0.0
    %312 = vmatprep.subr.mxu0 0.0
    %313 = vmatpush1.msra.mxu0 0.0
    %314 = vmatprep.subr.mxu0 0.0
    %315 = vmatpush1.msra.mxu0 0.0
    %316 = vmatprep.subr.mxu0 0.0
    %317 = vmatpush1.msra.mxu0 0.0
    %318 = vmatprep.mubr.f32.mxu0 0.0
    %319 = vmatmul.mubr.f32.gmra.mrb[0].mxu0 %v181
    %v320 = vpop.f32.mrb[0].mxu0
    %v321 = vadd.f32 %v170, %v320
    %v322 = vpop.f32.mrb[0].mxu0
    %v323 = vadd.f32 %v174, %v322
    %324 = vdwg.mxu0
    %v325 = vld [vmem:[#allocation6] sm:$0xff]
    %v326 = vld [vmem:[#allocation6 + $0x8] sm:$0xff]
    %v327 = vld [vmem:[#allocation6 + $0x10] sm:$0xff]
    %v328 = vld [vmem:[#allocation6 + $0x18] sm:$0xff]
    %v329 = vld [vmem:[#allocation6 + $0x20] sm:$0xff]
    %v330 = vld [vmem:[#allocation6 + $0x28] sm:$0xff]
    %v331 = vld [vmem:[#allocation6 + $0x30] sm:$0xff]
    %v332 = vld [vmem:[#allocation6 + $0x38] sm:$0xff]
    %v333 = vld [vmem:[#allocation6 + $0x40] sm:$0xff]
    %v334 = vld [vmem:[#allocation6 + $0x48] sm:$0xff]
    %v335 = vld [vmem:[#allocation6 + $0x50] sm:$0xff]
    %v336 = vld [vmem:[#allocation6 + $0x58] sm:$0xff]
    %v337 = vld [vmem:[#allocation6 + $0x60] sm:$0xff]
    %v338 = vld [vmem:[#allocation6 + $0x68] sm:$0xff]
    %v339 = vld [vmem:[#allocation6 + $0x70] sm:$0xff]
    %v340 = vld [vmem:[#allocation6 + $0x78] sm:$0xff]
    %v341 = vld [vmem:[#allocation6 + $0x80] sm:$0xff]
    %v342 = vld [vmem:[#allocation6 + $0x88] sm:$0xff]
    %v343 = vld [vmem:[#allocation6 + $0x90] sm:$0xff]
    %v344 = vld [vmem:[#allocation6 + $0x98] sm:$0xff]
    %v345 = vld [vmem:[#allocation6 + $0xa0] sm:$0xff]
    %v346 = vld [vmem:[#allocation6 + $0xa8] sm:$0xff]
    %v347 = vld [vmem:[#allocation6 + $0xb0] sm:$0xff]
    %v348 = vld [vmem:[#allocation6 + $0xb8] sm:$0xff]
    %v349 = vld [vmem:[#allocation6 + $0xc0] sm:$0xff]
    %v350 = vld [vmem:[#allocation6 + $0xc8] sm:$0xff]
    %v351 = vld [vmem:[#allocation6 + $0xd0] sm:$0xff]
    %v352 = vld [vmem:[#allocation6 + $0xd8] sm:$0xff]
    %v353 = vld [vmem:[#allocation6 + $0xe0] sm:$0xff]
    %v354 = vld [vmem:[#allocation6 + $0xe8] sm:$0xff]
    %v355 = vld [vmem:[#allocation6 + $0xf0] sm:$0xff]
    %v356 = vld [vmem:[#allocation6 + $0xf8] sm:$0xff]
    %v357 = vld [vmem:[#allocation6 + $0x100] sm:$0xff]
    %v358 = vld [vmem:[#allocation6 + $0x108] sm:$0xff]
    %v359 = vld [vmem:[#allocation6 + $0x110] sm:$0xff]
    %v360 = vld [vmem:[#allocation6 + $0x118] sm:$0xff]
    %v361 = vld [vmem:[#allocation6 + $0x120] sm:$0xff]
    %v362 = vld [vmem:[#allocation6 + $0x128] sm:$0xff]
    %v363 = vld [vmem:[#allocation6 + $0x130] sm:$0xff]
    %v364 = vld [vmem:[#allocation6 + $0x138] sm:$0xff]
    %v365 = vld [vmem:[#allocation6 + $0x140] sm:$0xff]
    %v366 = vld [vmem:[#allocation6 + $0x148] sm:$0xff]
    %v367 = vld [vmem:[#allocation6 + $0x150] sm:$0xff]
    %v368 = vld [vmem:[#allocation6 + $0x158] sm:$0xff]
    %v369 = vld [vmem:[#allocation6 + $0x160] sm:$0xff]
    %v370 = vld [vmem:[#allocation6 + $0x168] sm:$0xff]
    %v371 = vld [vmem:[#allocation6 + $0x170] sm:$0xff]
    %v372 = vld [vmem:[#allocation6 + $0x178] sm:$0xff]
    %v373 = vld [vmem:[#allocation6 + $0x180] sm:$0xff]
    %v374 = vld [vmem:[#allocation6 + $0x188] sm:$0xff]
    %v375 = vld [vmem:[#allocation6 + $0x190] sm:$0xff]
    %v376 = vld [vmem:[#allocation6 + $0x198] sm:$0xff]
    %v377 = vld [vmem:[#allocation6 + $0x1a0] sm:$0xff]
    %v378 = vld [vmem:[#allocation6 + $0x1a8] sm:$0xff]
    %v379 = vld [vmem:[#allocation6 + $0x1b0] sm:$0xff]
    %v380 = vld [vmem:[#allocation6 + $0x1b8] sm:$0xff]
    %v381 = vld [vmem:[#allocation6 + $0x1c0] sm:$0xff]
    %v382 = vld [vmem:[#allocation6 + $0x1c8] sm:$0xff]
    %v383 = vld [vmem:[#allocation6 + $0x1d0] sm:$0xff]
    %v384 = vld [vmem:[#allocation6 + $0x1d8] sm:$0xff]
    %v385 = vld [vmem:[#allocation6 + $0x1e0] sm:$0xff]
    %v386 = vld [vmem:[#allocation6 + $0x1e8] sm:$0xff]
    %v387 = vld [vmem:[#allocation6 + $0x1f0] sm:$0xff]
    %v388 = vld [vmem:[#allocation6 + $0x1f8] sm:$0xff]
    %v389 = vld [vmem:[#allocation6 + $0x200] sm:$0xff]
    %v390 = vld [vmem:[#allocation6 + $0x208] sm:$0xff]
    %v391 = vld [vmem:[#allocation6 + $0x210] sm:$0xff]
    %v392 = vld [vmem:[#allocation6 + $0x218] sm:$0xff]
    %v393 = vld [vmem:[#allocation6 + $0x220] sm:$0xff]
    %v394 = vld [vmem:[#allocation6 + $0x228] sm:$0xff]
    %v395 = vld [vmem:[#allocation6 + $0x230] sm:$0xff]
    %v396 = vld [vmem:[#allocation6 + $0x238] sm:$0xff]
    %v397 = vld [vmem:[#allocation6 + $0x240] sm:$0xff]
    %v398 = vld [vmem:[#allocation6 + $0x248] sm:$0xff]
    %v399 = vld [vmem:[#allocation6 + $0x250] sm:$0xff]
    %v400 = vld [vmem:[#allocation6 + $0x258] sm:$0xff]
    %v401 = vld [vmem:[#allocation6 + $0x260] sm:$0xff]
    %v402 = vld [vmem:[#allocation6 + $0x268] sm:$0xff]
    %v403 = vld [vmem:[#allocation6 + $0x270] sm:$0xff]
    %v404 = vld [vmem:[#allocation6 + $0x278] sm:$0xff]
    %v405 = vld [vmem:[#allocation6 + $0x280] sm:$0xff]
    %v406 = vld [vmem:[#allocation6 + $0x288] sm:$0xff]
    %v407 = vld [vmem:[#allocation6 + $0x290] sm:$0xff]
    %v408 = vld [vmem:[#allocation6 + $0x298] sm:$0xff]
    %v409 = vld [vmem:[#allocation6 + $0x2a0] sm:$0xff]
    %v410 = vld [vmem:[#allocation6 + $0x2a8] sm:$0xff]
    %v411 = vld [vmem:[#allocation6 + $0x2b0] sm:$0xff]
    %v412 = vld [vmem:[#allocation6 + $0x2b8] sm:$0xff]
    %v413 = vld [vmem:[#allocation6 + $0x2c0] sm:$0xff]
    %v414 = vld [vmem:[#allocation6 + $0x2c8] sm:$0xff]
    %v415 = vld [vmem:[#allocation6 + $0x2d0] sm:$0xff]
    %v416 = vld [vmem:[#allocation6 + $0x2d8] sm:$0xff]
    %v417 = vld [vmem:[#allocation6 + $0x2e0] sm:$0xff]
    %v418 = vld [vmem:[#allocation6 + $0x2e8] sm:$0xff]
    %v419 = vld [vmem:[#allocation6 + $0x2f0] sm:$0xff]
    %v420 = vld [vmem:[#allocation6 + $0x2f8] sm:$0xff]
    %v421 = vld [vmem:[#allocation6 + $0x300] sm:$0xff]
    %v422 = vld [vmem:[#allocation6 + $0x308] sm:$0xff]
    %v423 = vld [vmem:[#allocation6 + $0x310] sm:$0xff]
    %v424 = vld [vmem:[#allocation6 + $0x318] sm:$0xff]
    %v425 = vld [vmem:[#allocation6 + $0x320] sm:$0xff]
    %v426 = vld [vmem:[#allocation6 + $0x328] sm:$0xff]
    %v427 = vld [vmem:[#allocation6 + $0x330] sm:$0xff]
    %v428 = vld [vmem:[#allocation6 + $0x338] sm:$0xff]
    %v429 = vld [vmem:[#allocation6 + $0x340] sm:$0xff]
    %v430 = vld [vmem:[#allocation6 + $0x348] sm:$0xff]
    %v431 = vld [vmem:[#allocation6 + $0x350] sm:$0xff]
    %v432 = vld [vmem:[#allocation6 + $0x358] sm:$0xff]
    %v433 = vld [vmem:[#allocation6 + $0x360] sm:$0xff]
    %v434 = vld [vmem:[#allocation6 + $0x368] sm:$0xff]
    %v435 = vld [vmem:[#allocation6 + $0x370] sm:$0xff]
    %v436 = vld [vmem:[#allocation6 + $0x378] sm:$0xff]
    %v437 = vld [vmem:[#allocation6 + $0x380] sm:$0xff]
    %v438 = vld [vmem:[#allocation6 + $0x388] sm:$0xff]
    %v439 = vld [vmem:[#allocation6 + $0x390] sm:$0xff]
    %v440 = vld [vmem:[#allocation6 + $0x398] sm:$0xff]
    %v441 = vld [vmem:[#allocation6 + $0x3a0] sm:$0xff]
    %v442 = vld [vmem:[#allocation6 + $0x3a8] sm:$0xff]
    %v443 = vld [vmem:[#allocation6 + $0x3b0] sm:$0xff]
    %v444 = vld [vmem:[#allocation6 + $0x3b8] sm:$0xff]
    %v445 = vld [vmem:[#allocation6 + $0x3c0] sm:$0xff]
    %v446 = vld [vmem:[#allocation6 + $0x3c8] sm:$0xff]
    %v447 = vld [vmem:[#allocation6 + $0x3d0] sm:$0xff]
    %v448 = vld [vmem:[#allocation6 + $0x3d8] sm:$0xff]
    %v449 = vld [vmem:[#allocation6 + $0x3e0] sm:$0xff]
    %v450 = vld [vmem:[#allocation6 + $0x3e8] sm:$0xff]
    %v451 = vld [vmem:[#allocation6 + $0x3f0] sm:$0xff]
    %v452 = vld [vmem:[#allocation6 + $0x3f8] sm:$0xff]
    %v453 = vld [vmem:[%s4] sm:$0x3]
    %v455 = vlaneseq
    %v456 = vshrl.u32 %v455, 7
    %v457 = vsub.s32 0, %v456
    %v458 = vrot.slane %v453, %v457
    %v459 = vlaneseq
    %v460 = vshrl.u32 %v459, 7
    %v461 = vsub.s32 1, %v460
    %v462 = vrot.slane %v453, %v461
    %465 = vmatprep.subr.mxu0 %v326
    %466 = vmatpush1.msra.mxu0 %v325
    %467 = vmatprep.subr.mxu0 %v328
    %468 = vmatpush1.msra.mxu0 %v327
    %469 = vmatprep.subr.mxu0 %v330
    %470 = vmatpush1.msra.mxu0 %v329
    %471 = vmatprep.subr.mxu0 %v332
    %472 = vmatpush1.msra.mxu0 %v331
    %473 = vmatprep.subr.mxu0 %v334
    %474 = vmatpush1.msra.mxu0 %v333
    %475 = vmatprep.subr.mxu0 %v336
    %476 = vmatpush1.msra.mxu0 %v335
    %477 = vmatprep.subr.mxu0 %v338
    %478 = vmatpush1.msra.mxu0 %v337
    %479 = vmatprep.subr.mxu0 %v340
    %480 = vmatpush1.msra.mxu0 %v339
    %481 = vmatprep.subr.mxu0 %v342
    %482 = vmatpush1.msra.mxu0 %v341
    %483 = vmatprep.subr.mxu0 %v344
    %484 = vmatpush1.msra.mxu0 %v343
    %485 = vmatprep.subr.mxu0 %v346
    %486 = vmatpush1.msra.mxu0 %v345
    %487 = vmatprep.subr.mxu0 %v348
    %488 = vmatpush1.msra.mxu0 %v347
    %489 = vmatprep.subr.mxu0 %v350
    %490 = vmatpush1.msra.mxu0 %v349
    %491 = vmatprep.subr.mxu0 %v352
    %492 = vmatpush1.msra.mxu0 %v351
    %493 = vmatprep.subr.mxu0 %v354
    %494 = vmatpush1.msra.mxu0 %v353
    %495 = vmatprep.subr.mxu0 %v356
    %496 = vmatpush1.msra.mxu0 %v355
    %497 = vmatprep.subr.mxu0 %v358
    %498 = vmatpush1.msra.mxu0 %v357
    %499 = vmatprep.subr.mxu0 %v360
    %500 = vmatpush1.msra.mxu0 %v359
    %501 = vmatprep.subr.mxu0 %v362
    %502 = vmatpush1.msra.mxu0 %v361
    %503 = vmatprep.subr.mxu0 %v364
    %504 = vmatpush1.msra.mxu0 %v363
    %505 = vmatprep.subr.mxu0 %v366
    %506 = vmatpush1.msra.mxu0 %v365
    %507 = vmatprep.subr.mxu0 %v368
    %508 = vmatpush1.msra.mxu0 %v367
    %509 = vmatprep.subr.mxu0 %v370
    %510 = vmatpush1.msra.mxu0 %v369
    %511 = vmatprep.subr.mxu0 %v372
    %512 = vmatpush1.msra.mxu0 %v371
    %513 = vmatprep.subr.mxu0 %v374
    %514 = vmatpush1.msra.mxu0 %v373
    %515 = vmatprep.subr.mxu0 %v376
    %516 = vmatpush1.msra.mxu0 %v375
    %517 = vmatprep.subr.mxu0 %v378
    %518 = vmatpush1.msra.mxu0 %v377
    %519 = vmatprep.subr.mxu0 %v380
    %520 = vmatpush1.msra.mxu0 %v379
    %521 = vmatprep.subr.mxu0 %v382
    %522 = vmatpush1.msra.mxu0 %v381
    %523 = vmatprep.subr.mxu0 %v384
    %524 = vmatpush1.msra.mxu0 %v383
    %525 = vmatprep.subr.mxu0 %v386
    %526 = vmatpush1.msra.mxu0 %v385
    %527 = vmatprep.subr.mxu0 %v388
    %528 = vmatpush1.msra.mxu0 %v387
    %529 = vmatprep.mubr.f32.mxu0 %v252
    %530 = vmatmul.mubr.f32.gmra.mrb[0].mxu0 %v250
    %v531 = vpop.f32.mrb[0].mxu0
    %v532 = vadd.f32 %v458, %v531
    %v533 = vpop.f32.mrb[0].mxu0
    %v534 = vadd.f32 %v462, %v533
    %535 = vdwg.mxu0
    %536 = vmatprep.subr.mxu0 %v390
    %537 = vmatpush1.msra.mxu0 %v389
    %538 = vmatprep.subr.mxu0 %v392
    %539 = vmatpush1.msra.mxu0 %v391
    %540 = vmatprep.subr.mxu0 %v394
    %541 = vmatpush1.msra.mxu0 %v393
    %542 = vmatprep.subr.mxu0 %v396
    %543 = vmatpush1.msra.mxu0 %v395
    %544 = vmatprep.subr.mxu0 %v398
    %545 = vmatpush1.msra.mxu0 %v397
    %546 = vmatprep.subr.mxu0 %v400
    %547 = vmatpush1.msra.mxu0 %v399
    %548 = vmatprep.subr.mxu0 %v402
    %549 = vmatpush1.msra.mxu0 %v401
    %550 = vmatprep.subr.mxu0 %v404
    %551 = vmatpush1.msra.mxu0 %v403
    %552 = vmatprep.subr.mxu0 %v406
    %553 = vmatpush1.msra.mxu0 %v405
    %554 = vmatprep.subr.mxu0 %v408
    %555 = vmatpush1.msra.mxu0 %v407
    %556 = vmatprep.subr.mxu0 %v410
    %557 = vmatpush1.msra.mxu0 %v409
    %558 = vmatprep.subr.mxu0 %v412
    %559 = vmatpush1.msra.mxu0 %v411
    %560 = vmatprep.subr.mxu0 %v414
    %561 = vmatpush1.msra.mxu0 %v413
    %562 = vmatprep.subr.mxu0 %v416
    %563 = vmatpush1.msra.mxu0 %v415
    %564 = vmatprep.subr.mxu0 %v418
    %565 = vmatpush1.msra.mxu0 %v417
    %566 = vmatprep.subr.mxu0 %v420
    %567 = vmatpush1.msra.mxu0 %v419
    %568 = vmatprep.subr.mxu0 %v422
    %569 = vmatpush1.msra.mxu0 %v421
    %570 = vmatprep.subr.mxu0 %v424
    %571 = vmatpush1.msra.mxu0 %v423
    %572 = vmatprep.subr.mxu0 %v426
    %573 = vmatpush1.msra.mxu0 %v425
    %574 = vmatprep.subr.mxu0 %v428
    %575 = vmatpush1.msra.mxu0 %v427
    %576 = vmatprep.subr.mxu0 %v430
    %577 = vmatpush1.msra.mxu0 %v429
    %578 = vmatprep.subr.mxu0 %v432
    %579 = vmatpush1.msra.mxu0 %v431
    %580 = vmatprep.subr.mxu0 %v434
    %581 = vmatpush1.msra.mxu0 %v433
    %582 = vmatprep.subr.mxu0 %v436
    %583 = vmatpush1.msra.mxu0 %v435
    %584 = vmatprep.subr.mxu0 %v438
    %585 = vmatpush1.msra.mxu0 %v437
    %586 = vmatprep.subr.mxu0 %v440
    %587 = vmatpush1.msra.mxu0 %v439
    %588 = vmatprep.subr.mxu0 %v442
    %589 = vmatpush1.msra.mxu0 %v441
    %590 = vmatprep.subr.mxu0 %v444
    %591 = vmatpush1.msra.mxu0 %v443
    %592 = vmatprep.subr.mxu0 %v446
    %593 = vmatpush1.msra.mxu0 %v445
    %594 = vmatprep.subr.mxu0 %v448
    %595 = vmatpush1.msra.mxu0 %v447
    %596 = vmatprep.subr.mxu0 %v450
    %597 = vmatpush1.msra.mxu0 %v449
    %598 = vmatprep.subr.mxu0 %v452
    %599 = vmatpush1.msra.mxu0 %v451
    %600 = vmatprep.mubr.f32.mxu0 %v323
    %601 = vmatmul.mubr.f32.gmra.mrb[0].mxu0 %v321
    %v602 = vpop.f32.mrb[0].mxu0
    %v603 = vadd.f32 %v532, %v602
    %v604 = vpop.f32.mrb[0].mxu0
    %v605 = vadd.f32 %v534, %v604
    %606 = vdwg.mxu0
    %v607 = vld [vmem:[#allocation7] sm:$0xff]
    %v608 = vld [vmem:[#allocation7 + $0x8] sm:$0xff]
    %v609 = vld [vmem:[#allocation7 + $0x10] sm:$0xff]
    %v610 = vld [vmem:[#allocation7 + $0x18] sm:$0xff]
    %v611 = vld [vmem:[#allocation7 + $0x20] sm:$0xff]
    %v612 = vld [vmem:[#allocation7 + $0x28] sm:$0xff]
    %v613 = vld [vmem:[#allocation7 + $0x30] sm:$0xff]
    %v614 = vld [vmem:[#allocation7 + $0x38] sm:$0xff]
    %v615 = vld [vmem:[#allocation7 + $0x40] sm:$0xff]
    %v616 = vld [vmem:[#allocation7 + $0x48] sm:$0xff]
    %v617 = vld [vmem:[#allocation7 + $0x50] sm:$0xff]
    %v618 = vld [vmem:[#allocation7 + $0x58] sm:$0xff]
    %v619 = vld [vmem:[#allocation7 + $0x60] sm:$0xff]
    %v620 = vld [vmem:[#allocation7 + $0x68] sm:$0xff]
    %v621 = vld [vmem:[#allocation7 + $0x70] sm:$0xff]
    %v622 = vld [vmem:[#allocation7 + $0x78] sm:$0xff]
    %v623 = vld [vmem:[#allocation7 + $0x80] sm:$0xff]
    %v624 = vld [vmem:[#allocation7 + $0x88] sm:$0xff]
    %v625 = vld [vmem:[#allocation7 + $0x90] sm:$0xff]
    %v626 = vld [vmem:[#allocation7 + $0x98] sm:$0xff]
    %v627 = vld [vmem:[#allocation7 + $0xa0] sm:$0xff]
    %v628 = vld [vmem:[#allocation7 + $0xa8] sm:$0xff]
    %v629 = vld [vmem:[#allocation7 + $0xb0] sm:$0xff]
    %v630 = vld [vmem:[#allocation7 + $0xb8] sm:$0xff]
    %v631 = vld [vmem:[#allocation7 + $0xc0] sm:$0xff]
    %v632 = vld [vmem:[#allocation7 + $0xc8] sm:$0xff]
    %v633 = vld [vmem:[#allocation7 + $0xd0] sm:$0xff]
    %v634 = vld [vmem:[#allocation7 + $0xd8] sm:$0xff]
    %v635 = vld [vmem:[#allocation7 + $0xe0] sm:$0xff]
    %v636 = vld [vmem:[#allocation7 + $0xe8] sm:$0xff]
    %v637 = vld [vmem:[#allocation7 + $0xf0] sm:$0xff]
    %v638 = vld [vmem:[#allocation7 + $0xf8] sm:$0xff]
    %v639 = vld [vmem:[%s6] sm:$0x1]
    %v641 = vlaneseq
    %v642 = vshrl.u32 %v641, 7
    %v643 = vsub.s32 0, %v642
    %v644 = vrot.slane %v639, %v643
    %646 = vmatprep.subr.mxu0 0.0
    %647 = vmatpush1.msra.mxu0 %v607
    %648 = vmatprep.subr.mxu0 0.0
    %649 = vmatpush1.msra.mxu0 %v608
    %650 = vmatprep.subr.mxu0 0.0
    %651 = vmatpush1.msra.mxu0 %v609
    %652 = vmatprep.subr.mxu0 0.0
    %653 = vmatpush1.msra.mxu0 %v610
    %654 = vmatprep.subr.mxu0 0.0
    %655 = vmatpush1.msra.mxu0 %v611
    %656 = vmatprep.subr.mxu0 0.0
    %657 = vmatpush1.msra.mxu0 %v612
    %658 = vmatprep.subr.mxu0 0.0
    %659 = vmatpush1.msra.mxu0 %v613
    %660 = vmatprep.subr.mxu0 0.0
    %661 = vmatpush1.msra.mxu0 %v614
    %662 = vmatprep.subr.mxu0 0.0
    %663 = vmatpush1.msra.mxu0 %v615
    %664 = vmatprep.subr.mxu0 0.0
    %665 = vmatpush1.msra.mxu0 %v616
    %666 = vmatprep.subr.mxu0 0.0
    %667 = vmatpush1.msra.mxu0 %v617
    %668 = vmatprep.subr.mxu0 0.0
    %669 = vmatpush1.msra.mxu0 %v618
    %670 = vmatprep.subr.mxu0 0.0
    %671 = vmatpush1.msra.mxu0 %v619
    %672 = vmatprep.subr.mxu0 0.0
    %673 = vmatpush1.msra.mxu0 %v620
    %674 = vmatprep.subr.mxu0 0.0
    %675 = vmatpush1.msra.mxu0 %v621
    %676 = vmatprep.subr.mxu0 0.0
    %677 = vmatpush1.msra.mxu0 %v622
    %678 = vmatprep.subr.mxu0 0.0
    %679 = vmatpush1.msra.mxu0 %v623
    %680 = vmatprep.subr.mxu0 0.0
    %681 = vmatpush1.msra.mxu0 %v624
    %682 = vmatprep.subr.mxu0 0.0
    %683 = vmatpush1.msra.mxu0 %v625
    %684 = vmatprep.subr.mxu0 0.0
    %685 = vmatpush1.msra.mxu0 %v626
    %686 = vmatprep.subr.mxu0 0.0
    %687 = vmatpush1.msra.mxu0 %v627
    %688 = vmatprep.subr.mxu0 0.0
    %689 = vmatpush1.msra.mxu0 %v628
    %690 = vmatprep.subr.mxu0 0.0
    %691 = vmatpush1.msra.mxu0 %v629
    %692 = vmatprep.subr.mxu0 0.0
    %693 = vmatpush1.msra.mxu0 %v630
    %694 = vmatprep.subr.mxu0 0.0
    %695 = vmatpush1.msra.mxu0 %v631
    %696 = vmatprep.subr.mxu0 0.0
    %697 = vmatpush1.msra.mxu0 %v632
    %698 = vmatprep.subr.mxu0 0.0
    %699 = vmatpush1.msra.mxu0 %v633
    %700 = vmatprep.subr.mxu0 0.0
    %701 = vmatpush1.msra.mxu0 %v634
    %702 = vmatprep.subr.mxu0 0.0
    %703 = vmatpush1.msra.mxu0 %v635
    %704 = vmatprep.subr.mxu0 0.0
    %705 = vmatpush1.msra.mxu0 %v636
    %706 = vmatprep.subr.mxu0 0.0
    %707 = vmatpush1.msra.mxu0 %v637
    %708 = vmatprep.subr.mxu0 0.0
    %709 = vmatpush1.msra.mxu0 %v638
    %710 = vmatprep.mubr.f32.mxu0 %v605
    %711 = vmatmul.mubr.f32.gmra.mrb[0].mxu0 %v603
    %v712 = vpop.f32.mrb[0].mxu0
    %v713 = vadd.f32 %v644, %v712
    %v714 = vpop.f32.mrb[0].mxu0
    %715 = vdwg.mxu0
    %v716 = vld [vmem:[#allocation9] sm:$0xff]
    %v717 = vld [vmem:[#allocation9 + $0x8] sm:$0xff]
    %v718 = vld [vmem:[#allocation9 + $0x10] sm:$0xff]
    %v719 = vld [vmem:[#allocation9 + $0x18] sm:$0xff]
    %v720 = vld [vmem:[#allocation9 + $0x20] sm:$0xff]
    %v721 = vld [vmem:[#allocation9 + $0x28] sm:$0xff]
    %v722 = vld [vmem:[#allocation9 + $0x30] sm:$0xff]
    %v723 = vld [vmem:[#allocation9 + $0x38] sm:$0xff]
    %v724 = vld [vmem:[#allocation9 + $0x40] sm:$0xff]
    %v725 = vld [vmem:[#allocation9 + $0x48] sm:$0xff]
    %v726 = vld [vmem:[#allocation9 + $0x50] sm:$0xff]
    %v727 = vld [vmem:[#allocation9 + $0x58] sm:$0xff]
    %v728 = vld [vmem:[#allocation9 + $0x60] sm:$0xff]
    %v729 = vld [vmem:[#allocation9 + $0x68] sm:$0xff]
    %v730 = vld [vmem:[#allocation9 + $0x70] sm:$0xff]
    %v731 = vld [vmem:[#allocation9 + $0x78] sm:$0xff]
    %v732 = vld [vmem:[#allocation9 + $0x80] sm:$0xff]
    %v733 = vld [vmem:[#allocation9 + $0x88] sm:$0xff]
    %v734 = vld [vmem:[#allocation9 + $0x90] sm:$0xff]
    %v735 = vld [vmem:[#allocation9 + $0x98] sm:$0xff]
    %v736 = vld [vmem:[#allocation9 + $0xa0] sm:$0xff]
    %v737 = vld [vmem:[#allocation9 + $0xa8] sm:$0xff]
    %v738 = vld [vmem:[#allocation9 + $0xb0] sm:$0xff]
    %v739 = vld [vmem:[#allocation9 + $0xb8] sm:$0xff]
    %v740 = vld [vmem:[#allocation9 + $0xc0] sm:$0xff]
    %v741 = vld [vmem:[#allocation9 + $0xc8] sm:$0xff]
    %v742 = vld [vmem:[#allocation9 + $0xd0] sm:$0xff]
    %v743 = vld [vmem:[#allocation9 + $0xd8] sm:$0xff]
    %v744 = vld [vmem:[#allocation9 + $0xe0] sm:$0xff]
    %v745 = vld [vmem:[#allocation9 + $0xe8] sm:$0xff]
    %v746 = vld [vmem:[#allocation9 + $0xf0] sm:$0xff]
    %v747 = vld [vmem:[#allocation9 + $0xf8] sm:$0xff]
    %v748 = vld [vmem:[#allocation9 + $0x100] sm:$0xff]
    %v749 = vld [vmem:[#allocation9 + $0x108] sm:$0xff]
    %v750 = vld [vmem:[#allocation9 + $0x110] sm:$0xff]
    %v751 = vld [vmem:[#allocation9 + $0x118] sm:$0xff]
    %v752 = vld [vmem:[#allocation9 + $0x120] sm:$0xff]
    %v753 = vld [vmem:[#allocation9 + $0x128] sm:$0xff]
    %v754 = vld [vmem:[#allocation9 + $0x130] sm:$0xff]
    %v755 = vld [vmem:[#allocation9 + $0x138] sm:$0xff]
    %v756 = vld [vmem:[#allocation9 + $0x140] sm:$0xff]
    %v757 = vld [vmem:[#allocation9 + $0x148] sm:$0xff]
    %v758 = vld [vmem:[#allocation9 + $0x150] sm:$0xff]
    %v759 = vld [vmem:[#allocation9 + $0x158] sm:$0xff]
    %v760 = vld [vmem:[#allocation9 + $0x160] sm:$0xff]
    %v761 = vld [vmem:[#allocation9 + $0x168] sm:$0xff]
    %v762 = vld [vmem:[#allocation9 + $0x170] sm:$0xff]
    %v763 = vld [vmem:[#allocation9 + $0x178] sm:$0xff]
    %v764 = vld [vmem:[#allocation9 + $0x180] sm:$0xff]
    %v765 = vld [vmem:[#allocation9 + $0x188] sm:$0xff]
    %v766 = vld [vmem:[#allocation9 + $0x190] sm:$0xff]
    %v767 = vld [vmem:[#allocation9 + $0x198] sm:$0xff]
    %v768 = vld [vmem:[#allocation9 + $0x1a0] sm:$0xff]
    %v769 = vld [vmem:[#allocation9 + $0x1a8] sm:$0xff]
    %v770 = vld [vmem:[#allocation9 + $0x1b0] sm:$0xff]
    %v771 = vld [vmem:[#allocation9 + $0x1b8] sm:$0xff]
    %v772 = vld [vmem:[#allocation9 + $0x1c0] sm:$0xff]
    %v773 = vld [vmem:[#allocation9 + $0x1c8] sm:$0xff]
    %v774 = vld [vmem:[#allocation9 + $0x1d0] sm:$0xff]
    %v775 = vld [vmem:[#allocation9 + $0x1d8] sm:$0xff]
    %v776 = vld [vmem:[#allocation9 + $0x1e0] sm:$0xff]
    %v777 = vld [vmem:[#allocation9 + $0x1e8] sm:$0xff]
    %v778 = vld [vmem:[#allocation9 + $0x1f0] sm:$0xff]
    %v779 = vld [vmem:[#allocation9 + $0x1f8] sm:$0xff]
    %v780 = vld [vmem:[%s9] sm:$0xf]
    %v782 = vlaneseq
    %v783 = vshrl.u32 %v782, 7
    %v784 = vsub.s32 0, %v783
    %v785 = vrot.slane %v780, %v784
    %v786 = vlaneseq
    %v787 = vshrl.u32 %v786, 7
    %v788 = vsub.s32 1, %v787
    %v789 = vrot.slane %v780, %v788
    %v790 = vlaneseq
    %v791 = vshrl.u32 %v790, 7
    %v792 = vsub.s32 2, %v791
    %v793 = vrot.slane %v780, %v792
    %v794 = vlaneseq
    %v795 = vshrl.u32 %v794, 7
    %v796 = vsub.s32 3, %v795
    %v797 = vrot.slane %v780, %v796
    %802 = vmatprep.subr.mxu0 %v717
    %803 = vmatpush1.msra.mxu0 %v716
    %804 = vmatprep.subr.mxu0 %v721
    %805 = vmatpush1.msra.mxu0 %v720
    %806 = vmatprep.subr.mxu0 %v725
    %807 = vmatpush1.msra.mxu0 %v724
    %808 = vmatprep.subr.mxu0 %v729
    %809 = vmatpush1.msra.mxu0 %v728
    %810 = vmatprep.subr.mxu0 %v733
    %811 = vmatpush1.msra.mxu0 %v732
    %812 = vmatprep.subr.mxu0 %v737
    %813 = vmatpush1.msra.mxu0 %v736
    %814 = vmatprep.subr.mxu0 %v741
    %815 = vmatpush1.msra.mxu0 %v740
    %816 = vmatprep.subr.mxu0 %v745
    %817 = vmatpush1.msra.mxu0 %v744
    %818 = vmatprep.subr.mxu0 %v749
    %819 = vmatpush1.msra.mxu0 %v748
    %820 = vmatprep.subr.mxu0 %v753
    %821 = vmatpush1.msra.mxu0 %v752
    %822 = vmatprep.subr.mxu0 %v757
    %823 = vmatpush1.msra.mxu0 %v756
    %824 = vmatprep.subr.mxu0 %v761
    %825 = vmatpush1.msra.mxu0 %v760
    %826 = vmatprep.subr.mxu0 %v765
    %827 = vmatpush1.msra.mxu0 %v764
    %828 = vmatprep.subr.mxu0 %v769
    %829 = vmatpush1.msra.mxu0 %v768
    %830 = vmatprep.subr.mxu0 %v773
    %831 = vmatpush1.msra.mxu0 %v772
    %832 = vmatprep.subr.mxu0 %v777
    %833 = vmatpush1.msra.mxu0 %v776
    %834 = vmatprep.subr.mxu0 0.0
    %835 = vmatpush1.msra.mxu0 0.0
    %836 = vmatprep.subr.mxu0 0.0
    %837 = vmatpush1.msra.mxu0 0.0
    %838 = vmatprep.subr.mxu0 0.0
    %839 = vmatpush1.msra.mxu0 0.0
    %840 = vmatprep.subr.mxu0 0.0
    %841 = vmatpush1.msra.mxu0 0.0
    %842 = vmatprep.subr.mxu0 0.0
    %843 = vmatpush1.msra.mxu0 0.0
    %844 = vmatprep.subr.mxu0 0.0
    %845 = vmatpush1.msra.mxu0 0.0
    %846 = vmatprep.subr.mxu0 0.0
    %847 = vmatpush1.msra.mxu0 0.0
    %848 = vmatprep.subr.mxu0 0.0
    %849 = vmatpush1.msra.mxu0 0.0
    %850 = vmatprep.subr.mxu0 0.0
    %851 = vmatpush1.msra.mxu0 0.0
    %852 = vmatprep.subr.mxu0 0.0
    %853 = vmatpush1.msra.mxu0 0.0
    %854 = vmatprep.subr.mxu0 0.0
    %855 = vmatpush1.msra.mxu0 0.0
    %856 = vmatprep.subr.mxu0 0.0
    %857 = vmatpush1.msra.mxu0 0.0
    %858 = vmatprep.subr.mxu0 0.0
    %859 = vmatpush1.msra.mxu0 0.0
    %860 = vmatprep.subr.mxu0 0.0
    %861 = vmatpush1.msra.mxu0 0.0
    %862 = vmatprep.subr.mxu0 0.0
    %863 = vmatpush1.msra.mxu0 0.0
    %864 = vmatprep.subr.mxu0 0.0
    %865 = vmatpush1.msra.mxu0 0.0
    %866 = vmatprep.mubr.f32.mxu0 0.0
    %867 = vmatmul.mubr.f32.gmra.mrb[0].mxu0 %v713
    %v868 = vpop.f32.mrb[0].mxu0
    %v869 = vadd.f32 %v785, %v868
    %v870 = vpop.f32.mrb[0].mxu0
    %v871 = vadd.f32 %v789, %v870
    %872 = vdwg.mxu0
    %873 = vmatprep.subr.mxu0 %v719
    %874 = vmatpush1.msra.mxu0 %v718
    %875 = vmatprep.subr.mxu0 %v723
    %876 = vmatpush1.msra.mxu0 %v722
    %877 = vmatprep.subr.mxu0 %v727
    %878 = vmatpush1.msra.mxu0 %v726
    %879 = vmatprep.subr.mxu0 %v731
    %880 = vmatpush1.msra.mxu0 %v730
    %881 = vmatprep.subr.mxu0 %v735
    %882 = vmatpush1.msra.mxu0 %v734
    %883 = vmatprep.subr.mxu0 %v739
    %884 = vmatpush1.msra.mxu0 %v738
    %885 = vmatprep.subr.mxu0 %v743
    %886 = vmatpush1.msra.mxu0 %v742
    %887 = vmatprep.subr.mxu0 %v747
    %888 = vmatpush1.msra.mxu0 %v746
    %889 = vmatprep.subr.mxu0 %v751
    %890 = vmatpush1.msra.mxu0 %v750
    %891 = vmatprep.subr.mxu0 %v755
    %892 = vmatpush1.msra.mxu0 %v754
    %893 = vmatprep.subr.mxu0 %v759
    %894 = vmatpush1.msra.mxu0 %v758
    %895 = vmatprep.subr.mxu0 %v763
    %896 = vmatpush1.msra.mxu0 %v762
    %897 = vmatprep.subr.mxu0 %v767
    %898 = vmatpush1.msra.mxu0 %v766
    %899 = vmatprep.subr.mxu0 %v771
    %900 = vmatpush1.msra.mxu0 %v770
    %901 = vmatprep.subr.mxu0 %v775
    %902 = vmatpush1.msra.mxu0 %v774
    %903 = vmatprep.subr.mxu0 %v779
    %904 = vmatpush1.msra.mxu0 %v778
    %905 = vmatprep.subr.mxu0 0.0
    %906 = vmatpush1.msra.mxu0 0.0
    %907 = vmatprep.subr.mxu0 0.0
    %908 = vmatpush1.msra.mxu0 0.0
    %909 = vmatprep.subr.mxu0 0.0
    %910 = vmatpush1.msra.mxu0 0.0
    %911 = vmatprep.subr.mxu0 0.0
    %912 = vmatpush1.msra.mxu0 0.0
    %913 = vmatprep.subr.mxu0 0.0
    %914 = vmatpush1.msra.mxu0 0.0
    %915 = vmatprep.subr.mxu0 0.0
    %916 = vmatpush1.msra.mxu0 0.0
    %917 = vmatprep.subr.mxu0 0.0
    %918 = vmatpush1.msra.mxu0 0.0
    %919 = vmatprep.subr.mxu0 0.0
    %920 = vmatpush1.msra.mxu0 0.0
    %921 = vmatprep.subr.mxu0 0.0
    %922 = vmatpush1.msra.mxu0 0.0
    %923 = vmatprep.subr.mxu0 0.0
    %924 = vmatpush1.msra.mxu0 0.0
    %925 = vmatprep.subr.mxu0 0.0
    %926 = vmatpush1.msra.mxu0 0.0
    %927 = vmatprep.subr.mxu0 0.0
    %928 = vmatpush1.msra.mxu0 0.0
    %929 = vmatprep.subr.mxu0 0.0
    %930 = vmatpush1.msra.mxu0 0.0
    %931 = vmatprep.subr.mxu0 0.0
    %932 = vmatpush1.msra.mxu0 0.0
    %933 = vmatprep.subr.mxu0 0.0
    %934 = vmatpush1.msra.mxu0 0.0
    %935 = vmatprep.subr.mxu0 0.0
    %936 = vmatpush1.msra.mxu0 0.0
    %937 = vmatprep.mubr.f32.mxu0 0.0
    %938 = vmatmul.mubr.f32.gmra.mrb[0].mxu0 %v713
    %v939 = vpop.f32.mrb[0].mxu0
    %v940 = vadd.f32 %v793, %v939
    %v941 = vpop.f32.mrb[0].mxu0
    %v942 = vadd.f32 %v797, %v941
    %943 = vdwg.mxu0
    %v944 = vld [vmem:[#allocation10] sm:$0xff]
    %v945 = vld [vmem:[#allocation10 + $0x8] sm:$0xff]
    %v946 = vld [vmem:[#allocation10 + $0x10] sm:$0xff]
    %v947 = vld [vmem:[#allocation10 + $0x18] sm:$0xff]
    %v948 = vld [vmem:[#allocation10 + $0x20] sm:$0xff]
    %v949 = vld [vmem:[#allocation10 + $0x28] sm:$0xff]
    %v950 = vld [vmem:[#allocation10 + $0x30] sm:$0xff]
    %v951 = vld [vmem:[#allocation10 + $0x38] sm:$0xff]
    %v952 = vld [vmem:[#allocation10 + $0x40] sm:$0xff]
    %v953 = vld [vmem:[#allocation10 + $0x48] sm:$0xff]
    %v954 = vld [vmem:[#allocation10 + $0x50] sm:$0xff]
    %v955 = vld [vmem:[#allocation10 + $0x58] sm:$0xff]
    %v956 = vld [vmem:[#allocation10 + $0x60] sm:$0xff]
    %v957 = vld [vmem:[#allocation10 + $0x68] sm:$0xff]
    %v958 = vld [vmem:[#allocation10 + $0x70] sm:$0xff]
    %v959 = vld [vmem:[#allocation10 + $0x78] sm:$0xff]
    %v960 = vld [vmem:[#allocation10 + $0x80] sm:$0xff]
    %v961 = vld [vmem:[#allocation10 + $0x88] sm:$0xff]
    %v962 = vld [vmem:[#allocation10 + $0x90] sm:$0xff]
    %v963 = vld [vmem:[#allocation10 + $0x98] sm:$0xff]
    %v964 = vld [vmem:[#allocation10 + $0xa0] sm:$0xff]
    %v965 = vld [vmem:[#allocation10 + $0xa8] sm:$0xff]
    %v966 = vld [vmem:[#allocation10 + $0xb0] sm:$0xff]
    %v967 = vld [vmem:[#allocation10 + $0xb8] sm:$0xff]
    %v968 = vld [vmem:[#allocation10 + $0xc0] sm:$0xff]
    %v969 = vld [vmem:[#allocation10 + $0xc8] sm:$0xff]
    %v970 = vld [vmem:[#allocation10 + $0xd0] sm:$0xff]
    %v971 = vld [vmem:[#allocation10 + $0xd8] sm:$0xff]
    %v972 = vld [vmem:[#allocation10 + $0xe0] sm:$0xff]
    %v973 = vld [vmem:[#allocation10 + $0xe8] sm:$0xff]
    %v974 = vld [vmem:[#allocation10 + $0xf0] sm:$0xff]
    %v975 = vld [vmem:[#allocation10 + $0xf8] sm:$0xff]
    %v976 = vld [vmem:[#allocation10 + $0x100] sm:$0xff]
    %v977 = vld [vmem:[#allocation10 + $0x108] sm:$0xff]
    %v978 = vld [vmem:[#allocation10 + $0x110] sm:$0xff]
    %v979 = vld [vmem:[#allocation10 + $0x118] sm:$0xff]
    %v980 = vld [vmem:[#allocation10 + $0x120] sm:$0xff]
    %v981 = vld [vmem:[#allocation10 + $0x128] sm:$0xff]
    %v982 = vld [vmem:[#allocation10 + $0x130] sm:$0xff]
    %v983 = vld [vmem:[#allocation10 + $0x138] sm:$0xff]
    %v984 = vld [vmem:[#allocation10 + $0x140] sm:$0xff]
    %v985 = vld [vmem:[#allocation10 + $0x148] sm:$0xff]
    %v986 = vld [vmem:[#allocation10 + $0x150] sm:$0xff]
    %v987 = vld [vmem:[#allocation10 + $0x158] sm:$0xff]
    %v988 = vld [vmem:[#allocation10 + $0x160] sm:$0xff]
    %v989 = vld [vmem:[#allocation10 + $0x168] sm:$0xff]
    %v990 = vld [vmem:[#allocation10 + $0x170] sm:$0xff]
    %v991 = vld [vmem:[#allocation10 + $0x178] sm:$0xff]
    %v992 = vld [vmem:[#allocation10 + $0x180] sm:$0xff]
    %v993 = vld [vmem:[#allocation10 + $0x188] sm:$0xff]
    %v994 = vld [vmem:[#allocation10 + $0x190] sm:$0xff]
    %v995 = vld [vmem:[#allocation10 + $0x198] sm:$0xff]
    %v996 = vld [vmem:[#allocation10 + $0x1a0] sm:$0xff]
    %v997 = vld [vmem:[#allocation10 + $0x1a8] sm:$0xff]
    %v998 = vld [vmem:[#allocation10 + $0x1b0] sm:$0xff]
    %v999 = vld [vmem:[#allocation10 + $0x1b8] sm:$0xff]
    %v1000 = vld [vmem:[#allocation10 + $0x1c0] sm:$0xff]
    %v1001 = vld [vmem:[#allocation10 + $0x1c8] sm:$0xff]
    %v1002 = vld [vmem:[#allocation10 + $0x1d0] sm:$0xff]
    %v1003 = vld [vmem:[#allocation10 + $0x1d8] sm:$0xff]
    %v1004 = vld [vmem:[#allocation10 + $0x1e0] sm:$0xff]
    %v1005 = vld [vmem:[#allocation10 + $0x1e8] sm:$0xff]
    %v1006 = vld [vmem:[#allocation10 + $0x1f0] sm:$0xff]
    %v1007 = vld [vmem:[#allocation10 + $0x1f8] sm:$0xff]
    %v1008 = vld [vmem:[#allocation12] sm:$0xff]
    %v1009 = vld [vmem:[#allocation12 + $0x8] sm:$0xff]
    %v1010 = vld [vmem:[#allocation12 + $0x10] sm:$0xff]
    %v1011 = vld [vmem:[#allocation12 + $0x18] sm:$0xff]
    %v1012 = vld [vmem:[#allocation12 + $0x20] sm:$0xff]
    %v1013 = vld [vmem:[#allocation12 + $0x28] sm:$0xff]
    %v1014 = vld [vmem:[#allocation12 + $0x30] sm:$0xff]
    %v1015 = vld [vmem:[#allocation12 + $0x38] sm:$0xff]
    %v1016 = vld [vmem:[#allocation12 + $0x40] sm:$0xff]
    %v1017 = vld [vmem:[#allocation12 + $0x48] sm:$0xff]
    %v1018 = vld [vmem:[#allocation12 + $0x50] sm:$0xff]
    %v1019 = vld [vmem:[#allocation12 + $0x58] sm:$0xff]
    %v1020 = vld [vmem:[#allocation12 + $0x60] sm:$0xff]
    %v1021 = vld [vmem:[#allocation12 + $0x68] sm:$0xff]
    %v1022 = vld [vmem:[#allocation12 + $0x70] sm:$0xff]
    %v1023 = vld [vmem:[#allocation12 + $0x78] sm:$0xff]
    %v1024 = vld [vmem:[#allocation12 + $0x80] sm:$0xff]
    %v1025 = vld [vmem:[#allocation12 + $0x88] sm:$0xff]
    %v1026 = vld [vmem:[#allocation12 + $0x90] sm:$0xff]
    %v1027 = vld [vmem:[#allocation12 + $0x98] sm:$0xff]
    %v1028 = vld [vmem:[#allocation12 + $0xa0] sm:$0xff]
    %v1029 = vld [vmem:[#allocation12 + $0xa8] sm:$0xff]
    %v1030 = vld [vmem:[#allocation12 + $0xb0] sm:$0xff]
    %v1031 = vld [vmem:[#allocation12 + $0xb8] sm:$0xff]
    %v1032 = vld [vmem:[#allocation12 + $0xc0] sm:$0xff]
    %v1033 = vld [vmem:[#allocation12 + $0xc8] sm:$0xff]
    %v1034 = vld [vmem:[#allocation12 + $0xd0] sm:$0xff]
    %v1035 = vld [vmem:[#allocation12 + $0xd8] sm:$0xff]
    %v1036 = vld [vmem:[#allocation12 + $0xe0] sm:$0xff]
    %v1037 = vld [vmem:[#allocation12 + $0xe8] sm:$0xff]
    %v1038 = vld [vmem:[#allocation12 + $0xf0] sm:$0xff]
    %v1039 = vld [vmem:[#allocation12 + $0xf8] sm:$0xff]
    %v1040 = vld [vmem:[#allocation12 + $0x100] sm:$0xff]
    %v1041 = vld [vmem:[#allocation12 + $0x108] sm:$0xff]
    %v1042 = vld [vmem:[#allocation12 + $0x110] sm:$0xff]
    %v1043 = vld [vmem:[#allocation12 + $0x118] sm:$0xff]
    %v1044 = vld [vmem:[#allocation12 + $0x120] sm:$0xff]
    %v1045 = vld [vmem:[#allocation12 + $0x128] sm:$0xff]
    %v1046 = vld [vmem:[#allocation12 + $0x130] sm:$0xff]
    %v1047 = vld [vmem:[#allocation12 + $0x138] sm:$0xff]
    %v1048 = vld [vmem:[#allocation12 + $0x140] sm:$0xff]
    %v1049 = vld [vmem:[#allocation12 + $0x148] sm:$0xff]
    %v1050 = vld [vmem:[#allocation12 + $0x150] sm:$0xff]
    %v1051 = vld [vmem:[#allocation12 + $0x158] sm:$0xff]
    %v1052 = vld [vmem:[#allocation12 + $0x160] sm:$0xff]
    %v1053 = vld [vmem:[#allocation12 + $0x168] sm:$0xff]
    %v1054 = vld [vmem:[#allocation12 + $0x170] sm:$0xff]
    %v1055 = vld [vmem:[#allocation12 + $0x178] sm:$0xff]
    %v1056 = vld [vmem:[#allocation12 + $0x180] sm:$0xff]
    %v1057 = vld [vmem:[#allocation12 + $0x188] sm:$0xff]
    %v1058 = vld [vmem:[#allocation12 + $0x190] sm:$0xff]
    %v1059 = vld [vmem:[#allocation12 + $0x198] sm:$0xff]
    %v1060 = vld [vmem:[#allocation12 + $0x1a0] sm:$0xff]
    %v1061 = vld [vmem:[#allocation12 + $0x1a8] sm:$0xff]
    %v1062 = vld [vmem:[#allocation12 + $0x1b0] sm:$0xff]
    %v1063 = vld [vmem:[#allocation12 + $0x1b8] sm:$0xff]
    %v1064 = vld [vmem:[#allocation12 + $0x1c0] sm:$0xff]
    %v1065 = vld [vmem:[#allocation12 + $0x1c8] sm:$0xff]
    %v1066 = vld [vmem:[#allocation12 + $0x1d0] sm:$0xff]
    %v1067 = vld [vmem:[#allocation12 + $0x1d8] sm:$0xff]
    %v1068 = vld [vmem:[#allocation12 + $0x1e0] sm:$0xff]
    %v1069 = vld [vmem:[#allocation12 + $0x1e8] sm:$0xff]
    %v1070 = vld [vmem:[#allocation12 + $0x1f0] sm:$0xff]
    %v1071 = vld [vmem:[#allocation12 + $0x1f8] sm:$0xff]
    %v1072 = vld [vmem:[#allocation12 + $0x200] sm:$0xff]
    %v1073 = vld [vmem:[#allocation12 + $0x208] sm:$0xff]
    %v1074 = vld [vmem:[#allocation12 + $0x210] sm:$0xff]
    %v1075 = vld [vmem:[#allocation12 + $0x218] sm:$0xff]
    %v1076 = vld [vmem:[#allocation12 + $0x220] sm:$0xff]
    %v1077 = vld [vmem:[#allocation12 + $0x228] sm:$0xff]
    %v1078 = vld [vmem:[#allocation12 + $0x230] sm:$0xff]
    %v1079 = vld [vmem:[#allocation12 + $0x238] sm:$0xff]
    %v1080 = vld [vmem:[#allocation12 + $0x240] sm:$0xff]
    %v1081 = vld [vmem:[#allocation12 + $0x248] sm:$0xff]
    %v1082 = vld [vmem:[#allocation12 + $0x250] sm:$0xff]
    %v1083 = vld [vmem:[#allocation12 + $0x258] sm:$0xff]
    %v1084 = vld [vmem:[#allocation12 + $0x260] sm:$0xff]
    %v1085 = vld [vmem:[#allocation12 + $0x268] sm:$0xff]
    %v1086 = vld [vmem:[#allocation12 + $0x270] sm:$0xff]
    %v1087 = vld [vmem:[#allocation12 + $0x278] sm:$0xff]
    %v1088 = vld [vmem:[#allocation12 + $0x280] sm:$0xff]
    %v1089 = vld [vmem:[#allocation12 + $0x288] sm:$0xff]
    %v1090 = vld [vmem:[#allocation12 + $0x290] sm:$0xff]
    %v1091 = vld [vmem:[#allocation12 + $0x298] sm:$0xff]
    %v1092 = vld [vmem:[#allocation12 + $0x2a0] sm:$0xff]
    %v1093 = vld [vmem:[#allocation12 + $0x2a8] sm:$0xff]
    %v1094 = vld [vmem:[#allocation12 + $0x2b0] sm:$0xff]
    %v1095 = vld [vmem:[#allocation12 + $0x2b8] sm:$0xff]
    %v1096 = vld [vmem:[#allocation12 + $0x2c0] sm:$0xff]
    %v1097 = vld [vmem:[#allocation12 + $0x2c8] sm:$0xff]
    %v1098 = vld [vmem:[#allocation12 + $0x2d0] sm:$0xff]
    %v1099 = vld [vmem:[#allocation12 + $0x2d8] sm:$0xff]
    %v1100 = vld [vmem:[#allocation12 + $0x2e0] sm:$0xff]
    %v1101 = vld [vmem:[#allocation12 + $0x2e8] sm:$0xff]
    %v1102 = vld [vmem:[#allocation12 + $0x2f0] sm:$0xff]
    %v1103 = vld [vmem:[#allocation12 + $0x2f8] sm:$0xff]
    %v1104 = vld [vmem:[#allocation12 + $0x300] sm:$0xff]
    %v1105 = vld [vmem:[#allocation12 + $0x308] sm:$0xff]
    %v1106 = vld [vmem:[#allocation12 + $0x310] sm:$0xff]
    %v1107 = vld [vmem:[#allocation12 + $0x318] sm:$0xff]
    %v1108 = vld [vmem:[#allocation12 + $0x320] sm:$0xff]
    %v1109 = vld [vmem:[#allocation12 + $0x328] sm:$0xff]
    %v1110 = vld [vmem:[#allocation12 + $0x330] sm:$0xff]
    %v1111 = vld [vmem:[#allocation12 + $0x338] sm:$0xff]
    %v1112 = vld [vmem:[#allocation12 + $0x340] sm:$0xff]
    %v1113 = vld [vmem:[#allocation12 + $0x348] sm:$0xff]
    %v1114 = vld [vmem:[#allocation12 + $0x350] sm:$0xff]
    %v1115 = vld [vmem:[#allocation12 + $0x358] sm:$0xff]
    %v1116 = vld [vmem:[#allocation12 + $0x360] sm:$0xff]
    %v1117 = vld [vmem:[#allocation12 + $0x368] sm:$0xff]
    %v1118 = vld [vmem:[#allocation12 + $0x370] sm:$0xff]
    %v1119 = vld [vmem:[#allocation12 + $0x378] sm:$0xff]
    %v1120 = vld [vmem:[#allocation12 + $0x380] sm:$0xff]
    %v1121 = vld [vmem:[#allocation12 + $0x388] sm:$0xff]
    %v1122 = vld [vmem:[#allocation12 + $0x390] sm:$0xff]
    %v1123 = vld [vmem:[#allocation12 + $0x398] sm:$0xff]
    %v1124 = vld [vmem:[#allocation12 + $0x3a0] sm:$0xff]
    %v1125 = vld [vmem:[#allocation12 + $0x3a8] sm:$0xff]
    %v1126 = vld [vmem:[#allocation12 + $0x3b0] sm:$0xff]
    %v1127 = vld [vmem:[#allocation12 + $0x3b8] sm:$0xff]
    %v1128 = vld [vmem:[#allocation12 + $0x3c0] sm:$0xff]
    %v1129 = vld [vmem:[#allocation12 + $0x3c8] sm:$0xff]
    %v1130 = vld [vmem:[#allocation12 + $0x3d0] sm:$0xff]
    %v1131 = vld [vmem:[#allocation12 + $0x3d8] sm:$0xff]
    %v1132 = vld [vmem:[#allocation12 + $0x3e0] sm:$0xff]
    %v1133 = vld [vmem:[#allocation12 + $0x3e8] sm:$0xff]
    %v1134 = vld [vmem:[#allocation12 + $0x3f0] sm:$0xff]
    %v1135 = vld [vmem:[#allocation12 + $0x3f8] sm:$0xff]
    %v1136 = vld [vmem:[%s11] sm:$0xf]
    %1137 = vmatprep.subr.mxu0 %v945
    %1138 = vmatpush1.msra.mxu0 %v944
    %1139 = vmatprep.subr.mxu0 %v949
    %1140 = vmatpush1.msra.mxu0 %v948
    %1141 = vmatprep.subr.mxu0 %v953
    %1142 = vmatpush1.msra.mxu0 %v952
    %1143 = vmatprep.subr.mxu0 %v957
    %1144 = vmatpush1.msra.mxu0 %v956
    %1145 = vmatprep.subr.mxu0 %v961
    %1146 = vmatpush1.msra.mxu0 %v960
    %1147 = vmatprep.subr.mxu0 %v965
    %1148 = vmatpush1.msra.mxu0 %v964
    %1149 = vmatprep.subr.mxu0 %v969
    %1150 = vmatpush1.msra.mxu0 %v968
    %1151 = vmatprep.subr.mxu0 %v973
    %1152 = vmatpush1.msra.mxu0 %v972
    %1153 = vmatprep.subr.mxu0 %v977
    %1154 = vmatpush1.msra.mxu0 %v976
    %1155 = vmatprep.subr.mxu0 %v981
    %1156 = vmatpush1.msra.mxu0 %v980
    %1157 = vmatprep.subr.mxu0 %v985
    %1158 = vmatpush1.msra.mxu0 %v984
    %1159 = vmatprep.subr.mxu0 %v989
    %1160 = vmatpush1.msra.mxu0 %v988
    %1161 = vmatprep.subr.mxu0 %v993
    %1162 = vmatpush1.msra.mxu0 %v992
    %1163 = vmatprep.subr.mxu0 %v997
    %1164 = vmatpush1.msra.mxu0 %v996
    %1165 = vmatprep.subr.mxu0 %v1001
    %1166 = vmatpush1.msra.mxu0 %v1000
    %1167 = vmatprep.subr.mxu0 %v1005
    %1168 = vmatpush1.msra.mxu0 %v1004
    %1169 = vmatprep.subr.mxu0 0.0
    %1170 = vmatpush1.msra.mxu0 0.0
    %1171 = vmatprep.subr.mxu0 0.0
    %1172 = vmatpush1.msra.mxu0 0.0
    %1173 = vmatprep.subr.mxu0 0.0
    %1174 = vmatpush1.msra.mxu0 0.0
    %1175 = vmatprep.subr.mxu0 0.0
    %1176 = vmatpush1.msra.mxu0 0.0
    %1177 = vmatprep.subr.mxu0 0.0
    %1178 = vmatpush1.msra.mxu0 0.0
    %1179 = vmatprep.subr.mxu0 0.0
    %1180 = vmatpush1.msra.mxu0 0.0
    %1181 = vmatprep.subr.mxu0 0.0
    %1182 = vmatpush1.msra.mxu0 0.0
    %1183 = vmatprep.subr.mxu0 0.0
    %1184 = vmatpush1.msra.mxu0 0.0
    %1185 = vmatprep.subr.mxu0 0.0
    %1186 = vmatpush1.msra.mxu0 0.0
    %1187 = vmatprep.subr.mxu0 0.0
    %1188 = vmatpush1.msra.mxu0 0.0
    %1189 = vmatprep.subr.mxu0 0.0
    %1190 = vmatpush1.msra.mxu0 0.0
    %1191 = vmatprep.subr.mxu0 0.0
    %1192 = vmatpush1.msra.mxu0 0.0
    %1193 = vmatprep.subr.mxu0 0.0
    %1194 = vmatpush1.msra.mxu0 0.0
    %1195 = vmatprep.subr.mxu0 0.0
    %1196 = vmatpush1.msra.mxu0 0.0
    %1197 = vmatprep.subr.mxu0 0.0
    %1198 = vmatpush1.msra.mxu0 0.0
    %1199 = vmatprep.subr.mxu0 0.0
    %1200 = vmatpush1.msra.mxu0 0.0
    %1201 = vmatprep.mubr.f32.mxu0 0.0
    %1202 = vmatmul.mubr.f32.gmra.mrb[0].mxu0 0.0
    %v1203 = vpop.f32.mrb[0].mxu0
    %v1204 = vadd.f32 0.0, %v1203
    %v1205 = vpop.f32.mrb[0].mxu0
    %v1206 = vadd.f32 0.0, %v1205
    %1207 = vdwg.mxu0
    %1208 = vmatprep.subr.mxu0 %v947
    %1209 = vmatpush1.msra.mxu0 %v946
    %1210 = vmatprep.subr.mxu0 %v951
    %1211 = vmatpush1.msra.mxu0 %v950
    %1212 = vmatprep.subr.mxu0 %v955
    %1213 = vmatpush1.msra.mxu0 %v954
    %1214 = vmatprep.subr.mxu0 %v959
    %1215 = vmatpush1.msra.mxu0 %v958
    %1216 = vmatprep.subr.mxu0 %v963
    %1217 = vmatpush1.msra.mxu0 %v962
    %1218 = vmatprep.subr.mxu0 %v967
    %1219 = vmatpush1.msra.mxu0 %v966
    %1220 = vmatprep.subr.mxu0 %v971
    %1221 = vmatpush1.msra.mxu0 %v970
    %1222 = vmatprep.subr.mxu0 %v975
    %1223 = vmatpush1.msra.mxu0 %v974
    %1224 = vmatprep.subr.mxu0 %v979
    %1225 = vmatpush1.msra.mxu0 %v978
    %1226 = vmatprep.subr.mxu0 %v983
    %1227 = vmatpush1.msra.mxu0 %v982
    %1228 = vmatprep.subr.mxu0 %v987
    %1229 = vmatpush1.msra.mxu0 %v986
    %1230 = vmatprep.subr.mxu0 %v991
    %1231 = vmatpush1.msra.mxu0 %v990
    %1232 = vmatprep.subr.mxu0 %v995
    %1233 = vmatpush1.msra.mxu0 %v994
    %1234 = vmatprep.subr.mxu0 %v999
    %1235 = vmatpush1.msra.mxu0 %v998
    %1236 = vmatprep.subr.mxu0 %v1003
    %1237 = vmatpush1.msra.mxu0 %v1002
    %1238 = vmatprep.subr.mxu0 %v1007
    %1239 = vmatpush1.msra.mxu0 %v1006
    %1240 = vmatprep.subr.mxu0 0.0
    %1241 = vmatpush1.msra.mxu0 0.0
    %1242 = vmatprep.subr.mxu0 0.0
    %1243 = vmatpush1.msra.mxu0 0.0
    %1244 = vmatprep.subr.mxu0 0.0
    %1245 = vmatpush1.msra.mxu0 0.0
    %1246 = vmatprep.subr.mxu0 0.0
    %1247 = vmatpush1.msra.mxu0 0.0
    %1248 = vmatprep.subr.mxu0 0.0
    %1249 = vmatpush1.msra.mxu0 0.0
    %1250 = vmatprep.subr.mxu0 0.0
    %1251 = vmatpush1.msra.mxu0 0.0
    %1252 = vmatprep.subr.mxu0 0.0
    %1253 = vmatpush1.msra.mxu0 0.0
    %1254 = vmatprep.subr.mxu0 0.0
    %1255 = vmatpush1.msra.mxu0 0.0
    %1256 = vmatprep.subr.mxu0 0.0
    %1257 = vmatpush1.msra.mxu0 0.0
    %1258 = vmatprep.subr.mxu0 0.0
    %1259 = vmatpush1.msra.mxu0 0.0
    %1260 = vmatprep.subr.mxu0 0.0
    %1261 = vmatpush1.msra.mxu0 0.0
    %1262 = vmatprep.subr.mxu0 0.0
    %1263 = vmatpush1.msra.mxu0 0.0
    %1264 = vmatprep.subr.mxu0 0.0
    %1265 = vmatpush1.msra.mxu0 0.0
    %1266 = vmatprep.subr.mxu0 0.0
    %1267 = vmatpush1.msra.mxu0 0.0
    %1268 = vmatprep.subr.mxu0 0.0
    %1269 = vmatpush1.msra.mxu0 0.0
    %1270 = vmatprep.subr.mxu0 0.0
    %1271 = vmatpush1.msra.mxu0 0.0
    %1272 = vmatprep.mubr.f32.mxu0 0.0
    %1273 = vmatmul.mubr.f32.gmra.mrb[0].mxu0 0.0
    %v1274 = vpop.f32.mrb[0].mxu0
    %v1275 = vadd.f32 0.0, %v1274
    %v1276 = vpop.f32.mrb[0].mxu0
    %v1277 = vadd.f32 0.0, %v1276
    %1278 = vdwg.mxu0
    %v1279 = vadd.f32 %v869, %v1204
    %v1280 = vadd.f32 %v871, %v1206
    %v1281 = vadd.f32 %v940, %v1275
    %v1282 = vadd.f32 %v942, %v1277
    %v1283 = vxor.u32 %v1279, 2147483648
    %v1284 = vmul.f32 %v1283, 1.442695
    %v1285 = vpow.pop %v1284
    %v1286 = vadd.f32 %v1285, 1.0
    %v1287 = vrcp.pop %v1286
    %v1288 = vmul.f32 1.0, %v1287
    %v1289 = vxor.u32 %v1280, 2147483648
    %v1290 = vmul.f32 %v1289, 1.442695
    %v1291 = vpow.pop %v1290
    %v1292 = vadd.f32 %v1291, 1.0
    %v1293 = vrcp.pop %v1292
    %v1294 = vmul.f32 1.0, %v1293
    %v1295 = vtanh.pop %v1281
    %v1296 = vxor.u32 %v1282, 2147483648
    %v1297 = vmul.f32 %v1296, 1.442695
    %v1298 = vpow.pop %v1297
    %v1299 = vadd.f32 %v1298, 1.0
    %v1300 = vrcp.pop %v1299
    %v1301 = vmul.f32 1.0, %v1300
    %v1302 = vmul.f32 %v1294, 0.0
    %v1303 = vmul.f32 %v1288, %v1295
    %v1304 = vadd.f32 %v1302, %v1303
    %v1305 = vtanh.pop %v1304
    %v1306 = vmul.f32 %v1301, %v1305
    %v1308 = vlaneseq
    %v1309 = vshrl.u32 %v1308, 7
    %v1310 = vsub.s32 0, %v1309
    %v1311 = vrot.slane %v1136, %v1310
    %v1312 = vlaneseq
    %v1313 = vshrl.u32 %v1312, 7
    %v1314 = vsub.s32 1, %v1313
    %v1315 = vrot.slane %v1136, %v1314
    %v1316 = vlaneseq
    %v1317 = vshrl.u32 %v1316, 7
    %v1318 = vsub.s32 2, %v1317
    %v1319 = vrot.slane %v1136, %v1318
    %v1320 = vlaneseq
    %v1321 = vshrl.u32 %v1320, 7
    %v1322 = vsub.s32 3, %v1321
    %v1323 = vrot.slane %v1136, %v1322
    %1328 = vmatprep.subr.mxu0 %v1009
    %1329 = vmatpush1.msra.mxu0 %v1008
    %1330 = vmatprep.subr.mxu0 %v1013
    %1331 = vmatpush1.msra.mxu0 %v1012
    %1332 = vmatprep.subr.mxu0 %v1017
    %1333 = vmatpush1.msra.mxu0 %v1016
    %1334 = vmatprep.subr.mxu0 %v1021
    %1335 = vmatpush1.msra.mxu0 %v1020
    %1336 = vmatprep.subr.mxu0 %v1025
    %1337 = vmatpush1.msra.mxu0 %v1024
    %1338 = vmatprep.subr.mxu0 %v1029
    %1339 = vmatpush1.msra.mxu0 %v1028
    %1340 = vmatprep.subr.mxu0 %v1033
    %1341 = vmatpush1.msra.mxu0 %v1032
    %1342 = vmatprep.subr.mxu0 %v1037
    %1343 = vmatpush1.msra.mxu0 %v1036
    %1344 = vmatprep.subr.mxu0 %v1041
    %1345 = vmatpush1.msra.mxu0 %v1040
    %1346 = vmatprep.subr.mxu0 %v1045
    %1347 = vmatpush1.msra.mxu0 %v1044
    %1348 = vmatprep.subr.mxu0 %v1049
    %1349 = vmatpush1.msra.mxu0 %v1048
    %1350 = vmatprep.subr.mxu0 %v1053
    %1351 = vmatpush1.msra.mxu0 %v1052
    %1352 = vmatprep.subr.mxu0 %v1057
    %1353 = vmatpush1.msra.mxu0 %v1056
    %1354 = vmatprep.subr.mxu0 %v1061
    %1355 = vmatpush1.msra.mxu0 %v1060
    %1356 = vmatprep.subr.mxu0 %v1065
    %1357 = vmatpush1.msra.mxu0 %v1064
    %1358 = vmatprep.subr.mxu0 %v1069
    %1359 = vmatpush1.msra.mxu0 %v1068
    %1360 = vmatprep.subr.mxu0 %v1073
    %1361 = vmatpush1.msra.mxu0 %v1072
    %1362 = vmatprep.subr.mxu0 %v1077
    %1363 = vmatpush1.msra.mxu0 %v1076
    %1364 = vmatprep.subr.mxu0 %v1081
    %1365 = vmatpush1.msra.mxu0 %v1080
    %1366 = vmatprep.subr.mxu0 %v1085
    %1367 = vmatpush1.msra.mxu0 %v1084
    %1368 = vmatprep.subr.mxu0 %v1089
    %1369 = vmatpush1.msra.mxu0 %v1088
    %1370 = vmatprep.subr.mxu0 %v1093
    %1371 = vmatpush1.msra.mxu0 %v1092
    %1372 = vmatprep.subr.mxu0 %v1097
    %1373 = vmatpush1.msra.mxu0 %v1096
    %1374 = vmatprep.subr.mxu0 %v1101
    %1375 = vmatpush1.msra.mxu0 %v1100
    %1376 = vmatprep.subr.mxu0 %v1105
    %1377 = vmatpush1.msra.mxu0 %v1104
    %1378 = vmatprep.subr.mxu0 %v1109
    %1379 = vmatpush1.msra.mxu0 %v1108
    %1380 = vmatprep.subr.mxu0 %v1113
    %1381 = vmatpush1.msra.mxu0 %v1112
    %1382 = vmatprep.subr.mxu0 %v1117
    %1383 = vmatpush1.msra.mxu0 %v1116
    %1384 = vmatprep.subr.mxu0 %v1121
    %1385 = vmatpush1.msra.mxu0 %v1120
    %1386 = vmatprep.subr.mxu0 %v1125
    %1387 = vmatpush1.msra.mxu0 %v1124
    %1388 = vmatprep.subr.mxu0 %v1129
    %1389 = vmatpush1.msra.mxu0 %v1128
    %1390 = vmatprep.subr.mxu0 %v1133
    %1391 = vmatpush1.msra.mxu0 %v1132
    %1392 = vmatprep.mubr.f32.mxu0 0.0
    %1393 = vmatmul.mubr.f32.gmra.mrb[0].mxu0 %v1306
    %v1394 = vpop.f32.mrb[0].mxu0
    %v1395 = vadd.f32 %v1311, %v1394
    %v1396 = vpop.f32.mrb[0].mxu0
    %v1397 = vadd.f32 %v1315, %v1396
    %1398 = vdwg.mxu0
    %1399 = vmatprep.subr.mxu0 %v1011
    %1400 = vmatpush1.msra.mxu0 %v1010
    %1401 = vmatprep.subr.mxu0 %v1015
    %1402 = vmatpush1.msra.mxu0 %v1014
    %1403 = vmatprep.subr.mxu0 %v1019
    %1404 = vmatpush1.msra.mxu0 %v1018
    %1405 = vmatprep.subr.mxu0 %v1023
    %1406 = vmatpush1.msra.mxu0 %v1022
    %1407 = vmatprep.subr.mxu0 %v1027
    %1408 = vmatpush1.msra.mxu0 %v1026
    %1409 = vmatprep.subr.mxu0 %v1031
    %1410 = vmatpush1.msra.mxu0 %v1030
    %1411 = vmatprep.subr.mxu0 %v1035
    %1412 = vmatpush1.msra.mxu0 %v1034
    %1413 = vmatprep.subr.mxu0 %v1039
    %1414 = vmatpush1.msra.mxu0 %v1038
    %1415 = vmatprep.subr.mxu0 %v1043
    %1416 = vmatpush1.msra.mxu0 %v1042
    %1417 = vmatprep.subr.mxu0 %v1047
    %1418 = vmatpush1.msra.mxu0 %v1046
    %1419 = vmatprep.subr.mxu0 %v1051
    %1420 = vmatpush1.msra.mxu0 %v1050
    %1421 = vmatprep.subr.mxu0 %v1055
    %1422 = vmatpush1.msra.mxu0 %v1054
    %1423 = vmatprep.subr.mxu0 %v1059
    %1424 = vmatpush1.msra.mxu0 %v1058
    %1425 = vmatprep.subr.mxu0 %v1063
    %1426 = vmatpush1.msra.mxu0 %v1062
    %1427 = vmatprep.subr.mxu0 %v1067
    %1428 = vmatpush1.msra.mxu0 %v1066
    %1429 = vmatprep.subr.mxu0 %v1071
    %1430 = vmatpush1.msra.mxu0 %v1070
    %1431 = vmatprep.subr.mxu0 %v1075
    %1432 = vmatpush1.msra.mxu0 %v1074
    %1433 = vmatprep.subr.mxu0 %v1079
    %1434 = vmatpush1.msra.mxu0 %v1078
    %1435 = vmatprep.subr.mxu0 %v1083
    %1436 = vmatpush1.msra.mxu0 %v1082
    %1437 = vmatprep.subr.mxu0 %v1087
    %1438 = vmatpush1.msra.mxu0 %v1086
    %1439 = vmatprep.subr.mxu0 %v1091
    %1440 = vmatpush1.msra.mxu0 %v1090
    %1441 = vmatprep.subr.mxu0 %v1095
    %1442 = vmatpush1.msra.mxu0 %v1094
    %1443 = vmatprep.subr.mxu0 %v1099
    %1444 = vmatpush1.msra.mxu0 %v1098
    %1445 = vmatprep.subr.mxu0 %v1103
    %1446 = vmatpush1.msra.mxu0 %v1102
    %1447 = vmatprep.subr.mxu0 %v1107
    %1448 = vmatpush1.msra.mxu0 %v1106
    %1449 = vmatprep.subr.mxu0 %v1111
    %1450 = vmatpush1.msra.mxu0 %v1110
    %1451 = vmatprep.subr.mxu0 %v1115
    %1452 = vmatpush1.msra.mxu0 %v1114
    %1453 = vmatprep.subr.mxu0 %v1119
    %1454 = vmatpush1.msra.mxu0 %v1118
    %1455 = vmatprep.subr.mxu0 %v1123
    %1456 = vmatpush1.msra.mxu0 %v1122
    %1457 = vmatprep.subr.mxu0 %v1127
    %1458 = vmatpush1.msra.mxu0 %v1126
    %1459 = vmatprep.subr.mxu0 %v1131
    %1460 = vmatpush1.msra.mxu0 %v1130
    %1461 = vmatprep.subr.mxu0 %v1135
    %1462 = vmatpush1.msra.mxu0 %v1134
    %1463 = vmatprep.mubr.f32.mxu0 0.0
    %1464 = vmatmul.mubr.f32.gmra.mrb[0].mxu0 %v1306
    %v1465 = vpop.f32.mrb[0].mxu0
    %v1466 = vadd.f32 %v1319, %v1465
    %v1467 = vpop.f32.mrb[0].mxu0
    %v1468 = vadd.f32 %v1323, %v1467
    %1469 = vdwg.mxu0
    %v1470 = vxor.u32 %v1395, 2147483648
    %v1471 = vmul.f32 %v1470, 1.442695
    %v1472 = vpow.pop %v1471
    %v1473 = vadd.f32 %v1472, 1.0
    %v1474 = vrcp.pop %v1473
    %v1475 = vmul.f32 1.0, %v1474
    %v1476 = vxor.u32 %v1397, 2147483648
    %v1477 = vmul.f32 %v1476, 1.442695
    %v1478 = vpow.pop %v1477
    %v1479 = vadd.f32 %v1478, 1.0
    %v1480 = vrcp.pop %v1479
    %v1481 = vmul.f32 1.0, %v1480
    %v1482 = vtanh.pop %v1466
    %v1483 = vxor.u32 %v1468, 2147483648
    %v1484 = vmul.f32 %v1483, 1.442695
    %v1485 = vpow.pop %v1484
    %v1486 = vadd.f32 %v1485, 1.0
    %v1487 = vrcp.pop %v1486
    %v1488 = vmul.f32 1.0, %v1487
    %v1489 = vmul.f32 %v1481, 0.0
    %v1490 = vmul.f32 %v1475, %v1482
    %v1491 = vadd.f32 %v1489, %v1490
    %v1492 = vtanh.pop %v1491
    %v1493 = vmul.f32 %v1488, %v1492
    %v1494 = vld [vmem:[%s12] sm:$0x1]
    %v1495 = vlaneseq
    %v1496 = vshrl.u32 %v1495, 7
    %v1497 = vsub.s32 0, %v1496
    %v1498 = vrot.slane %v1494, %v1497
    %v1499 = vmul.f32 %v1493, %v1498
    %vm1500 = vcmask 1041408
    %v1501 = vsel %vm1500, %v1499, 0.0
    %1502 = vadd.xlane.f32.xlu0 %v1501
    %v1503 = vpop.xlane.xlu0 %1502
    %v1504 = vld [vmem:[%s13] sm:$0x1]
    %1506 = vset.pattern.permute.xlu0 0
    %1507 = vperm.xlu0 %1506, %v1504
    %v1508 = vpop.permute.xlu0 %1507
    %v1509 = vlaneseq
    %v1510 = vshrl.u32 %v1509, 7
    %v1511 = vsub.s32 0, %v1510
    %v1512 = vrot.slane %v1508, %v1511
    %v1514 = vadd.f32 %v1503, %v1512
    %1516 = vset.pattern.permute.xlu0 0
    %1517 = vperm.xlu0 %1516, %v1514
    %v1518 = vpop.permute.xlu0 %1517
    %v1519 = vlaneseq
    %v1520 = vand.u32 %v1519, 127
    %v1521 = vlaneseq
    %v1522 = vshrl.u32 %v1521, 7
    %v1523 = vsub.s32 %v1520, %v1522
    %v1524 = vrot.slane %v1518, %v1523
    %vm1526 = vcmask 8192
    %1527 = vst.msk [vmem:[%s14] sm:$0x1] %vm1526, %v1524
    %1528 = vmatprep.subr.mxu0 %v945
    %1529 = vmatpush1.msra.mxu0 %v944
    %1530 = vmatprep.subr.mxu0 %v949
    %1531 = vmatpush1.msra.mxu0 %v948
    %1532 = vmatprep.subr.mxu0 %v953
    %1533 = vmatpush1.msra.mxu0 %v952
    %1534 = vmatprep.subr.mxu0 %v957
    %1535 = vmatpush1.msra.mxu0 %v956
    %1536 = vmatprep.subr.mxu0 %v961
    %1537 = vmatpush1.msra.mxu0 %v960
    %1538 = vmatprep.subr.mxu0 %v965
    %1539 = vmatpush1.msra.mxu0 %v964
    %1540 = vmatprep.subr.mxu0 %v969
    %1541 = vmatpush1.msra.mxu0 %v968
    %1542 = vmatprep.subr.mxu0 %v973
    %1543 = vmatpush1.msra.mxu0 %v972
    %1544 = vmatprep.subr.mxu0 %v977
    %1545 = vmatpush1.msra.mxu0 %v976
    %1546 = vmatprep.subr.mxu0 %v981
    %1547 = vmatpush1.msra.mxu0 %v980
    %1548 = vmatprep.subr.mxu0 %v985
    %1549 = vmatpush1.msra.mxu0 %v984
    %1550 = vmatprep.subr.mxu0 %v989
    %1551 = vmatpush1.msra.mxu0 %v988
    %1552 = vmatprep.subr.mxu0 %v993
    %1553 = vmatpush1.msra.mxu0 %v992
    %1554 = vmatprep.subr.mxu0 %v997
    %1555 = vmatpush1.msra.mxu0 %v996
    %1556 = vmatprep.subr.mxu0 %v1001
    %1557 = vmatpush1.msra.mxu0 %v1000
    %1558 = vmatprep.subr.mxu0 %v1005
    %1559 = vmatpush1.msra.mxu0 %v1004
    %1560 = vmatprep.subr.mxu0 0.0
    %1561 = vmatpush1.msra.mxu0 0.0
    %1562 = vmatprep.subr.mxu0 0.0
    %1563 = vmatpush1.msra.mxu0 0.0
    %1564 = vmatprep.subr.mxu0 0.0
    %1565 = vmatpush1.msra.mxu0 0.0
    %1566 = vmatprep.subr.mxu0 0.0
    %1567 = vmatpush1.msra.mxu0 0.0
    %1568 = vmatprep.subr.mxu0 0.0
    %1569 = vmatpush1.msra.mxu0 0.0
    %1570 = vmatprep.subr.mxu0 0.0
    %1571 = vmatpush1.msra.mxu0 0.0
    %1572 = vmatprep.subr.mxu0 0.0
    %1573 = vmatpush1.msra.mxu0 0.0
    %1574 = vmatprep.subr.mxu0 0.0
    %1575 = vmatpush1.msra.mxu0 0.0
    %1576 = vmatprep.subr.mxu0 0.0
    %1577 = vmatpush1.msra.mxu0 0.0
    %1578 = vmatprep.subr.mxu0 0.0
    %1579 = vmatpush1.msra.mxu0 0.0
    %1580 = vmatprep.subr.mxu0 0.0
    %1581 = vmatpush1.msra.mxu0 0.0
    %1582 = vmatprep.subr.mxu0 0.0
    %1583 = vmatpush1.msra.mxu0 0.0
    %1584 = vmatprep.subr.mxu0 0.0
    %1585 = vmatpush1.msra.mxu0 0.0
    %1586 = vmatprep.subr.mxu0 0.0
    %1587 = vmatpush1.msra.mxu0 0.0
    %1588 = vmatprep.subr.mxu0 0.0
    %1589 = vmatpush1.msra.mxu0 0.0
    %1590 = vmatprep.subr.mxu0 0.0
    %1591 = vmatpush1.msra.mxu0 0.0
    %1592 = vmatprep.mubr.f32.mxu0 0.0
    %1593 = vmatmul.mubr.f32.gmra.mrb[0].mxu0 %v1306
    %v1594 = vpop.f32.mrb[0].mxu0
    %v1595 = vadd.f32 0.0, %v1594
    %v1596 = vpop.f32.mrb[0].mxu0
    %v1597 = vadd.f32 0.0, %v1596
    %1598 = vdwg.mxu0
    %1599 = vmatprep.subr.mxu0 %v947
    %1600 = vmatpush1.msra.mxu0 %v946
    %1601 = vmatprep.subr.mxu0 %v951
    %1602 = vmatpush1.msra.mxu0 %v950
    %1603 = vmatprep.subr.mxu0 %v955
    %1604 = vmatpush1.msra.mxu0 %v954
    %1605 = vmatprep.subr.mxu0 %v959
    %1606 = vmatpush1.msra.mxu0 %v958
    %1607 = vmatprep.subr.mxu0 %v963
    %1608 = vmatpush1.msra.mxu0 %v962
    %1609 = vmatprep.subr.mxu0 %v967
    %1610 = vmatpush1.msra.mxu0 %v966
    %1611 = vmatprep.subr.mxu0 %v971
    %1612 = vmatpush1.msra.mxu0 %v970
    %1613 = vmatprep.subr.mxu0 %v975
    %1614 = vmatpush1.msra.mxu0 %v974
    %1615 = vmatprep.subr.mxu0 %v979
    %1616 = vmatpush1.msra.mxu0 %v978
    %1617 = vmatprep.subr.mxu0 %v983
    %1618 = vmatpush1.msra.mxu0 %v982
    %1619 = vmatprep.subr.mxu0 %v987
    %1620 = vmatpush1.msra.mxu0 %v986
    %1621 = vmatprep.subr.mxu0 %v991
    %1622 = vmatpush1.msra.mxu0 %v990
    %1623 = vmatprep.subr.mxu0 %v995
    %1624 = vmatpush1.msra.mxu0 %v994
    %1625 = vmatprep.subr.mxu0 %v999
    %1626 = vmatpush1.msra.mxu0 %v998
    %1627 = vmatprep.subr.mxu0 %v1003
    %1628 = vmatpush1.msra.mxu0 %v1002
    %1629 = vmatprep.subr.mxu0 %v1007
    %1630 = vmatpush1.msra.mxu0 %v1006
    %1631 = vmatprep.subr.mxu0 0.0
    %1632 = vmatpush1.msra.mxu0 0.0
    %1633 = vmatprep.subr.mxu0 0.0
    %1634 = vmatpush1.msra.mxu0 0.0
    %1635 = vmatprep.subr.mxu0 0.0
    %1636 = vmatpush1.msra.mxu0 0.0
    %1637 = vmatprep.subr.mxu0 0.0
    %1638 = vmatpush1.msra.mxu0 0.0
    %1639 = vmatprep.subr.mxu0 0.0
    %1640 = vmatpush1.msra.mxu0 0.0
    %1641 = vmatprep.subr.mxu0 0.0
    %1642 = vmatpush1.msra.mxu0 0.0
    %1643 = vmatprep.subr.mxu0 0.0
    %1644 = vmatpush1.msra.mxu0 0.0
    %1645 = vmatprep.subr.mxu0 0.0
    %1646 = vmatpush1.msra.mxu0 0.0
    %1647 = vmatprep.subr.mxu0 0.0
    %1648 = vmatpush1.msra.mxu0 0.0
    %1649 = vmatprep.subr.mxu0 0.0
    %1650 = vmatpush1.msra.mxu0 0.0
    %1651 = vmatprep.subr.mxu0 0.0
    %1652 = vmatpush1.msra.mxu0 0.0
    %1653 = vmatprep.subr.mxu0 0.0
    %1654 = vmatpush1.msra.mxu0 0.0
    %1655 = vmatprep.subr.mxu0 0.0
    %1656 = vmatpush1.msra.mxu0 0.0
    %1657 = vmatprep.subr.mxu0 0.0
    %1658 = vmatpush1.msra.mxu0 0.0
    %1659 = vmatprep.subr.mxu0 0.0
    %1660 = vmatpush1.msra.mxu0 0.0
    %1661 = vmatprep.subr.mxu0 0.0
    %1662 = vmatpush1.msra.mxu0 0.0
    %1663 = vmatprep.mubr.f32.mxu0 0.0
    %1664 = vmatmul.mubr.f32.gmra.mrb[0].mxu0 %v1306
    %v1665 = vpop.f32.mrb[0].mxu0
    %v1666 = vadd.f32 0.0, %v1665
    %v1667 = vpop.f32.mrb[0].mxu0
    %v1668 = vadd.f32 0.0, %v1667
    %1669 = vdwg.mxu0
    %v1670 = vadd.f32 %v869, %v1595
    %v1671 = vadd.f32 %v871, %v1597
    %v1672 = vadd.f32 %v940, %v1666
    %v1673 = vadd.f32 %v942, %v1668
    %v1674 = vxor.u32 %v1670, 2147483648
    %v1675 = vmul.f32 %v1674, 1.442695
    %v1676 = vpow.pop %v1675
    %v1677 = vadd.f32 %v1676, 1.0
    %v1678 = vrcp.pop %v1677
    %v1679 = vmul.f32 1.0, %v1678
    %v1680 = vxor.u32 %v1671, 2147483648
    %v1681 = vmul.f32 %v1680, 1.442695
    %v1682 = vpow.pop %v1681
    %v1683 = vadd.f32 %v1682, 1.0
    %v1684 = vrcp.pop %v1683
    %v1685 = vmul.f32 1.0, %v1684
    %v1686 = vtanh.pop %v1672
    %v1687 = vxor.u32 %v1673, 2147483648
    %v1688 = vmul.f32 %v1687, 1.442695
    %v1689 = vpow.pop %v1688
    %v1690 = vadd.f32 %v1689, 1.0
    %v1691 = vrcp.pop %v1690
    %v1692 = vmul.f32 1.0, %v1691
    %v1693 = vmul.f32 %v1685, %v1304
    %v1694 = vmul.f32 %v1679, %v1686
    %v1695 = vadd.f32 %v1693, %v1694
    %v1696 = vtanh.pop %v1695
    %v1697 = vmul.f32 %v1692, %v1696
    %1698 = vmatprep.subr.mxu0 %v1009
    %1699 = vmatpush1.msra.mxu0 %v1008
    %1700 = vmatprep.subr.mxu0 %v1013
    %1701 = vmatpush1.msra.mxu0 %v1012
    %1702 = vmatprep.subr.mxu0 %v1017
    %1703 = vmatpush1.msra.mxu0 %v1016
    %1704 = vmatprep.subr.mxu0 %v1021
    %1705 = vmatpush1.msra.mxu0 %v1020
    %1706 = vmatprep.subr.mxu0 %v1025
    %1707 = vmatpush1.msra.mxu0 %v1024
    %1708 = vmatprep.subr.mxu0 %v1029
    %1709 = vmatpush1.msra.mxu0 %v1028
    %1710 = vmatprep.subr.mxu0 %v1033
    %1711 = vmatpush1.msra.mxu0 %v1032
    %1712 = vmatprep.subr.mxu0 %v1037
    %1713 = vmatpush1.msra.mxu0 %v1036
    %1714 = vmatprep.subr.mxu0 %v1041
    %1715 = vmatpush1.msra.mxu0 %v1040
    %1716 = vmatprep.subr.mxu0 %v1045
    %1717 = vmatpush1.msra.mxu0 %v1044
    %1718 = vmatprep.subr.mxu0 %v1049
    %1719 = vmatpush1.msra.mxu0 %v1048
    %1720 = vmatprep.subr.mxu0 %v1053
    %1721 = vmatpush1.msra.mxu0 %v1052
    %1722 = vmatprep.subr.mxu0 %v1057
    %1723 = vmatpush1.msra.mxu0 %v1056
    %1724 = vmatprep.subr.mxu0 %v1061
    %1725 = vmatpush1.msra.mxu0 %v1060
    %1726 = vmatprep.subr.mxu0 %v1065
    %1727 = vmatpush1.msra.mxu0 %v1064
    %1728 = vmatprep.subr.mxu0 %v1069
    %1729 = vmatpush1.msra.mxu0 %v1068
    %1730 = vmatprep.subr.mxu0 %v1073
    %1731 = vmatpush1.msra.mxu0 %v1072
    %1732 = vmatprep.subr.mxu0 %v1077
    %1733 = vmatpush1.msra.mxu0 %v1076
    %1734 = vmatprep.subr.mxu0 %v1081
    %1735 = vmatpush1.msra.mxu0 %v1080
    %1736 = vmatprep.subr.mxu0 %v1085
    %1737 = vmatpush1.msra.mxu0 %v1084
    %1738 = vmatprep.subr.mxu0 %v1089
    %1739 = vmatpush1.msra.mxu0 %v1088
    %1740 = vmatprep.subr.mxu0 %v1093
    %1741 = vmatpush1.msra.mxu0 %v1092
    %1742 = vmatprep.subr.mxu0 %v1097
    %1743 = vmatpush1.msra.mxu0 %v1096
    %1744 = vmatprep.subr.mxu0 %v1101
    %1745 = vmatpush1.msra.mxu0 %v1100
    %1746 = vmatprep.subr.mxu0 %v1105
    %1747 = vmatpush1.msra.mxu0 %v1104
    %1748 = vmatprep.subr.mxu0 %v1109
    %1749 = vmatpush1.msra.mxu0 %v1108
    %1750 = vmatprep.subr.mxu0 %v1113
    %1751 = vmatpush1.msra.mxu0 %v1112
    %1752 = vmatprep.subr.mxu0 %v1117
    %1753 = vmatpush1.msra.mxu0 %v1116
    %1754 = vmatprep.subr.mxu0 %v1121
    %1755 = vmatpush1.msra.mxu0 %v1120
    %1756 = vmatprep.subr.mxu0 %v1125
    %1757 = vmatpush1.msra.mxu0 %v1124
    %1758 = vmatprep.subr.mxu0 %v1129
    %1759 = vmatpush1.msra.mxu0 %v1128
    %1760 = vmatprep.subr.mxu0 %v1133
    %1761 = vmatpush1.msra.mxu0 %v1132
    %1762 = vmatprep.mubr.f32.mxu0 %v1493
    %1763 = vmatmul.mubr.f32.gmra.mrb[0].mxu0 %v1697
    %v1764 = vpop.f32.mrb[0].mxu0
    %v1765 = vadd.f32 %v1311, %v1764
    %v1766 = vpop.f32.mrb[0].mxu0
    %v1767 = vadd.f32 %v1315, %v1766
    %1768 = vdwg.mxu0
    %1769 = vmatprep.subr.mxu0 %v1011
    %1770 = vmatpush1.msra.mxu0 %v1010
    %1771 = vmatprep.subr.mxu0 %v1015
    %1772 = vmatpush1.msra.mxu0 %v1014
    %1773 = vmatprep.subr.mxu0 %v1019
    %1774 = vmatpush1.msra.mxu0 %v1018
    %1775 = vmatprep.subr.mxu0 %v1023
    %1776 = vmatpush1.msra.mxu0 %v1022
    %1777 = vmatprep.subr.mxu0 %v1027
    %1778 = vmatpush1.msra.mxu0 %v1026
    %1779 = vmatprep.subr.mxu0 %v1031
    %1780 = vmatpush1.msra.mxu0 %v1030
    %1781 = vmatprep.subr.mxu0 %v1035
    %1782 = vmatpush1.msra.mxu0 %v1034
    %1783 = vmatprep.subr.mxu0 %v1039
    %1784 = vmatpush1.msra.mxu0 %v1038
    %1785 = vmatprep.subr.mxu0 %v1043
    %1786 = vmatpush1.msra.mxu0 %v1042
    %1787 = vmatprep.subr.mxu0 %v1047
    %1788 = vmatpush1.msra.mxu0 %v1046
    %1789 = vmatprep.subr.mxu0 %v1051
    %1790 = vmatpush1.msra.mxu0 %v1050
    %1791 = vmatprep.subr.mxu0 %v1055
    %1792 = vmatpush1.msra.mxu0 %v1054
    %1793 = vmatprep.subr.mxu0 %v1059
    %1794 = vmatpush1.msra.mxu0 %v1058
    %1795 = vmatprep.subr.mxu0 %v1063
    %1796 = vmatpush1.msra.mxu0 %v1062
    %1797 = vmatprep.subr.mxu0 %v1067
    %1798 = vmatpush1.msra.mxu0 %v1066
    %1799 = vmatprep.subr.mxu0 %v1071
    %1800 = vmatpush1.msra.mxu0 %v1070
    %1801 = vmatprep.subr.mxu0 %v1075
    %1802 = vmatpush1.msra.mxu0 %v1074
    %1803 = vmatprep.subr.mxu0 %v1079
    %1804 = vmatpush1.msra.mxu0 %v1078
    %1805 = vmatprep.subr.mxu0 %v1083
    %1806 = vmatpush1.msra.mxu0 %v1082
    %1807 = vmatprep.subr.mxu0 %v1087
    %1808 = vmatpush1.msra.mxu0 %v1086
    %1809 = vmatprep.subr.mxu0 %v1091
    %1810 = vmatpush1.msra.mxu0 %v1090
    %1811 = vmatprep.subr.mxu0 %v1095
    %1812 = vmatpush1.msra.mxu0 %v1094
    %1813 = vmatprep.subr.mxu0 %v1099
    %1814 = vmatpush1.msra.mxu0 %v1098
    %1815 = vmatprep.subr.mxu0 %v1103
    %1816 = vmatpush1.msra.mxu0 %v1102
    %1817 = vmatprep.subr.mxu0 %v1107
    %1818 = vmatpush1.msra.mxu0 %v1106
    %1819 = vmatprep.subr.mxu0 %v1111
    %1820 = vmatpush1.msra.mxu0 %v1110
    %1821 = vmatprep.subr.mxu0 %v1115
    %1822 = vmatpush1.msra.mxu0 %v1114
    %1823 = vmatprep.subr.mxu0 %v1119
    %1824 = vmatpush1.msra.mxu0 %v1118
    %1825 = vmatprep.subr.mxu0 %v1123
    %1826 = vmatpush1.msra.mxu0 %v1122
    %1827 = vmatprep.subr.mxu0 %v1127
    %1828 = vmatpush1.msra.mxu0 %v1126
    %1829 = vmatprep.subr.mxu0 %v1131
    %1830 = vmatpush1.msra.mxu0 %v1130
    %1831 = vmatprep.subr.mxu0 %v1135
    %1832 = vmatpush1.msra.mxu0 %v1134
    %1833 = vmatprep.mubr.f32.mxu0 %v1493
    %1834 = vmatmul.mubr.f32.gmra.mrb[0].mxu0 %v1697
    %v1835 = vpop.f32.mrb[0].mxu0
    %v1836 = vadd.f32 %v1319, %v1835
    %v1837 = vpop.f32.mrb[0].mxu0
    %v1838 = vadd.f32 %v1323, %v1837
    %1839 = vdwg.mxu0
    %v1840 = vxor.u32 %v1765, 2147483648
    %v1841 = vmul.f32 %v1840, 1.442695
    %v1842 = vpow.pop %v1841
    %v1843 = vadd.f32 %v1842, 1.0
    %v1844 = vrcp.pop %v1843
    %v1845 = vmul.f32 1.0, %v1844
    %v1846 = vxor.u32 %v1767, 2147483648
    %v1847 = vmul.f32 %v1846, 1.442695
    %v1848 = vpow.pop %v1847
    %v1849 = vadd.f32 %v1848, 1.0
    %v1850 = vrcp.pop %v1849
    %v1851 = vmul.f32 1.0, %v1850
    %v1852 = vtanh.pop %v1836
    %v1853 = vxor.u32 %v1838, 2147483648
    %v1854 = vmul.f32 %v1853, 1.442695
    %v1855 = vpow.pop %v1854
    %v1856 = vadd.f32 %v1855, 1.0
    %v1857 = vrcp.pop %v1856
    %v1858 = vmul.f32 1.0, %v1857
    %v1859 = vmul.f32 %v1851, %v1491
    %v1860 = vmul.f32 %v1845, %v1852
    %v1861 = vadd.f32 %v1859, %v1860
    %v1862 = vtanh.pop %v1861
    %v1863 = vmul.f32 %v1858, %v1862
    %v1864 = vld [vmem:[%s12 + $0x1] sm:$0x1]
    %v1865 = vlaneseq
    %v1866 = vshrl.u32 %v1865, 7
    %v1867 = vsub.s32 0, %v1866
    %v1868 = vrot.slane %v1864, %v1867
    %v1869 = vmul.f32 %v1863, %v1868
    %v1870 = vsel %vm1500, %v1869, 0.0
    %1871 = vadd.xlane.f32.xlu0 %v1870
    %v1872 = vpop.xlane.xlu0 %1871
    %v1873 = vld [vmem:[%s13 + $0x1] sm:$0x1]
    %1875 = vset.pattern.permute.xlu0 0
    %1876 = vperm.xlu0 %1875, %v1873
    %v1877 = vpop.permute.xlu0 %1876
    %v1878 = vlaneseq
    %v1879 = vshrl.u32 %v1878, 7
    %v1880 = vsub.s32 0, %v1879
    %v1881 = vrot.slane %v1877, %v1880
    %v1883 = vadd.f32 %v1872, %v1881
    %1885 = vset.pattern.permute.xlu0 0
    %1886 = vperm.xlu0 %1885, %v1883
    %v1887 = vpop.permute.xlu0 %1886
    %v1888 = vlaneseq
    %v1889 = vshrl.u32 %v1888, 7
    %v1890 = vsub.s32 %v1520, %v1889
    %v1891 = vrot.slane %v1887, %v1890
    %1893 = vst.msk [vmem:[%s14 + $0x1] sm:$0x1] %vm1526, %v1891
    %1894 = vmatprep.subr.mxu0 %v945
    %1895 = vmatpush1.msra.mxu0 %v944
    %1896 = vmatprep.subr.mxu0 %v949
    %1897 = vmatpush1.msra.mxu0 %v948
    %1898 = vmatprep.subr.mxu0 %v953
    %1899 = vmatpush1.msra.mxu0 %v952
    %1900 = vmatprep.subr.mxu0 %v957
    %1901 = vmatpush1.msra.mxu0 %v956
    %1902 = vmatprep.subr.mxu0 %v961
    %1903 = vmatpush1.msra.mxu0 %v960
    %1904 = vmatprep.subr.mxu0 %v965
    %1905 = vmatpush1.msra.mxu0 %v964
    %1906 = vmatprep.subr.mxu0 %v969
    %1907 = vmatpush1.msra.mxu0 %v968
    %1908 = vmatprep.subr.mxu0 %v973
    %1909 = vmatpush1.msra.mxu0 %v972
    %1910 = vmatprep.subr.mxu0 %v977
    %1911 = vmatpush1.msra.mxu0 %v976
    %1912 = vmatprep.subr.mxu0 %v981
    %1913 = vmatpush1.msra.mxu0 %v980
    %1914 = vmatprep.subr.mxu0 %v985
    %1915 = vmatpush1.msra.mxu0 %v984
    %1916 = vmatprep.subr.mxu0 %v989
    %1917 = vmatpush1.msra.mxu0 %v988
    %1918 = vmatprep.subr.mxu0 %v993
    %1919 = vmatpush1.msra.mxu0 %v992
    %1920 = vmatprep.subr.mxu0 %v997
    %1921 = vmatpush1.msra.mxu0 %v996
    %1922 = vmatprep.subr.mxu0 %v1001
    %1923 = vmatpush1.msra.mxu0 %v1000
    %1924 = vmatprep.subr.mxu0 %v1005
    %1925 = vmatpush1.msra.mxu0 %v1004
    %1926 = vmatprep.subr.mxu0 0.0
    %1927 = vmatpush1.msra.mxu0 0.0
    %1928 = vmatprep.subr.mxu0 0.0
    %1929 = vmatpush1.msra.mxu0 0.0
    %1930 = vmatprep.subr.mxu0 0.0
    %1931 = vmatpush1.msra.mxu0 0.0
    %1932 = vmatprep.subr.mxu0 0.0
    %1933 = vmatpush1.msra.mxu0 0.0
    %1934 = vmatprep.subr.mxu0 0.0
    %1935 = vmatpush1.msra.mxu0 0.0
    %1936 = vmatprep.subr.mxu0 0.0
    %1937 = vmatpush1.msra.mxu0 0.0
    %1938 = vmatprep.subr.mxu0 0.0
    %1939 = vmatpush1.msra.mxu0 0.0
    %1940 = vmatprep.subr.mxu0 0.0
    %1941 = vmatpush1.msra.mxu0 0.0
    %1942 = vmatprep.subr.mxu0 0.0
    %1943 = vmatpush1.msra.mxu0 0.0
    %1944 = vmatprep.subr.mxu0 0.0
    %1945 = vmatpush1.msra.mxu0 0.0
    %1946 = vmatprep.subr.mxu0 0.0
    %1947 = vmatpush1.msra.mxu0 0.0
    %1948 = vmatprep.subr.mxu0 0.0
    %1949 = vmatpush1.msra.mxu0 0.0
    %1950 = vmatprep.subr.mxu0 0.0
    %1951 = vmatpush1.msra.mxu0 0.0
    %1952 = vmatprep.subr.mxu0 0.0
    %1953 = vmatpush1.msra.mxu0 0.0
    %1954 = vmatprep.subr.mxu0 0.0
    %1955 = vmatpush1.msra.mxu0 0.0
    %1956 = vmatprep.subr.mxu0 0.0
    %1957 = vmatpush1.msra.mxu0 0.0
    %1958 = vmatprep.mubr.f32.mxu0 0.0
    %1959 = vmatmul.mubr.f32.gmra.mrb[0].mxu0 %v1697
    %v1960 = vpop.f32.mrb[0].mxu0
    %v1961 = vadd.f32 0.0, %v1960
    %v1962 = vpop.f32.mrb[0].mxu0
    %v1963 = vadd.f32 0.0, %v1962
    %1964 = vdwg.mxu0
    %1965 = vmatprep.subr.mxu0 %v947
    %1966 = vmatpush1.msra.mxu0 %v946
    %1967 = vmatprep.subr.mxu0 %v951
    %1968 = vmatpush1.msra.mxu0 %v950
    %1969 = vmatprep.subr.mxu0 %v955
    %1970 = vmatpush1.msra.mxu0 %v954
    %1971 = vmatprep.subr.mxu0 %v959
    %1972 = vmatpush1.msra.mxu0 %v958
    %1973 = vmatprep.subr.mxu0 %v963
    %1974 = vmatpush1.msra.mxu0 %v962
    %1975 = vmatprep.subr.mxu0 %v967
    %1976 = vmatpush1.msra.mxu0 %v966
    %1977 = vmatprep.subr.mxu0 %v971
    %1978 = vmatpush1.msra.mxu0 %v970
    %1979 = vmatprep.subr.mxu0 %v975
    %1980 = vmatpush1.msra.mxu0 %v974
    %1981 = vmatprep.subr.mxu0 %v979
    %1982 = vmatpush1.msra.mxu0 %v978
    %1983 = vmatprep.subr.mxu0 %v983
    %1984 = vmatpush1.msra.mxu0 %v982
    %1985 = vmatprep.subr.mxu0 %v987
    %1986 = vmatpush1.msra.mxu0 %v986
    %1987 = vmatprep.subr.mxu0 %v991
    %1988 = vmatpush1.msra.mxu0 %v990
    %1989 = vmatprep.subr.mxu0 %v995
    %1990 = vmatpush1.msra.mxu0 %v994
    %1991 = vmatprep.subr.mxu0 %v999
    %1992 = vmatpush1.msra.mxu0 %v998
    %1993 = vmatprep.subr.mxu0 %v1003
    %1994 = vmatpush1.msra.mxu0 %v1002
    %1995 = vmatprep.subr.mxu0 %v1007
    %1996 = vmatpush1.msra.mxu0 %v1006
    %1997 = vmatprep.subr.mxu0 0.0
    %1998 = vmatpush1.msra.mxu0 0.0
    %1999 = vmatprep.subr.mxu0 0.0
    %2000 = vmatpush1.msra.mxu0 0.0
    %2001 = vmatprep.subr.mxu0 0.0
    %2002 = vmatpush1.msra.mxu0 0.0
    %2003 = vmatprep.subr.mxu0 0.0
    %2004 = vmatpush1.msra.mxu0 0.0
    %2005 = vmatprep.subr.mxu0 0.0
    %2006 = vmatpush1.msra.mxu0 0.0
    %2007 = vmatprep.subr.mxu0 0.0
    %2008 = vmatpush1.msra.mxu0 0.0
    %2009 = vmatprep.subr.mxu0 0.0
    %2010 = vmatpush1.msra.mxu0 0.0
    %2011 = vmatprep.subr.mxu0 0.0
    %2012 = vmatpush1.msra.mxu0 0.0
    %2013 = vmatprep.subr.mxu0 0.0
    %2014 = vmatpush1.msra.mxu0 0.0
    %2015 = vmatprep.subr.mxu0 0.0
    %2016 = vmatpush1.msra.mxu0 0.0
    %2017 = vmatprep.subr.mxu0 0.0
    %2018 = vmatpush1.msra.mxu0 0.0
    %2019 = vmatprep.subr.mxu0 0.0
    %2020 = vmatpush1.msra.mxu0 0.0
    %2021 = vmatprep.subr.mxu0 0.0
    %2022 = vmatpush1.msra.mxu0 0.0
    %2023 = vmatprep.subr.mxu0 0.0
    %2024 = vmatpush1.msra.mxu0 0.0
    %2025 = vmatprep.subr.mxu0 0.0
    %2026 = vmatpush1.msra.mxu0 0.0
    %2027 = vmatprep.subr.mxu0 0.0
    %2028 = vmatpush1.msra.mxu0 0.0
    %2029 = vmatprep.mubr.f32.mxu0 0.0
    %2030 = vmatmul.mubr.f32.gmra.mrb[0].mxu0 %v1697
    %v2031 = vpop.f32.mrb[0].mxu0
    %v2032 = vadd.f32 0.0, %v2031
    %v2033 = vpop.f32.mrb[0].mxu0
    %v2034 = vadd.f32 0.0, %v2033
    %2035 = vdwg.mxu0
    %v2036 = vadd.f32 %v869, %v1961
    %v2037 = vadd.f32 %v871, %v1963
    %v2038 = vadd.f32 %v940, %v2032
    %v2039 = vadd.f32 %v942, %v2034
    %v2040 = vxor.u32 %v2036, 2147483648
    %v2041 = vmul.f32 %v2040, 1.442695
    %v2042 = vpow.pop %v2041
    %v2043 = vadd.f32 %v2042, 1.0
    %v2044 = vrcp.pop %v2043
    %v2045 = vmul.f32 1.0, %v2044
    %v2046 = vxor.u32 %v2037, 2147483648
    %v2047 = vmul.f32 %v2046, 1.442695
    %v2048 = vpow.pop %v2047
    %v2049 = vadd.f32 %v2048, 1.0
    %v2050 = vrcp.pop %v2049
    %v2051 = vmul.f32 1.0, %v2050
    %v2052 = vtanh.pop %v2038
    %v2053 = vxor.u32 %v2039, 2147483648
    %v2054 = vmul.f32 %v2053, 1.442695
    %v2055 = vpow.pop %v2054
    %v2056 = vadd.f32 %v2055, 1.0
    %v2057 = vrcp.pop %v2056
    %v2058 = vmul.f32 1.0, %v2057
    %v2059 = vmul.f32 %v2051, %v1695
    %v2060 = vmul.f32 %v2045, %v2052
    %v2061 = vadd.f32 %v2059, %v2060
    %v2062 = vtanh.pop %v2061
    %v2063 = vmul.f32 %v2058, %v2062
    %2064 = vmatprep.subr.mxu0 %v1009
    %2065 = vmatpush1.msra.mxu0 %v1008
    %2066 = vmatprep.subr.mxu0 %v1013
    %2067 = vmatpush1.msra.mxu0 %v1012
    %2068 = vmatprep.subr.mxu0 %v1017
    %2069 = vmatpush1.msra.mxu0 %v1016
    %2070 = vmatprep.subr.mxu0 %v1021
    %2071 = vmatpush1.msra.mxu0 %v1020
    %2072 = vmatprep.subr.mxu0 %v1025
    %2073 = vmatpush1.msra.mxu0 %v1024
    %2074 = vmatprep.subr.mxu0 %v1029
    %2075 = vmatpush1.msra.mxu0 %v1028
    %2076 = vmatprep.subr.mxu0 %v1033
    %2077 = vmatpush1.msra.mxu0 %v1032
    %2078 = vmatprep.subr.mxu0 %v1037
    %2079 = vmatpush1.msra.mxu0 %v1036
    %2080 = vmatprep.subr.mxu0 %v1041
    %2081 = vmatpush1.msra.mxu0 %v1040
    %2082 = vmatprep.subr.mxu0 %v1045
    %2083 = vmatpush1.msra.mxu0 %v1044
    %2084 = vmatprep.subr.mxu0 %v1049
    %2085 = vmatpush1.msra.mxu0 %v1048
    %2086 = vmatprep.subr.mxu0 %v1053
    %2087 = vmatpush1.msra.mxu0 %v1052
    %2088 = vmatprep.subr.mxu0 %v1057
    %2089 = vmatpush1.msra.mxu0 %v1056
    %2090 = vmatprep.subr.mxu0 %v1061
    %2091 = vmatpush1.msra.mxu0 %v1060
    %2092 = vmatprep.subr.mxu0 %v1065
    %2093 = vmatpush1.msra.mxu0 %v1064
    %2094 = vmatprep.subr.mxu0 %v1069
    %2095 = vmatpush1.msra.mxu0 %v1068
    %2096 = vmatprep.subr.mxu0 %v1073
    %2097 = vmatpush1.msra.mxu0 %v1072
    %2098 = vmatprep.subr.mxu0 %v1077
    %2099 = vmatpush1.msra.mxu0 %v1076
    %2100 = vmatprep.subr.mxu0 %v1081
    %2101 = vmatpush1.msra.mxu0 %v1080
    %2102 = vmatprep.subr.mxu0 %v1085
    %2103 = vmatpush1.msra.mxu0 %v1084
    %2104 = vmatprep.subr.mxu0 %v1089
    %2105 = vmatpush1.msra.mxu0 %v1088
    %2106 = vmatprep.subr.mxu0 %v1093
    %2107 = vmatpush1.msra.mxu0 %v1092
    %2108 = vmatprep.subr.mxu0 %v1097
    %2109 = vmatpush1.msra.mxu0 %v1096
    %2110 = vmatprep.subr.mxu0 %v1101
    %2111 = vmatpush1.msra.mxu0 %v1100
    %2112 = vmatprep.subr.mxu0 %v1105
    %2113 = vmatpush1.msra.mxu0 %v1104
    %2114 = vmatprep.subr.mxu0 %v1109
    %2115 = vmatpush1.msra.mxu0 %v1108
    %2116 = vmatprep.subr.mxu0 %v1113
    %2117 = vmatpush1.msra.mxu0 %v1112
    %2118 = vmatprep.subr.mxu0 %v1117
    %2119 = vmatpush1.msra.mxu0 %v1116
    %2120 = vmatprep.subr.mxu0 %v1121
    %2121 = vmatpush1.msra.mxu0 %v1120
    %2122 = vmatprep.subr.mxu0 %v1125
    %2123 = vmatpush1.msra.mxu0 %v1124
    %2124 = vmatprep.subr.mxu0 %v1129
    %2125 = vmatpush1.msra.mxu0 %v1128
    %2126 = vmatprep.subr.mxu0 %v1133
    %2127 = vmatpush1.msra.mxu0 %v1132
    %2128 = vmatprep.mubr.f32.mxu0 %v1863
    %2129 = vmatmul.mubr.f32.gmra.mrb[0].mxu0 %v2063
    %v2130 = vpop.f32.mrb[0].mxu0
    %v2131 = vadd.f32 %v1311, %v2130
    %v2132 = vpop.f32.mrb[0].mxu0
    %v2133 = vadd.f32 %v1315, %v2132
    %2134 = vdwg.mxu0
    %2135 = vmatprep.subr.mxu0 %v1011
    %2136 = vmatpush1.msra.mxu0 %v1010
    %2137 = vmatprep.subr.mxu0 %v1015
    %2138 = vmatpush1.msra.mxu0 %v1014
    %2139 = vmatprep.subr.mxu0 %v1019
    %2140 = vmatpush1.msra.mxu0 %v1018
    %2141 = vmatprep.subr.mxu0 %v1023
    %2142 = vmatpush1.msra.mxu0 %v1022
    %2143 = vmatprep.subr.mxu0 %v1027
    %2144 = vmatpush1.msra.mxu0 %v1026
    %2145 = vmatprep.subr.mxu0 %v1031
    %2146 = vmatpush1.msra.mxu0 %v1030
    %2147 = vmatprep.subr.mxu0 %v1035
    %2148 = vmatpush1.msra.mxu0 %v1034
    %2149 = vmatprep.subr.mxu0 %v1039
    %2150 = vmatpush1.msra.mxu0 %v1038
    %2151 = vmatprep.subr.mxu0 %v1043
    %2152 = vmatpush1.msra.mxu0 %v1042
    %2153 = vmatprep.subr.mxu0 %v1047
    %2154 = vmatpush1.msra.mxu0 %v1046
    %2155 = vmatprep.subr.mxu0 %v1051
    %2156 = vmatpush1.msra.mxu0 %v1050
    %2157 = vmatprep.subr.mxu0 %v1055
    %2158 = vmatpush1.msra.mxu0 %v1054
    %2159 = vmatprep.subr.mxu0 %v1059
    %2160 = vmatpush1.msra.mxu0 %v1058
    %2161 = vmatprep.subr.mxu0 %v1063
    %2162 = vmatpush1.msra.mxu0 %v1062
    %2163 = vmatprep.subr.mxu0 %v1067
    %2164 = vmatpush1.msra.mxu0 %v1066
    %2165 = vmatprep.subr.mxu0 %v1071
    %2166 = vmatpush1.msra.mxu0 %v1070
    %2167 = vmatprep.subr.mxu0 %v1075
    %2168 = vmatpush1.msra.mxu0 %v1074
    %2169 = vmatprep.subr.mxu0 %v1079
    %2170 = vmatpush1.msra.mxu0 %v1078
    %2171 = vmatprep.subr.mxu0 %v1083
    %2172 = vmatpush1.msra.mxu0 %v1082
    %2173 = vmatprep.subr.mxu0 %v1087
    %2174 = vmatpush1.msra.mxu0 %v1086
    %2175 = vmatprep.subr.mxu0 %v1091
    %2176 = vmatpush1.msra.mxu0 %v1090
    %2177 = vmatprep.subr.mxu0 %v1095
    %2178 = vmatpush1.msra.mxu0 %v1094
    %2179 = vmatprep.subr.mxu0 %v1099
    %2180 = vmatpush1.msra.mxu0 %v1098
    %2181 = vmatprep.subr.mxu0 %v1103
    %2182 = vmatpush1.msra.mxu0 %v1102
    %2183 = vmatprep.subr.mxu0 %v1107
    %2184 = vmatpush1.msra.mxu0 %v1106
    %2185 = vmatprep.subr.mxu0 %v1111
    %2186 = vmatpush1.msra.mxu0 %v1110
    %2187 = vmatprep.subr.mxu0 %v1115
    %2188 = vmatpush1.msra.mxu0 %v1114
    %2189 = vmatprep.subr.mxu0 %v1119
    %2190 = vmatpush1.msra.mxu0 %v1118
    %2191 = vmatprep.subr.mxu0 %v1123
    %2192 = vmatpush1.msra.mxu0 %v1122
    %2193 = vmatprep.subr.mxu0 %v1127
    %2194 = vmatpush1.msra.mxu0 %v1126
    %2195 = vmatprep.subr.mxu0 %v1131
    %2196 = vmatpush1.msra.mxu0 %v1130
    %2197 = vmatprep.subr.mxu0 %v1135
    %2198 = vmatpush1.msra.mxu0 %v1134
    %2199 = vmatprep.mubr.f32.mxu0 %v1863
    %2200 = vmatmul.mubr.f32.gmra.mrb[0].mxu0 %v2063
    %v2201 = vpop.f32.mrb[0].mxu0
    %v2202 = vadd.f32 %v1319, %v2201
    %v2203 = vpop.f32.mrb[0].mxu0
    %v2204 = vadd.f32 %v1323, %v2203
    %2205 = vdwg.mxu0
    %v2206 = vxor.u32 %v2131, 2147483648
    %v2207 = vmul.f32 %v2206, 1.442695
    %v2208 = vpow.pop %v2207
    %v2209 = vadd.f32 %v2208, 1.0
    %v2210 = vrcp.pop %v2209
    %v2211 = vmul.f32 1.0, %v2210
    %v2212 = vxor.u32 %v2133, 2147483648
    %v2213 = vmul.f32 %v2212, 1.442695
    %v2214 = vpow.pop %v2213
    %v2215 = vadd.f32 %v2214, 1.0
    %v2216 = vrcp.pop %v2215
    %v2217 = vmul.f32 1.0, %v2216
    %v2218 = vtanh.pop %v2202
    %v2219 = vxor.u32 %v2204, 2147483648
    %v2220 = vmul.f32 %v2219, 1.442695
    %v2221 = vpow.pop %v2220
    %v2222 = vadd.f32 %v2221, 1.0
    %v2223 = vrcp.pop %v2222
    %v2224 = vmul.f32 1.0, %v2223
    %v2225 = vmul.f32 %v2217, %v1861
    %v2226 = vmul.f32 %v2211, %v2218
    %v2227 = vadd.f32 %v2225, %v2226
    %v2228 = vtanh.pop %v2227
    %v2229 = vmul.f32 %v2224, %v2228
    %v2230 = vld [vmem:[%s12 + $0x2] sm:$0x1]
    %v2231 = vlaneseq
    %v2232 = vshrl.u32 %v2231, 7
    %v2233 = vsub.s32 0, %v2232
    %v2234 = vrot.slane %v2230, %v2233
    %v2235 = vmul.f32 %v2229, %v2234
    %v2236 = vsel %vm1500, %v2235, 0.0
    %2237 = vadd.xlane.f32.xlu0 %v2236
    %v2238 = vpop.xlane.xlu0 %2237
    %v2239 = vld [vmem:[%s13 + $0x2] sm:$0x1]
    %2241 = vset.pattern.permute.xlu0 0
    %2242 = vperm.xlu0 %2241, %v2239
    %v2243 = vpop.permute.xlu0 %2242
    %v2244 = vlaneseq
    %v2245 = vshrl.u32 %v2244, 7
    %v2246 = vsub.s32 0, %v2245
    %v2247 = vrot.slane %v2243, %v2246
    %v2249 = vadd.f32 %v2238, %v2247
    %2251 = vset.pattern.permute.xlu0 0
    %2252 = vperm.xlu0 %2251, %v2249
    %v2253 = vpop.permute.xlu0 %2252
    %v2254 = vlaneseq
    %v2255 = vshrl.u32 %v2254, 7
    %v2256 = vsub.s32 %v1520, %v2255
    %v2257 = vrot.slane %v2253, %v2256
    %2259 = vst.msk [vmem:[%s14 + $0x2] sm:$0x1] %vm1526, %v2257
    %2260 = vmatprep.subr.mxu0 %v945
    %2261 = vmatpush1.msra.mxu0 %v944
    %2262 = vmatprep.subr.mxu0 %v949
    %2263 = vmatpush1.msra.mxu0 %v948
    %2264 = vmatprep.subr.mxu0 %v953
    %2265 = vmatpush1.msra.mxu0 %v952
    %2266 = vmatprep.subr.mxu0 %v957
    %2267 = vmatpush1.msra.mxu0 %v956
    %2268 = vmatprep.subr.mxu0 %v961
    %2269 = vmatpush1.msra.mxu0 %v960
    %2270 = vmatprep.subr.mxu0 %v965
    %2271 = vmatpush1.msra.mxu0 %v964
    %2272 = vmatprep.subr.mxu0 %v969
    %2273 = vmatpush1.msra.mxu0 %v968
    %2274 = vmatprep.subr.mxu0 %v973
    %2275 = vmatpush1.msra.mxu0 %v972
    %2276 = vmatprep.subr.mxu0 %v977
    %2277 = vmatpush1.msra.mxu0 %v976
    %2278 = vmatprep.subr.mxu0 %v981
    %2279 = vmatpush1.msra.mxu0 %v980
    %2280 = vmatprep.subr.mxu0 %v985
    %2281 = vmatpush1.msra.mxu0 %v984
    %2282 = vmatprep.subr.mxu0 %v989
    %2283 = vmatpush1.msra.mxu0 %v988
    %2284 = vmatprep.subr.mxu0 %v993
    %2285 = vmatpush1.msra.mxu0 %v992
    %2286 = vmatprep.subr.mxu0 %v997
    %2287 = vmatpush1.msra.mxu0 %v996
    %2288 = vmatprep.subr.mxu0 %v1001
    %2289 = vmatpush1.msra.mxu0 %v1000
    %2290 = vmatprep.subr.mxu0 %v1005
    %2291 = vmatpush1.msra.mxu0 %v1004
    %2292 = vmatprep.subr.mxu0 0.0
    %2293 = vmatpush1.msra.mxu0 0.0
    %2294 = vmatprep.subr.mxu0 0.0
    %2295 = vmatpush1.msra.mxu0 0.0
    %2296 = vmatprep.subr.mxu0 0.0
    %2297 = vmatpush1.msra.mxu0 0.0
    %2298 = vmatprep.subr.mxu0 0.0
    %2299 = vmatpush1.msra.mxu0 0.0
    %2300 = vmatprep.subr.mxu0 0.0
    %2301 = vmatpush1.msra.mxu0 0.0
    %2302 = vmatprep.subr.mxu0 0.0
    %2303 = vmatpush1.msra.mxu0 0.0
    %2304 = vmatprep.subr.mxu0 0.0
    %2305 = vmatpush1.msra.mxu0 0.0
    %2306 = vmatprep.subr.mxu0 0.0
    %2307 = vmatpush1.msra.mxu0 0.0
    %2308 = vmatprep.subr.mxu0 0.0
    %2309 = vmatpush1.msra.mxu0 0.0
    %2310 = vmatprep.subr.mxu0 0.0
    %2311 = vmatpush1.msra.mxu0 0.0
    %2312 = vmatprep.subr.mxu0 0.0
    %2313 = vmatpush1.msra.mxu0 0.0
    %2314 = vmatprep.subr.mxu0 0.0
    %2315 = vmatpush1.msra.mxu0 0.0
    %2316 = vmatprep.subr.mxu0 0.0
    %2317 = vmatpush1.msra.mxu0 0.0
    %2318 = vmatprep.subr.mxu0 0.0
    %2319 = vmatpush1.msra.mxu0 0.0
    %2320 = vmatprep.subr.mxu0 0.0
    %2321 = vmatpush1.msra.mxu0 0.0
    %2322 = vmatprep.subr.mxu0 0.0
    %2323 = vmatpush1.msra.mxu0 0.0
    %2324 = vmatprep.mubr.f32.mxu0 0.0
    %2325 = vmatmul.mubr.f32.gmra.mrb[0].mxu0 %v2063
    %v2326 = vpop.f32.mrb[0].mxu0
    %v2327 = vadd.f32 0.0, %v2326
    %v2328 = vpop.f32.mrb[0].mxu0
    %v2329 = vadd.f32 0.0, %v2328
    %2330 = vdwg.mxu0
    %2331 = vmatprep.subr.mxu0 %v947
    %2332 = vmatpush1.msra.mxu0 %v946
    %2333 = vmatprep.subr.mxu0 %v951
    %2334 = vmatpush1.msra.mxu0 %v950
    %2335 = vmatprep.subr.mxu0 %v955
    %2336 = vmatpush1.msra.mxu0 %v954
    %2337 = vmatprep.subr.mxu0 %v959
    %2338 = vmatpush1.msra.mxu0 %v958
    %2339 = vmatprep.subr.mxu0 %v963
    %2340 = vmatpush1.msra.mxu0 %v962
    %2341 = vmatprep.subr.mxu0 %v967
    %2342 = vmatpush1.msra.mxu0 %v966
    %2343 = vmatprep.subr.mxu0 %v971
    %2344 = vmatpush1.msra.mxu0 %v970
    %2345 = vmatprep.subr.mxu0 %v975
    %2346 = vmatpush1.msra.mxu0 %v974
    %2347 = vmatprep.subr.mxu0 %v979
    %2348 = vmatpush1.msra.mxu0 %v978
    %2349 = vmatprep.subr.mxu0 %v983
    %2350 = vmatpush1.msra.mxu0 %v982
    %2351 = vmatprep.subr.mxu0 %v987
    %2352 = vmatpush1.msra.mxu0 %v986
    %2353 = vmatprep.subr.mxu0 %v991
    %2354 = vmatpush1.msra.mxu0 %v990
    %2355 = vmatprep.subr.mxu0 %v995
    %2356 = vmatpush1.msra.mxu0 %v994
    %2357 = vmatprep.subr.mxu0 %v999
    %2358 = vmatpush1.msra.mxu0 %v998
    %2359 = vmatprep.subr.mxu0 %v1003
    %2360 = vmatpush1.msra.mxu0 %v1002
    %2361 = vmatprep.subr.mxu0 %v1007
    %2362 = vmatpush1.msra.mxu0 %v1006
    %2363 = vmatprep.subr.mxu0 0.0
    %2364 = vmatpush1.msra.mxu0 0.0
    %2365 = vmatprep.subr.mxu0 0.0
    %2366 = vmatpush1.msra.mxu0 0.0
    %2367 = vmatprep.subr.mxu0 0.0
    %2368 = vmatpush1.msra.mxu0 0.0
    %2369 = vmatprep.subr.mxu0 0.0
    %2370 = vmatpush1.msra.mxu0 0.0
    %2371 = vmatprep.subr.mxu0 0.0
    %2372 = vmatpush1.msra.mxu0 0.0
    %2373 = vmatprep.subr.mxu0 0.0
    %2374 = vmatpush1.msra.mxu0 0.0
    %2375 = vmatprep.subr.mxu0 0.0
    %2376 = vmatpush1.msra.mxu0 0.0
    %2377 = vmatprep.subr.mxu0 0.0
    %2378 = vmatpush1.msra.mxu0 0.0
    %2379 = vmatprep.subr.mxu0 0.0
    %2380 = vmatpush1.msra.mxu0 0.0
    %2381 = vmatprep.subr.mxu0 0.0
    %2382 = vmatpush1.msra.mxu0 0.0
    %2383 = vmatprep.subr.mxu0 0.0
    %2384 = vmatpush1.msra.mxu0 0.0
    %2385 = vmatprep.subr.mxu0 0.0
    %2386 = vmatpush1.msra.mxu0 0.0
    %2387 = vmatprep.subr.mxu0 0.0
    %2388 = vmatpush1.msra.mxu0 0.0
    %2389 = vmatprep.subr.mxu0 0.0
    %2390 = vmatpush1.msra.mxu0 0.0
    %2391 = vmatprep.subr.mxu0 0.0
    %2392 = vmatpush1.msra.mxu0 0.0
    %2393 = vmatprep.subr.mxu0 0.0
    %2394 = vmatpush1.msra.mxu0 0.0
    %2395 = vmatprep.mubr.f32.mxu0 0.0
    %2396 = vmatmul.mubr.f32.gmra.mrb[0].mxu0 %v2063
    %v2397 = vpop.f32.mrb[0].mxu0
    %v2398 = vadd.f32 0.0, %v2397
    %v2399 = vpop.f32.mrb[0].mxu0
    %v2400 = vadd.f32 0.0, %v2399
    %2401 = vdwg.mxu0
    %v2402 = vadd.f32 %v869, %v2327
    %v2403 = vadd.f32 %v871, %v2329
    %v2404 = vadd.f32 %v940, %v2398
    %v2405 = vadd.f32 %v942, %v2400
    %v2406 = vxor.u32 %v2402, 2147483648
    %v2407 = vmul.f32 %v2406, 1.442695
    %v2408 = vpow.pop %v2407
    %v2409 = vadd.f32 %v2408, 1.0
    %v2410 = vrcp.pop %v2409
    %v2411 = vmul.f32 1.0, %v2410
    %v2412 = vxor.u32 %v2403, 2147483648
    %v2413 = vmul.f32 %v2412, 1.442695
    %v2414 = vpow.pop %v2413
    %v2415 = vadd.f32 %v2414, 1.0
    %v2416 = vrcp.pop %v2415
    %v2417 = vmul.f32 1.0, %v2416
    %v2418 = vtanh.pop %v2404
    %v2419 = vxor.u32 %v2405, 2147483648
    %v2420 = vmul.f32 %v2419, 1.442695
    %v2421 = vpow.pop %v2420
    %v2422 = vadd.f32 %v2421, 1.0
    %v2423 = vrcp.pop %v2422
    %v2424 = vmul.f32 1.0, %v2423
    %v2425 = vmul.f32 %v2417, %v2061
    %v2426 = vmul.f32 %v2411, %v2418
    %v2427 = vadd.f32 %v2425, %v2426
    %v2428 = vtanh.pop %v2427
    %v2429 = vmul.f32 %v2424, %v2428
    %2430 = vmatprep.subr.mxu0 %v1009
    %2431 = vmatpush1.msra.mxu0 %v1008
    %2432 = vmatprep.subr.mxu0 %v1013
    %2433 = vmatpush1.msra.mxu0 %v1012
    %2434 = vmatprep.subr.mxu0 %v1017
    %2435 = vmatpush1.msra.mxu0 %v1016
    %2436 = vmatprep.subr.mxu0 %v1021
    %2437 = vmatpush1.msra.mxu0 %v1020
    %2438 = vmatprep.subr.mxu0 %v1025
    %2439 = vmatpush1.msra.mxu0 %v1024
    %2440 = vmatprep.subr.mxu0 %v1029
    %2441 = vmatpush1.msra.mxu0 %v1028
    %2442 = vmatprep.subr.mxu0 %v1033
    %2443 = vmatpush1.msra.mxu0 %v1032
    %2444 = vmatprep.subr.mxu0 %v1037
    %2445 = vmatpush1.msra.mxu0 %v1036
    %2446 = vmatprep.subr.mxu0 %v1041
    %2447 = vmatpush1.msra.mxu0 %v1040
    %2448 = vmatprep.subr.mxu0 %v1045
    %2449 = vmatpush1.msra.mxu0 %v1044
    %2450 = vmatprep.subr.mxu0 %v1049
    %2451 = vmatpush1.msra.mxu0 %v1048
    %2452 = vmatprep.subr.mxu0 %v1053
    %2453 = vmatpush1.msra.mxu0 %v1052
    %2454 = vmatprep.subr.mxu0 %v1057
    %2455 = vmatpush1.msra.mxu0 %v1056
    %2456 = vmatprep.subr.mxu0 %v1061
    %2457 = vmatpush1.msra.mxu0 %v1060
    %2458 = vmatprep.subr.mxu0 %v1065
    %2459 = vmatpush1.msra.mxu0 %v1064
    %2460 = vmatprep.subr.mxu0 %v1069
    %2461 = vmatpush1.msra.mxu0 %v1068
    %2462 = vmatprep.subr.mxu0 %v1073
    %2463 = vmatpush1.msra.mxu0 %v1072
    %2464 = vmatprep.subr.mxu0 %v1077
    %2465 = vmatpush1.msra.mxu0 %v1076
    %2466 = vmatprep.subr.mxu0 %v1081
    %2467 = vmatpush1.msra.mxu0 %v1080
    %2468 = vmatprep.subr.mxu0 %v1085
    %2469 = vmatpush1.msra.mxu0 %v1084
    %2470 = vmatprep.subr.mxu0 %v1089
    %2471 = vmatpush1.msra.mxu0 %v1088
    %2472 = vmatprep.subr.mxu0 %v1093
    %2473 = vmatpush1.msra.mxu0 %v1092
    %2474 = vmatprep.subr.mxu0 %v1097
    %2475 = vmatpush1.msra.mxu0 %v1096
    %2476 = vmatprep.subr.mxu0 %v1101
    %2477 = vmatpush1.msra.mxu0 %v1100
    %2478 = vmatprep.subr.mxu0 %v1105
    %2479 = vmatpush1.msra.mxu0 %v1104
    %2480 = vmatprep.subr.mxu0 %v1109
    %2481 = vmatpush1.msra.mxu0 %v1108
    %2482 = vmatprep.subr.mxu0 %v1113
    %2483 = vmatpush1.msra.mxu0 %v1112
    %2484 = vmatprep.subr.mxu0 %v1117
    %2485 = vmatpush1.msra.mxu0 %v1116
    %2486 = vmatprep.subr.mxu0 %v1121
    %2487 = vmatpush1.msra.mxu0 %v1120
    %2488 = vmatprep.subr.mxu0 %v1125
    %2489 = vmatpush1.msra.mxu0 %v1124
    %2490 = vmatprep.subr.mxu0 %v1129
    %2491 = vmatpush1.msra.mxu0 %v1128
    %2492 = vmatprep.subr.mxu0 %v1133
    %2493 = vmatpush1.msra.mxu0 %v1132
    %2494 = vmatprep.mubr.f32.mxu0 %v2229
    %2495 = vmatmul.mubr.f32.gmra.mrb[0].mxu0 %v2429
    %v2496 = vpop.f32.mrb[0].mxu0
    %v2497 = vadd.f32 %v1311, %v2496
    %v2498 = vpop.f32.mrb[0].mxu0
    %v2499 = vadd.f32 %v1315, %v2498
    %2500 = vdwg.mxu0
    %2501 = vmatprep.subr.mxu0 %v1011
    %2502 = vmatpush1.msra.mxu0 %v1010
    %2503 = vmatprep.subr.mxu0 %v1015
    %2504 = vmatpush1.msra.mxu0 %v1014
    %2505 = vmatprep.subr.mxu0 %v1019
    %2506 = vmatpush1.msra.mxu0 %v1018
    %2507 = vmatprep.subr.mxu0 %v1023
    %2508 = vmatpush1.msra.mxu0 %v1022
    %2509 = vmatprep.subr.mxu0 %v1027
    %2510 = vmatpush1.msra.mxu0 %v1026
    %2511 = vmatprep.subr.mxu0 %v1031
    %2512 = vmatpush1.msra.mxu0 %v1030
    %2513 = vmatprep.subr.mxu0 %v1035
    %2514 = vmatpush1.msra.mxu0 %v1034
    %2515 = vmatprep.subr.mxu0 %v1039
    %2516 = vmatpush1.msra.mxu0 %v1038
    %2517 = vmatprep.subr.mxu0 %v1043
    %2518 = vmatpush1.msra.mxu0 %v1042
    %2519 = vmatprep.subr.mxu0 %v1047
    %2520 = vmatpush1.msra.mxu0 %v1046
    %2521 = vmatprep.subr.mxu0 %v1051
    %2522 = vmatpush1.msra.mxu0 %v1050
    %2523 = vmatprep.subr.mxu0 %v1055
    %2524 = vmatpush1.msra.mxu0 %v1054
    %2525 = vmatprep.subr.mxu0 %v1059
    %2526 = vmatpush1.msra.mxu0 %v1058
    %2527 = vmatprep.subr.mxu0 %v1063
    %2528 = vmatpush1.msra.mxu0 %v1062
    %2529 = vmatprep.subr.mxu0 %v1067
    %2530 = vmatpush1.msra.mxu0 %v1066
    %2531 = vmatprep.subr.mxu0 %v1071
    %2532 = vmatpush1.msra.mxu0 %v1070
    %2533 = vmatprep.subr.mxu0 %v1075
    %2534 = vmatpush1.msra.mxu0 %v1074
    %2535 = vmatprep.subr.mxu0 %v1079
    %2536 = vmatpush1.msra.mxu0 %v1078
    %2537 = vmatprep.subr.mxu0 %v1083
    %2538 = vmatpush1.msra.mxu0 %v1082
    %2539 = vmatprep.subr.mxu0 %v1087
    %2540 = vmatpush1.msra.mxu0 %v1086
    %2541 = vmatprep.subr.mxu0 %v1091
    %2542 = vmatpush1.msra.mxu0 %v1090
    %2543 = vmatprep.subr.mxu0 %v1095
    %2544 = vmatpush1.msra.mxu0 %v1094
    %2545 = vmatprep.subr.mxu0 %v1099
    %2546 = vmatpush1.msra.mxu0 %v1098
    %2547 = vmatprep.subr.mxu0 %v1103
    %2548 = vmatpush1.msra.mxu0 %v1102
    %2549 = vmatprep.subr.mxu0 %v1107
    %2550 = vmatpush1.msra.mxu0 %v1106
    %2551 = vmatprep.subr.mxu0 %v1111
    %2552 = vmatpush1.msra.mxu0 %v1110
    %2553 = vmatprep.subr.mxu0 %v1115
    %2554 = vmatpush1.msra.mxu0 %v1114
    %2555 = vmatprep.subr.mxu0 %v1119
    %2556 = vmatpush1.msra.mxu0 %v1118
    %2557 = vmatprep.subr.mxu0 %v1123
    %2558 = vmatpush1.msra.mxu0 %v1122
    %2559 = vmatprep.subr.mxu0 %v1127
    %2560 = vmatpush1.msra.mxu0 %v1126
    %2561 = vmatprep.subr.mxu0 %v1131
    %2562 = vmatpush1.msra.mxu0 %v1130
    %2563 = vmatprep.subr.mxu0 %v1135
    %2564 = vmatpush1.msra.mxu0 %v1134
    %2565 = vmatprep.mubr.f32.mxu0 %v2229
    %2566 = vmatmul.mubr.f32.gmra.mrb[0].mxu0 %v2429
    %v2567 = vpop.f32.mrb[0].mxu0
    %v2568 = vadd.f32 %v1319, %v2567
    %v2569 = vpop.f32.mrb[0].mxu0
    %v2570 = vadd.f32 %v1323, %v2569
    %2571 = vdwg.mxu0
    %v2572 = vxor.u32 %v2497, 2147483648
    %v2573 = vmul.f32 %v2572, 1.442695
    %v2574 = vpow.pop %v2573
    %v2575 = vadd.f32 %v2574, 1.0
    %v2576 = vrcp.pop %v2575
    %v2577 = vmul.f32 1.0, %v2576
    %v2578 = vxor.u32 %v2499, 2147483648
    %v2579 = vmul.f32 %v2578, 1.442695
    %v2580 = vpow.pop %v2579
    %v2581 = vadd.f32 %v2580, 1.0
    %v2582 = vrcp.pop %v2581
    %v2583 = vmul.f32 1.0, %v2582
    %v2584 = vtanh.pop %v2568
    %v2585 = vxor.u32 %v2570, 2147483648
    %v2586 = vmul.f32 %v2585, 1.442695
    %v2587 = vpow.pop %v2586
    %v2588 = vadd.f32 %v2587, 1.0
    %v2589 = vrcp.pop %v2588
    %v2590 = vmul.f32 1.0, %v2589
    %v2591 = vmul.f32 %v2583, %v2227
    %v2592 = vmul.f32 %v2577, %v2584
    %v2593 = vadd.f32 %v2591, %v2592
    %v2594 = vtanh.pop %v2593
    %v2595 = vmul.f32 %v2590, %v2594
    %v2596 = vld [vmem:[%s12 + $0x3] sm:$0x1]
    %v2597 = vlaneseq
    %v2598 = vshrl.u32 %v2597, 7
    %v2599 = vsub.s32 0, %v2598
    %v2600 = vrot.slane %v2596, %v2599
    %v2601 = vmul.f32 %v2595, %v2600
    %v2602 = vsel %vm1500, %v2601, 0.0
    %2603 = vadd.xlane.f32.xlu0 %v2602
    %v2604 = vpop.xlane.xlu0 %2603
    %v2605 = vld [vmem:[%s13 + $0x3] sm:$0x1]
    %2607 = vset.pattern.permute.xlu0 0
    %2608 = vperm.xlu0 %2607, %v2605
    %v2609 = vpop.permute.xlu0 %2608
    %v2610 = vlaneseq
    %v2611 = vshrl.u32 %v2610, 7
    %v2612 = vsub.s32 0, %v2611
    %v2613 = vrot.slane %v2609, %v2612
    %v2615 = vadd.f32 %v2604, %v2613
    %2617 = vset.pattern.permute.xlu0 0
    %2618 = vperm.xlu0 %2617, %v2615
    %v2619 = vpop.permute.xlu0 %2618
    %v2620 = vlaneseq
    %v2621 = vshrl.u32 %v2620, 7
    %v2622 = vsub.s32 %v1520, %v2621
    %v2623 = vrot.slane %v2619, %v2622
    %2625 = vst.msk [vmem:[%s14 + $0x3] sm:$0x1] %vm1526, %v2623
    %2626 = vmatprep.subr.mxu0 %v945
    %2627 = vmatpush1.msra.mxu0 %v944
    %2628 = vmatprep.subr.mxu0 %v949
    %2629 = vmatpush1.msra.mxu0 %v948
    %2630 = vmatprep.subr.mxu0 %v953
    %2631 = vmatpush1.msra.mxu0 %v952
    %2632 = vmatprep.subr.mxu0 %v957
    %2633 = vmatpush1.msra.mxu0 %v956
    %2634 = vmatprep.subr.mxu0 %v961
    %2635 = vmatpush1.msra.mxu0 %v960
    %2636 = vmatprep.subr.mxu0 %v965
    %2637 = vmatpush1.msra.mxu0 %v964
    %2638 = vmatprep.subr.mxu0 %v969
    %2639 = vmatpush1.msra.mxu0 %v968
    %2640 = vmatprep.subr.mxu0 %v973
    %2641 = vmatpush1.msra.mxu0 %v972
    %2642 = vmatprep.subr.mxu0 %v977
    %2643 = vmatpush1.msra.mxu0 %v976
    %2644 = vmatprep.subr.mxu0 %v981
    %2645 = vmatpush1.msra.mxu0 %v980
    %2646 = vmatprep.subr.mxu0 %v985
    %2647 = vmatpush1.msra.mxu0 %v984
    %2648 = vmatprep.subr.mxu0 %v989
    %2649 = vmatpush1.msra.mxu0 %v988
    %2650 = vmatprep.subr.mxu0 %v993
    %2651 = vmatpush1.msra.mxu0 %v992
    %2652 = vmatprep.subr.mxu0 %v997
    %2653 = vmatpush1.msra.mxu0 %v996
    %2654 = vmatprep.subr.mxu0 %v1001
    %2655 = vmatpush1.msra.mxu0 %v1000
    %2656 = vmatprep.subr.mxu0 %v1005
    %2657 = vmatpush1.msra.mxu0 %v1004
    %2658 = vmatprep.subr.mxu0 0.0
    %2659 = vmatpush1.msra.mxu0 0.0
    %2660 = vmatprep.subr.mxu0 0.0
    %2661 = vmatpush1.msra.mxu0 0.0
    %2662 = vmatprep.subr.mxu0 0.0
    %2663 = vmatpush1.msra.mxu0 0.0
    %2664 = vmatprep.subr.mxu0 0.0
    %2665 = vmatpush1.msra.mxu0 0.0
    %2666 = vmatprep.subr.mxu0 0.0
    %2667 = vmatpush1.msra.mxu0 0.0
    %2668 = vmatprep.subr.mxu0 0.0
    %2669 = vmatpush1.msra.mxu0 0.0
    %2670 = vmatprep.subr.mxu0 0.0
    %2671 = vmatpush1.msra.mxu0 0.0
    %2672 = vmatprep.subr.mxu0 0.0
    %2673 = vmatpush1.msra.mxu0 0.0
    %2674 = vmatprep.subr.mxu0 0.0
    %2675 = vmatpush1.msra.mxu0 0.0
    %2676 = vmatprep.subr.mxu0 0.0
    %2677 = vmatpush1.msra.mxu0 0.0
    %2678 = vmatprep.subr.mxu0 0.0
    %2679 = vmatpush1.msra.mxu0 0.0
    %2680 = vmatprep.subr.mxu0 0.0
    %2681 = vmatpush1.msra.mxu0 0.0
    %2682 = vmatprep.subr.mxu0 0.0
    %2683 = vmatpush1.msra.mxu0 0.0
    %2684 = vmatprep.subr.mxu0 0.0
    %2685 = vmatpush1.msra.mxu0 0.0
    %2686 = vmatprep.subr.mxu0 0.0
    %2687 = vmatpush1.msra.mxu0 0.0
    %2688 = vmatprep.subr.mxu0 0.0
    %2689 = vmatpush1.msra.mxu0 0.0
    %2690 = vmatprep.mubr.f32.mxu0 0.0
    %2691 = vmatmul.mubr.f32.gmra.mrb[0].mxu0 %v2429
    %v2692 = vpop.f32.mrb[0].mxu0
    %v2693 = vadd.f32 0.0, %v2692
    %v2694 = vpop.f32.mrb[0].mxu0
    %v2695 = vadd.f32 0.0, %v2694
    %2696 = vdwg.mxu0
    %2697 = vmatprep.subr.mxu0 %v947
    %2698 = vmatpush1.msra.mxu0 %v946
    %2699 = vmatprep.subr.mxu0 %v951
    %2700 = vmatpush1.msra.mxu0 %v950
    %2701 = vmatprep.subr.mxu0 %v955
    %2702 = vmatpush1.msra.mxu0 %v954
    %2703 = vmatprep.subr.mxu0 %v959
    %2704 = vmatpush1.msra.mxu0 %v958
    %2705 = vmatprep.subr.mxu0 %v963
    %2706 = vmatpush1.msra.mxu0 %v962
    %2707 = vmatprep.subr.mxu0 %v967
    %2708 = vmatpush1.msra.mxu0 %v966
    %2709 = vmatprep.subr.mxu0 %v971
    %2710 = vmatpush1.msra.mxu0 %v970
    %2711 = vmatprep.subr.mxu0 %v975
    %2712 = vmatpush1.msra.mxu0 %v974
    %2713 = vmatprep.subr.mxu0 %v979
    %2714 = vmatpush1.msra.mxu0 %v978
    %2715 = vmatprep.subr.mxu0 %v983
    %2716 = vmatpush1.msra.mxu0 %v982
    %2717 = vmatprep.subr.mxu0 %v987
    %2718 = vmatpush1.msra.mxu0 %v986
    %2719 = vmatprep.subr.mxu0 %v991
    %2720 = vmatpush1.msra.mxu0 %v990
    %2721 = vmatprep.subr.mxu0 %v995
    %2722 = vmatpush1.msra.mxu0 %v994
    %2723 = vmatprep.subr.mxu0 %v999
    %2724 = vmatpush1.msra.mxu0 %v998
    %2725 = vmatprep.subr.mxu0 %v1003
    %2726 = vmatpush1.msra.mxu0 %v1002
    %2727 = vmatprep.subr.mxu0 %v1007
    %2728 = vmatpush1.msra.mxu0 %v1006
    %2729 = vmatprep.subr.mxu0 0.0
    %2730 = vmatpush1.msra.mxu0 0.0
    %2731 = vmatprep.subr.mxu0 0.0
    %2732 = vmatpush1.msra.mxu0 0.0
    %2733 = vmatprep.subr.mxu0 0.0
    %2734 = vmatpush1.msra.mxu0 0.0
    %2735 = vmatprep.subr.mxu0 0.0
    %2736 = vmatpush1.msra.mxu0 0.0
    %2737 = vmatprep.subr.mxu0 0.0
    %2738 = vmatpush1.msra.mxu0 0.0
    %2739 = vmatprep.subr.mxu0 0.0
    %2740 = vmatpush1.msra.mxu0 0.0
    %2741 = vmatprep.subr.mxu0 0.0
    %2742 = vmatpush1.msra.mxu0 0.0
    %2743 = vmatprep.subr.mxu0 0.0
    %2744 = vmatpush1.msra.mxu0 0.0
    %2745 = vmatprep.subr.mxu0 0.0
    %2746 = vmatpush1.msra.mxu0 0.0
    %2747 = vmatprep.subr.mxu0 0.0
    %2748 = vmatpush1.msra.mxu0 0.0
    %2749 = vmatprep.subr.mxu0 0.0
    %2750 = vmatpush1.msra.mxu0 0.0
    %2751 = vmatprep.subr.mxu0 0.0
    %2752 = vmatpush1.msra.mxu0 0.0
    %2753 = vmatprep.subr.mxu0 0.0
    %2754 = vmatpush1.msra.mxu0 0.0
    %2755 = vmatprep.subr.mxu0 0.0
    %2756 = vmatpush1.msra.mxu0 0.0
    %2757 = vmatprep.subr.mxu0 0.0
    %2758 = vmatpush1.msra.mxu0 0.0
    %2759 = vmatprep.subr.mxu0 0.0
    %2760 = vmatpush1.msra.mxu0 0.0
    %2761 = vmatprep.mubr.f32.mxu0 0.0
    %2762 = vmatmul.mubr.f32.gmra.mrb[0].mxu0 %v2429
    %v2763 = vpop.f32.mrb[0].mxu0
    %v2764 = vadd.f32 0.0, %v2763
    %v2765 = vpop.f32.mrb[0].mxu0
    %v2766 = vadd.f32 0.0, %v2765
    %2767 = vdwg.mxu0
    %v2768 = vadd.f32 %v869, %v2693
    %v2769 = vadd.f32 %v871, %v2695
    %v2770 = vadd.f32 %v940, %v2764
    %v2771 = vadd.f32 %v942, %v2766
    %v2772 = vxor.u32 %v2768, 2147483648
    %v2773 = vmul.f32 %v2772, 1.442695
    %v2774 = vpow.pop %v2773
    %v2775 = vadd.f32 %v2774, 1.0
    %v2776 = vrcp.pop %v2775
    %v2777 = vmul.f32 1.0, %v2776
    %v2778 = vxor.u32 %v2769, 2147483648
    %v2779 = vmul.f32 %v2778, 1.442695
    %v2780 = vpow.pop %v2779
    %v2781 = vadd.f32 %v2780, 1.0
    %v2782 = vrcp.pop %v2781
    %v2783 = vmul.f32 1.0, %v2782
    %v2784 = vtanh.pop %v2770
    %v2785 = vxor.u32 %v2771, 2147483648
    %v2786 = vmul.f32 %v2785, 1.442695
    %v2787 = vpow.pop %v2786
    %v2788 = vadd.f32 %v2787, 1.0
    %v2789 = vrcp.pop %v2788
    %v2790 = vmul.f32 1.0, %v2789
    %v2791 = vmul.f32 %v2783, %v2427
    %v2792 = vmul.f32 %v2777, %v2784
    %v2793 = vadd.f32 %v2791, %v2792
    %v2794 = vtanh.pop %v2793
    %v2795 = vmul.f32 %v2790, %v2794
    %2796 = vmatprep.subr.mxu0 %v1009
    %2797 = vmatpush1.msra.mxu0 %v1008
    %2798 = vmatprep.subr.mxu0 %v1013
    %2799 = vmatpush1.msra.mxu0 %v1012
    %2800 = vmatprep.subr.mxu0 %v1017
    %2801 = vmatpush1.msra.mxu0 %v1016
    %2802 = vmatprep.subr.mxu0 %v1021
    %2803 = vmatpush1.msra.mxu0 %v1020
    %2804 = vmatprep.subr.mxu0 %v1025
    %2805 = vmatpush1.msra.mxu0 %v1024
    %2806 = vmatprep.subr.mxu0 %v1029
    %2807 = vmatpush1.msra.mxu0 %v1028
    %2808 = vmatprep.subr.mxu0 %v1033
    %2809 = vmatpush1.msra.mxu0 %v1032
    %2810 = vmatprep.subr.mxu0 %v1037
    %2811 = vmatpush1.msra.mxu0 %v1036
    %2812 = vmatprep.subr.mxu0 %v1041
    %2813 = vmatpush1.msra.mxu0 %v1040
    %2814 = vmatprep.subr.mxu0 %v1045
    %2815 = vmatpush1.msra.mxu0 %v1044
    %2816 = vmatprep.subr.mxu0 %v1049
    %2817 = vmatpush1.msra.mxu0 %v1048
    %2818 = vmatprep.subr.mxu0 %v1053
    %2819 = vmatpush1.msra.mxu0 %v1052
    %2820 = vmatprep.subr.mxu0 %v1057
    %2821 = vmatpush1.msra.mxu0 %v1056
    %2822 = vmatprep.subr.mxu0 %v1061
    %2823 = vmatpush1.msra.mxu0 %v1060
    %2824 = vmatprep.subr.mxu0 %v1065
    %2825 = vmatpush1.msra.mxu0 %v1064
    %2826 = vmatprep.subr.mxu0 %v1069
    %2827 = vmatpush1.msra.mxu0 %v1068
    %2828 = vmatprep.subr.mxu0 %v1073
    %2829 = vmatpush1.msra.mxu0 %v1072
    %2830 = vmatprep.subr.mxu0 %v1077
    %2831 = vmatpush1.msra.mxu0 %v1076
    %2832 = vmatprep.subr.mxu0 %v1081
    %2833 = vmatpush1.msra.mxu0 %v1080
    %2834 = vmatprep.subr.mxu0 %v1085
    %2835 = vmatpush1.msra.mxu0 %v1084
    %2836 = vmatprep.subr.mxu0 %v1089
    %2837 = vmatpush1.msra.mxu0 %v1088
    %2838 = vmatprep.subr.mxu0 %v1093
    %2839 = vmatpush1.msra.mxu0 %v1092
    %2840 = vmatprep.subr.mxu0 %v1097
    %2841 = vmatpush1.msra.mxu0 %v1096
    %2842 = vmatprep.subr.mxu0 %v1101
    %2843 = vmatpush1.msra.mxu0 %v1100
    %2844 = vmatprep.subr.mxu0 %v1105
    %2845 = vmatpush1.msra.mxu0 %v1104
    %2846 = vmatprep.subr.mxu0 %v1109
    %2847 = vmatpush1.msra.mxu0 %v1108
    %2848 = vmatprep.subr.mxu0 %v1113
    %2849 = vmatpush1.msra.mxu0 %v1112
    %2850 = vmatprep.subr.mxu0 %v1117
    %2851 = vmatpush1.msra.mxu0 %v1116
    %2852 = vmatprep.subr.mxu0 %v1121
    %2853 = vmatpush1.msra.mxu0 %v1120
    %2854 = vmatprep.subr.mxu0 %v1125
    %2855 = vmatpush1.msra.mxu0 %v1124
    %2856 = vmatprep.subr.mxu0 %v1129
    %2857 = vmatpush1.msra.mxu0 %v1128
    %2858 = vmatprep.subr.mxu0 %v1133
    %2859 = vmatpush1.msra.mxu0 %v1132
    %2860 = vmatprep.mubr.f32.mxu0 %v2595
    %2861 = vmatmul.mubr.f32.gmra.mrb[0].mxu0 %v2795
    %v2862 = vpop.f32.mrb[0].mxu0
    %v2863 = vadd.f32 %v1311, %v2862
    %v2864 = vpop.f32.mrb[0].mxu0
    %v2865 = vadd.f32 %v1315, %v2864
    %2866 = vdwg.mxu0
    %2867 = vmatprep.subr.mxu0 %v1011
    %2868 = vmatpush1.msra.mxu0 %v1010
    %2869 = vmatprep.subr.mxu0 %v1015
    %2870 = vmatpush1.msra.mxu0 %v1014
    %2871 = vmatprep.subr.mxu0 %v1019
    %2872 = vmatpush1.msra.mxu0 %v1018
    %2873 = vmatprep.subr.mxu0 %v1023
    %2874 = vmatpush1.msra.mxu0 %v1022
    %2875 = vmatprep.subr.mxu0 %v1027
    %2876 = vmatpush1.msra.mxu0 %v1026
    %2877 = vmatprep.subr.mxu0 %v1031
    %2878 = vmatpush1.msra.mxu0 %v1030
    %2879 = vmatprep.subr.mxu0 %v1035
    %2880 = vmatpush1.msra.mxu0 %v1034
    %2881 = vmatprep.subr.mxu0 %v1039
    %2882 = vmatpush1.msra.mxu0 %v1038
    %2883 = vmatprep.subr.mxu0 %v1043
    %2884 = vmatpush1.msra.mxu0 %v1042
    %2885 = vmatprep.subr.mxu0 %v1047
    %2886 = vmatpush1.msra.mxu0 %v1046
    %2887 = vmatprep.subr.mxu0 %v1051
    %2888 = vmatpush1.msra.mxu0 %v1050
    %2889 = vmatprep.subr.mxu0 %v1055
    %2890 = vmatpush1.msra.mxu0 %v1054
    %2891 = vmatprep.subr.mxu0 %v1059
    %2892 = vmatpush1.msra.mxu0 %v1058
    %2893 = vmatprep.subr.mxu0 %v1063
    %2894 = vmatpush1.msra.mxu0 %v1062
    %2895 = vmatprep.subr.mxu0 %v1067
    %2896 = vmatpush1.msra.mxu0 %v1066
    %2897 = vmatprep.subr.mxu0 %v1071
    %2898 = vmatpush1.msra.mxu0 %v1070
    %2899 = vmatprep.subr.mxu0 %v1075
    %2900 = vmatpush1.msra.mxu0 %v1074
    %2901 = vmatprep.subr.mxu0 %v1079
    %2902 = vmatpush1.msra.mxu0 %v1078
    %2903 = vmatprep.subr.mxu0 %v1083
    %2904 = vmatpush1.msra.mxu0 %v1082
    %2905 = vmatprep.subr.mxu0 %v1087
    %2906 = vmatpush1.msra.mxu0 %v1086
    %2907 = vmatprep.subr.mxu0 %v1091
    %2908 = vmatpush1.msra.mxu0 %v1090
    %2909 = vmatprep.subr.mxu0 %v1095
    %2910 = vmatpush1.msra.mxu0 %v1094
    %2911 = vmatprep.subr.mxu0 %v1099
    %2912 = vmatpush1.msra.mxu0 %v1098
    %2913 = vmatprep.subr.mxu0 %v1103
    %2914 = vmatpush1.msra.mxu0 %v1102
    %2915 = vmatprep.subr.mxu0 %v1107
    %2916 = vmatpush1.msra.mxu0 %v1106
    %2917 = vmatprep.subr.mxu0 %v1111
    %2918 = vmatpush1.msra.mxu0 %v1110
    %2919 = vmatprep.subr.mxu0 %v1115
    %2920 = vmatpush1.msra.mxu0 %v1114
    %2921 = vmatprep.subr.mxu0 %v1119
    %2922 = vmatpush1.msra.mxu0 %v1118
    %2923 = vmatprep.subr.mxu0 %v1123
    %2924 = vmatpush1.msra.mxu0 %v1122
    %2925 = vmatprep.subr.mxu0 %v1127
    %2926 = vmatpush1.msra.mxu0 %v1126
    %2927 = vmatprep.subr.mxu0 %v1131
    %2928 = vmatpush1.msra.mxu0 %v1130
    %2929 = vmatprep.subr.mxu0 %v1135
    %2930 = vmatpush1.msra.mxu0 %v1134
    %2931 = vmatprep.mubr.f32.mxu0 %v2595
    %2932 = vmatmul.mubr.f32.gmra.mrb[0].mxu0 %v2795
    %v2933 = vpop.f32.mrb[0].mxu0
    %v2934 = vadd.f32 %v1319, %v2933
    %v2935 = vpop.f32.mrb[0].mxu0
    %v2936 = vadd.f32 %v1323, %v2935
    %2937 = vdwg.mxu0
    %v2938 = vxor.u32 %v2863, 2147483648
    %v2939 = vmul.f32 %v2938, 1.442695
    %v2940 = vpow.pop %v2939
    %v2941 = vadd.f32 %v2940, 1.0
    %v2942 = vrcp.pop %v2941
    %v2943 = vmul.f32 1.0, %v2942
    %v2944 = vxor.u32 %v2865, 2147483648
    %v2945 = vmul.f32 %v2944, 1.442695
    %v2946 = vpow.pop %v2945
    %v2947 = vadd.f32 %v2946, 1.0
    %v2948 = vrcp.pop %v2947
    %v2949 = vmul.f32 1.0, %v2948
    %v2950 = vtanh.pop %v2934
    %v2951 = vxor.u32 %v2936, 2147483648
    %v2952 = vmul.f32 %v2951, 1.442695
    %v2953 = vpow.pop %v2952
    %v2954 = vadd.f32 %v2953, 1.0
    %v2955 = vrcp.pop %v2954
    %v2956 = vmul.f32 1.0, %v2955
    %v2957 = vmul.f32 %v2949, %v2593
    %v2958 = vmul.f32 %v2943, %v2950
    %v2959 = vadd.f32 %v2957, %v2958
    %v2960 = vtanh.pop %v2959
    %v2961 = vmul.f32 %v2956, %v2960
    %v2962 = vld [vmem:[%s12 + $0x4] sm:$0x1]
    %v2963 = vlaneseq
    %v2964 = vshrl.u32 %v2963, 7
    %v2965 = vsub.s32 0, %v2964
    %v2966 = vrot.slane %v2962, %v2965
    %v2967 = vmul.f32 %v2961, %v2966
    %v2968 = vsel %vm1500, %v2967, 0.0
    %2969 = vadd.xlane.f32.xlu0 %v2968
    %v2970 = vpop.xlane.xlu0 %2969
    %v2971 = vld [vmem:[%s13 + $0x4] sm:$0x1]
    %2973 = vset.pattern.permute.xlu0 0
    %2974 = vperm.xlu0 %2973, %v2971
    %v2975 = vpop.permute.xlu0 %2974
    %v2976 = vlaneseq
    %v2977 = vshrl.u32 %v2976, 7
    %v2978 = vsub.s32 0, %v2977
    %v2979 = vrot.slane %v2975, %v2978
    %v2981 = vadd.f32 %v2970, %v2979
    %2983 = vset.pattern.permute.xlu0 0
    %2984 = vperm.xlu0 %2983, %v2981
    %v2985 = vpop.permute.xlu0 %2984
    %v2986 = vlaneseq
    %v2987 = vshrl.u32 %v2986, 7
    %v2988 = vsub.s32 %v1520, %v2987
    %v2989 = vrot.slane %v2985, %v2988
    %2991 = vst.msk [vmem:[%s14 + $0x4] sm:$0x1] %vm1526, %v2989
    %2992 = vmatprep.subr.mxu0 %v945
    %2993 = vmatpush1.msra.mxu0 %v944
    %2994 = vmatprep.subr.mxu0 %v949
    %2995 = vmatpush1.msra.mxu0 %v948
    %2996 = vmatprep.subr.mxu0 %v953
    %2997 = vmatpush1.msra.mxu0 %v952
    %2998 = vmatprep.subr.mxu0 %v957
    %2999 = vmatpush1.msra.mxu0 %v956
    %3000 = vmatprep.subr.mxu0 %v961
    %3001 = vmatpush1.msra.mxu0 %v960
    %3002 = vmatprep.subr.mxu0 %v965
    %3003 = vmatpush1.msra.mxu0 %v964
    %3004 = vmatprep.subr.mxu0 %v969
    %3005 = vmatpush1.msra.mxu0 %v968
    %3006 = vmatprep.subr.mxu0 %v973
    %3007 = vmatpush1.msra.mxu0 %v972
    %3008 = vmatprep.subr.mxu0 %v977
    %3009 = vmatpush1.msra.mxu0 %v976
    %3010 = vmatprep.subr.mxu0 %v981
    %3011 = vmatpush1.msra.mxu0 %v980
    %3012 = vmatprep.subr.mxu0 %v985
    %3013 = vmatpush1.msra.mxu0 %v984
    %3014 = vmatprep.subr.mxu0 %v989
    %3015 = vmatpush1.msra.mxu0 %v988
    %3016 = vmatprep.subr.mxu0 %v993
    %3017 = vmatpush1.msra.mxu0 %v992
    %3018 = vmatprep.subr.mxu0 %v997
    %3019 = vmatpush1.msra.mxu0 %v996
    %3020 = vmatprep.subr.mxu0 %v1001
    %3021 = vmatpush1.msra.mxu0 %v1000
    %3022 = vmatprep.subr.mxu0 %v1005
    %3023 = vmatpush1.msra.mxu0 %v1004
    %3024 = vmatprep.subr.mxu0 0.0
    %3025 = vmatpush1.msra.mxu0 0.0
    %3026 = vmatprep.subr.mxu0 0.0
    %3027 = vmatpush1.msra.mxu0 0.0
    %3028 = vmatprep.subr.mxu0 0.0
    %3029 = vmatpush1.msra.mxu0 0.0
    %3030 = vmatprep.subr.mxu0 0.0
    %3031 = vmatpush1.msra.mxu0 0.0
    %3032 = vmatprep.subr.mxu0 0.0
    %3033 = vmatpush1.msra.mxu0 0.0
    %3034 = vmatprep.subr.mxu0 0.0
    %3035 = vmatpush1.msra.mxu0 0.0
    %3036 = vmatprep.subr.mxu0 0.0
    %3037 = vmatpush1.msra.mxu0 0.0
    %3038 = vmatprep.subr.mxu0 0.0
    %3039 = vmatpush1.msra.mxu0 0.0
    %3040 = vmatprep.subr.mxu0 0.0
    %3041 = vmatpush1.msra.mxu0 0.0
    %3042 = vmatprep.subr.mxu0 0.0
    %3043 = vmatpush1.msra.mxu0 0.0
    %3044 = vmatprep.subr.mxu0 0.0
    %3045 = vmatpush1.msra.mxu0 0.0
    %3046 = vmatprep.subr.mxu0 0.0
    %3047 = vmatpush1.msra.mxu0 0.0
    %3048 = vmatprep.subr.mxu0 0.0
    %3049 = vmatpush1.msra.mxu0 0.0
    %3050 = vmatprep.subr.mxu0 0.0
    %3051 = vmatpush1.msra.mxu0 0.0
    %3052 = vmatprep.subr.mxu0 0.0
    %3053 = vmatpush1.msra.mxu0 0.0
    %3054 = vmatprep.subr.mxu0 0.0
    %3055 = vmatpush1.msra.mxu0 0.0
    %3056 = vmatprep.mubr.f32.mxu0 0.0
    %3057 = vmatmul.mubr.f32.gmra.mrb[0].mxu0 %v2795
    %v3058 = vpop.f32.mrb[0].mxu0
    %v3059 = vadd.f32 0.0, %v3058
    %v3060 = vpop.f32.mrb[0].mxu0
    %v3061 = vadd.f32 0.0, %v3060
    %3062 = vdwg.mxu0
    %3063 = vmatprep.subr.mxu0 %v947
    %3064 = vmatpush1.msra.mxu0 %v946
    %3065 = vmatprep.subr.mxu0 %v951
    %3066 = vmatpush1.msra.mxu0 %v950
    %3067 = vmatprep.subr.mxu0 %v955
    %3068 = vmatpush1.msra.mxu0 %v954
    %3069 = vmatprep.subr.mxu0 %v959
    %3070 = vmatpush1.msra.mxu0 %v958
    %3071 = vmatprep.subr.mxu0 %v963
    %3072 = vmatpush1.msra.mxu0 %v962
    %3073 = vmatprep.subr.mxu0 %v967
    %3074 = vmatpush1.msra.mxu0 %v966
    %3075 = vmatprep.subr.mxu0 %v971
    %3076 = vmatpush1.msra.mxu0 %v970
    %3077 = vmatprep.subr.mxu0 %v975
    %3078 = vmatpush1.msra.mxu0 %v974
    %3079 = vmatprep.subr.mxu0 %v979
    %3080 = vmatpush1.msra.mxu0 %v978
    %3081 = vmatprep.subr.mxu0 %v983
    %3082 = vmatpush1.msra.mxu0 %v982
    %3083 = vmatprep.subr.mxu0 %v987
    %3084 = vmatpush1.msra.mxu0 %v986
    %3085 = vmatprep.subr.mxu0 %v991
    %3086 = vmatpush1.msra.mxu0 %v990
    %3087 = vmatprep.subr.mxu0 %v995
    %3088 = vmatpush1.msra.mxu0 %v994
    %3089 = vmatprep.subr.mxu0 %v999
    %3090 = vmatpush1.msra.mxu0 %v998
    %3091 = vmatprep.subr.mxu0 %v1003
    %3092 = vmatpush1.msra.mxu0 %v1002
    %3093 = vmatprep.subr.mxu0 %v1007
    %3094 = vmatpush1.msra.mxu0 %v1006
    %3095 = vmatprep.subr.mxu0 0.0
    %3096 = vmatpush1.msra.mxu0 0.0
    %3097 = vmatprep.subr.mxu0 0.0
    %3098 = vmatpush1.msra.mxu0 0.0
    %3099 = vmatprep.subr.mxu0 0.0
    %3100 = vmatpush1.msra.mxu0 0.0
    %3101 = vmatprep.subr.mxu0 0.0
    %3102 = vmatpush1.msra.mxu0 0.0
    %3103 = vmatprep.subr.mxu0 0.0
    %3104 = vmatpush1.msra.mxu0 0.0
    %3105 = vmatprep.subr.mxu0 0.0
    %3106 = vmatpush1.msra.mxu0 0.0
    %3107 = vmatprep.subr.mxu0 0.0
    %3108 = vmatpush1.msra.mxu0 0.0
    %3109 = vmatprep.subr.mxu0 0.0
    %3110 = vmatpush1.msra.mxu0 0.0
    %3111 = vmatprep.subr.mxu0 0.0
    %3112 = vmatpush1.msra.mxu0 0.0
    %3113 = vmatprep.subr.mxu0 0.0
    %3114 = vmatpush1.msra.mxu0 0.0
    %3115 = vmatprep.subr.mxu0 0.0
    %3116 = vmatpush1.msra.mxu0 0.0
    %3117 = vmatprep.subr.mxu0 0.0
    %3118 = vmatpush1.msra.mxu0 0.0
    %3119 = vmatprep.subr.mxu0 0.0
    %3120 = vmatpush1.msra.mxu0 0.0
    %3121 = vmatprep.subr.mxu0 0.0
    %3122 = vmatpush1.msra.mxu0 0.0
    %3123 = vmatprep.subr.mxu0 0.0
    %3124 = vmatpush1.msra.mxu0 0.0
    %3125 = vmatprep.subr.mxu0 0.0
    %3126 = vmatpush1.msra.mxu0 0.0
    %3127 = vmatprep.mubr.f32.mxu0 0.0
    %3128 = vmatmul.mubr.f32.gmra.mrb[0].mxu0 %v2795
    %v3129 = vpop.f32.mrb[0].mxu0
    %v3130 = vadd.f32 0.0, %v3129
    %v3131 = vpop.f32.mrb[0].mxu0
    %v3132 = vadd.f32 0.0, %v3131
    %3133 = vdwg.mxu0
    %v3134 = vadd.f32 %v869, %v3059
    %v3135 = vadd.f32 %v871, %v3061
    %v3136 = vadd.f32 %v940, %v3130
    %v3137 = vadd.f32 %v942, %v3132
    %v3138 = vxor.u32 %v3134, 2147483648
    %v3139 = vmul.f32 %v3138, 1.442695
    %v3140 = vpow.pop %v3139
    %v3141 = vadd.f32 %v3140, 1.0
    %v3142 = vrcp.pop %v3141
    %v3143 = vmul.f32 1.0, %v3142
    %v3144 = vxor.u32 %v3135, 2147483648
    %v3145 = vmul.f32 %v3144, 1.442695
    %v3146 = vpow.pop %v3145
    %v3147 = vadd.f32 %v3146, 1.0
    %v3148 = vrcp.pop %v3147
    %v3149 = vmul.f32 1.0, %v3148
    %v3150 = vtanh.pop %v3136
    %v3151 = vxor.u32 %v3137, 2147483648
    %v3152 = vmul.f32 %v3151, 1.442695
    %v3153 = vpow.pop %v3152
    %v3154 = vadd.f32 %v3153, 1.0
    %v3155 = vrcp.pop %v3154
    %v3156 = vmul.f32 1.0, %v3155
    %v3157 = vmul.f32 %v3149, %v2793
    %v3158 = vmul.f32 %v3143, %v3150
    %v3159 = vadd.f32 %v3157, %v3158
    %v3160 = vtanh.pop %v3159
    %v3161 = vmul.f32 %v3156, %v3160
    %3162 = vmatprep.subr.mxu0 %v1009
    %3163 = vmatpush1.msra.mxu0 %v1008
    %3164 = vmatprep.subr.mxu0 %v1013
    %3165 = vmatpush1.msra.mxu0 %v1012
    %3166 = vmatprep.subr.mxu0 %v1017
    %3167 = vmatpush1.msra.mxu0 %v1016
    %3168 = vmatprep.subr.mxu0 %v1021
    %3169 = vmatpush1.msra.mxu0 %v1020
    %3170 = vmatprep.subr.mxu0 %v1025
    %3171 = vmatpush1.msra.mxu0 %v1024
    %3172 = vmatprep.subr.mxu0 %v1029
    %3173 = vmatpush1.msra.mxu0 %v1028
    %3174 = vmatprep.subr.mxu0 %v1033
    %3175 = vmatpush1.msra.mxu0 %v1032
    %3176 = vmatprep.subr.mxu0 %v1037
    %3177 = vmatpush1.msra.mxu0 %v1036
    %3178 = vmatprep.subr.mxu0 %v1041
    %3179 = vmatpush1.msra.mxu0 %v1040
    %3180 = vmatprep.subr.mxu0 %v1045
    %3181 = vmatpush1.msra.mxu0 %v1044
    %3182 = vmatprep.subr.mxu0 %v1049
    %3183 = vmatpush1.msra.mxu0 %v1048
    %3184 = vmatprep.subr.mxu0 %v1053
    %3185 = vmatpush1.msra.mxu0 %v1052
    %3186 = vmatprep.subr.mxu0 %v1057
    %3187 = vmatpush1.msra.mxu0 %v1056
    %3188 = vmatprep.subr.mxu0 %v1061
    %3189 = vmatpush1.msra.mxu0 %v1060
    %3190 = vmatprep.subr.mxu0 %v1065
    %3191 = vmatpush1.msra.mxu0 %v1064
    %3192 = vmatprep.subr.mxu0 %v1069
    %3193 = vmatpush1.msra.mxu0 %v1068
    %3194 = vmatprep.subr.mxu0 %v1073
    %3195 = vmatpush1.msra.mxu0 %v1072
    %3196 = vmatprep.subr.mxu0 %v1077
    %3197 = vmatpush1.msra.mxu0 %v1076
    %3198 = vmatprep.subr.mxu0 %v1081
    %3199 = vmatpush1.msra.mxu0 %v1080
    %3200 = vmatprep.subr.mxu0 %v1085
    %3201 = vmatpush1.msra.mxu0 %v1084
    %3202 = vmatprep.subr.mxu0 %v1089
    %3203 = vmatpush1.msra.mxu0 %v1088
    %3204 = vmatprep.subr.mxu0 %v1093
    %3205 = vmatpush1.msra.mxu0 %v1092
    %3206 = vmatprep.subr.mxu0 %v1097
    %3207 = vmatpush1.msra.mxu0 %v1096
    %3208 = vmatprep.subr.mxu0 %v1101
    %3209 = vmatpush1.msra.mxu0 %v1100
    %3210 = vmatprep.subr.mxu0 %v1105
    %3211 = vmatpush1.msra.mxu0 %v1104
    %3212 = vmatprep.subr.mxu0 %v1109
    %3213 = vmatpush1.msra.mxu0 %v1108
    %3214 = vmatprep.subr.mxu0 %v1113
    %3215 = vmatpush1.msra.mxu0 %v1112
    %3216 = vmatprep.subr.mxu0 %v1117
    %3217 = vmatpush1.msra.mxu0 %v1116
    %3218 = vmatprep.subr.mxu0 %v1121
    %3219 = vmatpush1.msra.mxu0 %v1120
    %3220 = vmatprep.subr.mxu0 %v1125
    %3221 = vmatpush1.msra.mxu0 %v1124
    %3222 = vmatprep.subr.mxu0 %v1129
    %3223 = vmatpush1.msra.mxu0 %v1128
    %3224 = vmatprep.subr.mxu0 %v1133
    %3225 = vmatpush1.msra.mxu0 %v1132
    %3226 = vmatprep.mubr.f32.mxu0 %v2961
    %3227 = vmatmul.mubr.f32.gmra.mrb[0].mxu0 %v3161
    %v3228 = vpop.f32.mrb[0].mxu0
    %v3229 = vadd.f32 %v1311, %v3228
    %v3230 = vpop.f32.mrb[0].mxu0
    %v3231 = vadd.f32 %v1315, %v3230
    %3232 = vdwg.mxu0
    %3233 = vmatprep.subr.mxu0 %v1011
    %3234 = vmatpush1.msra.mxu0 %v1010
    %3235 = vmatprep.subr.mxu0 %v1015
    %3236 = vmatpush1.msra.mxu0 %v1014
    %3237 = vmatprep.subr.mxu0 %v1019
    %3238 = vmatpush1.msra.mxu0 %v1018
    %3239 = vmatprep.subr.mxu0 %v1023
    %3240 = vmatpush1.msra.mxu0 %v1022
    %3241 = vmatprep.subr.mxu0 %v1027
    %3242 = vmatpush1.msra.mxu0 %v1026
    %3243 = vmatprep.subr.mxu0 %v1031
    %3244 = vmatpush1.msra.mxu0 %v1030
    %3245 = vmatprep.subr.mxu0 %v1035
    %3246 = vmatpush1.msra.mxu0 %v1034
    %3247 = vmatprep.subr.mxu0 %v1039
    %3248 = vmatpush1.msra.mxu0 %v1038
    %3249 = vmatprep.subr.mxu0 %v1043
    %3250 = vmatpush1.msra.mxu0 %v1042
    %3251 = vmatprep.subr.mxu0 %v1047
    %3252 = vmatpush1.msra.mxu0 %v1046
    %3253 = vmatprep.subr.mxu0 %v1051
    %3254 = vmatpush1.msra.mxu0 %v1050
    %3255 = vmatprep.subr.mxu0 %v1055
    %3256 = vmatpush1.msra.mxu0 %v1054
    %3257 = vmatprep.subr.mxu0 %v1059
    %3258 = vmatpush1.msra.mxu0 %v1058
    %3259 = vmatprep.subr.mxu0 %v1063
    %3260 = vmatpush1.msra.mxu0 %v1062
    %3261 = vmatprep.subr.mxu0 %v1067
    %3262 = vmatpush1.msra.mxu0 %v1066
    %3263 = vmatprep.subr.mxu0 %v1071
    %3264 = vmatpush1.msra.mxu0 %v1070
    %3265 = vmatprep.subr.mxu0 %v1075
    %3266 = vmatpush1.msra.mxu0 %v1074
    %3267 = vmatprep.subr.mxu0 %v1079
    %3268 = vmatpush1.msra.mxu0 %v1078
    %3269 = vmatprep.subr.mxu0 %v1083
    %3270 = vmatpush1.msra.mxu0 %v1082
    %3271 = vmatprep.subr.mxu0 %v1087
    %3272 = vmatpush1.msra.mxu0 %v1086
    %3273 = vmatprep.subr.mxu0 %v1091
    %3274 = vmatpush1.msra.mxu0 %v1090
    %3275 = vmatprep.subr.mxu0 %v1095
    %3276 = vmatpush1.msra.mxu0 %v1094
    %3277 = vmatprep.subr.mxu0 %v1099
    %3278 = vmatpush1.msra.mxu0 %v1098
    %3279 = vmatprep.subr.mxu0 %v1103
    %3280 = vmatpush1.msra.mxu0 %v1102
    %3281 = vmatprep.subr.mxu0 %v1107
    %3282 = vmatpush1.msra.mxu0 %v1106
    %3283 = vmatprep.subr.mxu0 %v1111
    %3284 = vmatpush1.msra.mxu0 %v1110
    %3285 = vmatprep.subr.mxu0 %v1115
    %3286 = vmatpush1.msra.mxu0 %v1114
    %3287 = vmatprep.subr.mxu0 %v1119
    %3288 = vmatpush1.msra.mxu0 %v1118
    %3289 = vmatprep.subr.mxu0 %v1123
    %3290 = vmatpush1.msra.mxu0 %v1122
    %3291 = vmatprep.subr.mxu0 %v1127
    %3292 = vmatpush1.msra.mxu0 %v1126
    %3293 = vmatprep.subr.mxu0 %v1131
    %3294 = vmatpush1.msra.mxu0 %v1130
    %3295 = vmatprep.subr.mxu0 %v1135
    %3296 = vmatpush1.msra.mxu0 %v1134
    %3297 = vmatprep.mubr.f32.mxu0 %v2961
    %3298 = vmatmul.mubr.f32.gmra.mrb[0].mxu0 %v3161
    %v3299 = vpop.f32.mrb[0].mxu0
    %v3300 = vadd.f32 %v1319, %v3299
    %v3301 = vpop.f32.mrb[0].mxu0
    %v3302 = vadd.f32 %v1323, %v3301
    %3303 = vdwg.mxu0
    %v3304 = vxor.u32 %v3229, 2147483648
    %v3305 = vmul.f32 %v3304, 1.442695
    %v3306 = vpow.pop %v3305
    %v3307 = vadd.f32 %v3306, 1.0
    %v3308 = vrcp.pop %v3307
    %v3309 = vmul.f32 1.0, %v3308
    %v3310 = vxor.u32 %v3231, 2147483648
    %v3311 = vmul.f32 %v3310, 1.442695
    %v3312 = vpow.pop %v3311
    %v3313 = vadd.f32 %v3312, 1.0
    %v3314 = vrcp.pop %v3313
    %v3315 = vmul.f32 1.0, %v3314
    %v3316 = vtanh.pop %v3300
    %v3317 = vxor.u32 %v3302, 2147483648
    %v3318 = vmul.f32 %v3317, 1.442695
    %v3319 = vpow.pop %v3318
    %v3320 = vadd.f32 %v3319, 1.0
    %v3321 = vrcp.pop %v3320
    %v3322 = vmul.f32 1.0, %v3321
    %v3323 = vmul.f32 %v3315, %v2959
    %v3324 = vmul.f32 %v3309, %v3316
    %v3325 = vadd.f32 %v3323, %v3324
    %v3326 = vtanh.pop %v3325
    %v3327 = vmul.f32 %v3322, %v3326
    %v3328 = vld [vmem:[%s12 + $0x5] sm:$0x1]
    %v3329 = vlaneseq
    %v3330 = vshrl.u32 %v3329, 7
    %v3331 = vsub.s32 0, %v3330
    %v3332 = vrot.slane %v3328, %v3331
    %v3333 = vmul.f32 %v3327, %v3332
    %v3334 = vsel %vm1500, %v3333, 0.0
    %3335 = vadd.xlane.f32.xlu0 %v3334
    %v3336 = vpop.xlane.xlu0 %3335
    %v3337 = vld [vmem:[%s13 + $0x5] sm:$0x1]
    %3339 = vset.pattern.permute.xlu0 0
    %3340 = vperm.xlu0 %3339, %v3337
    %v3341 = vpop.permute.xlu0 %3340
    %v3342 = vlaneseq
    %v3343 = vshrl.u32 %v3342, 7
    %v3344 = vsub.s32 0, %v3343
    %v3345 = vrot.slane %v3341, %v3344
    %v3347 = vadd.f32 %v3336, %v3345
    %3349 = vset.pattern.permute.xlu0 0
    %3350 = vperm.xlu0 %3349, %v3347
    %v3351 = vpop.permute.xlu0 %3350
    %v3352 = vlaneseq
    %v3353 = vshrl.u32 %v3352, 7
    %v3354 = vsub.s32 %v1520, %v3353
    %v3355 = vrot.slane %v3351, %v3354
    %3357 = vst.msk [vmem:[%s14 + $0x5] sm:$0x1] %vm1526, %v3355
    %3358 = vmatprep.subr.mxu0 %v945
    %3359 = vmatpush1.msra.mxu0 %v944
    %3360 = vmatprep.subr.mxu0 %v949
    %3361 = vmatpush1.msra.mxu0 %v948
    %3362 = vmatprep.subr.mxu0 %v953
    %3363 = vmatpush1.msra.mxu0 %v952
    %3364 = vmatprep.subr.mxu0 %v957
    %3365 = vmatpush1.msra.mxu0 %v956
    %3366 = vmatprep.subr.mxu0 %v961
    %3367 = vmatpush1.msra.mxu0 %v960
    %3368 = vmatprep.subr.mxu0 %v965
    %3369 = vmatpush1.msra.mxu0 %v964
    %3370 = vmatprep.subr.mxu0 %v969
    %3371 = vmatpush1.msra.mxu0 %v968
    %3372 = vmatprep.subr.mxu0 %v973
    %3373 = vmatpush1.msra.mxu0 %v972
    %3374 = vmatprep.subr.mxu0 %v977
    %3375 = vmatpush1.msra.mxu0 %v976
    %3376 = vmatprep.subr.mxu0 %v981
    %3377 = vmatpush1.msra.mxu0 %v980
    %3378 = vmatprep.subr.mxu0 %v985
    %3379 = vmatpush1.msra.mxu0 %v984
    %3380 = vmatprep.subr.mxu0 %v989
    %3381 = vmatpush1.msra.mxu0 %v988
    %3382 = vmatprep.subr.mxu0 %v993
    %3383 = vmatpush1.msra.mxu0 %v992
    %3384 = vmatprep.subr.mxu0 %v997
    %3385 = vmatpush1.msra.mxu0 %v996
    %3386 = vmatprep.subr.mxu0 %v1001
    %3387 = vmatpush1.msra.mxu0 %v1000
    %3388 = vmatprep.subr.mxu0 %v1005
    %3389 = vmatpush1.msra.mxu0 %v1004
    %3390 = vmatprep.subr.mxu0 0.0
    %3391 = vmatpush1.msra.mxu0 0.0
    %3392 = vmatprep.subr.mxu0 0.0
    %3393 = vmatpush1.msra.mxu0 0.0
    %3394 = vmatprep.subr.mxu0 0.0
    %3395 = vmatpush1.msra.mxu0 0.0
    %3396 = vmatprep.subr.mxu0 0.0
    %3397 = vmatpush1.msra.mxu0 0.0
    %3398 = vmatprep.subr.mxu0 0.0
    %3399 = vmatpush1.msra.mxu0 0.0
    %3400 = vmatprep.subr.mxu0 0.0
    %3401 = vmatpush1.msra.mxu0 0.0
    %3402 = vmatprep.subr.mxu0 0.0
    %3403 = vmatpush1.msra.mxu0 0.0
    %3404 = vmatprep.subr.mxu0 0.0
    %3405 = vmatpush1.msra.mxu0 0.0
    %3406 = vmatprep.subr.mxu0 0.0
    %3407 = vmatpush1.msra.mxu0 0.0
    %3408 = vmatprep.subr.mxu0 0.0
    %3409 = vmatpush1.msra.mxu0 0.0
    %3410 = vmatprep.subr.mxu0 0.0
    %3411 = vmatpush1.msra.mxu0 0.0
    %3412 = vmatprep.subr.mxu0 0.0
    %3413 = vmatpush1.msra.mxu0 0.0
    %3414 = vmatprep.subr.mxu0 0.0
    %3415 = vmatpush1.msra.mxu0 0.0
    %3416 = vmatprep.subr.mxu0 0.0
    %3417 = vmatpush1.msra.mxu0 0.0
    %3418 = vmatprep.subr.mxu0 0.0
    %3419 = vmatpush1.msra.mxu0 0.0
    %3420 = vmatprep.subr.mxu0 0.0
    %3421 = vmatpush1.msra.mxu0 0.0
    %3422 = vmatprep.mubr.f32.mxu0 0.0
    %3423 = vmatmul.mubr.f32.gmra.mrb[0].mxu0 %v3161
    %v3424 = vpop.f32.mrb[0].mxu0
    %v3425 = vadd.f32 0.0, %v3424
    %v3426 = vpop.f32.mrb[0].mxu0
    %v3427 = vadd.f32 0.0, %v3426
    %3428 = vdwg.mxu0
    %3429 = vmatprep.subr.mxu0 %v947
    %3430 = vmatpush1.msra.mxu0 %v946
    %3431 = vmatprep.subr.mxu0 %v951
    %3432 = vmatpush1.msra.mxu0 %v950
    %3433 = vmatprep.subr.mxu0 %v955
    %3434 = vmatpush1.msra.mxu0 %v954
    %3435 = vmatprep.subr.mxu0 %v959
    %3436 = vmatpush1.msra.mxu0 %v958
    %3437 = vmatprep.subr.mxu0 %v963
    %3438 = vmatpush1.msra.mxu0 %v962
    %3439 = vmatprep.subr.mxu0 %v967
    %3440 = vmatpush1.msra.mxu0 %v966
    %3441 = vmatprep.subr.mxu0 %v971
    %3442 = vmatpush1.msra.mxu0 %v970
    %3443 = vmatprep.subr.mxu0 %v975
    %3444 = vmatpush1.msra.mxu0 %v974
    %3445 = vmatprep.subr.mxu0 %v979
    %3446 = vmatpush1.msra.mxu0 %v978
    %3447 = vmatprep.subr.mxu0 %v983
    %3448 = vmatpush1.msra.mxu0 %v982
    %3449 = vmatprep.subr.mxu0 %v987
    %3450 = vmatpush1.msra.mxu0 %v986
    %3451 = vmatprep.subr.mxu0 %v991
    %3452 = vmatpush1.msra.mxu0 %v990
    %3453 = vmatprep.subr.mxu0 %v995
    %3454 = vmatpush1.msra.mxu0 %v994
    %3455 = vmatprep.subr.mxu0 %v999
    %3456 = vmatpush1.msra.mxu0 %v998
    %3457 = vmatprep.subr.mxu0 %v1003
    %3458 = vmatpush1.msra.mxu0 %v1002
    %3459 = vmatprep.subr.mxu0 %v1007
    %3460 = vmatpush1.msra.mxu0 %v1006
    %3461 = vmatprep.subr.mxu0 0.0
    %3462 = vmatpush1.msra.mxu0 0.0
    %3463 = vmatprep.subr.mxu0 0.0
    %3464 = vmatpush1.msra.mxu0 0.0
    %3465 = vmatprep.subr.mxu0 0.0
    %3466 = vmatpush1.msra.mxu0 0.0
    %3467 = vmatprep.subr.mxu0 0.0
    %3468 = vmatpush1.msra.mxu0 0.0
    %3469 = vmatprep.subr.mxu0 0.0
    %3470 = vmatpush1.msra.mxu0 0.0
    %3471 = vmatprep.subr.mxu0 0.0
    %3472 = vmatpush1.msra.mxu0 0.0
    %3473 = vmatprep.subr.mxu0 0.0
    %3474 = vmatpush1.msra.mxu0 0.0
    %3475 = vmatprep.subr.mxu0 0.0
    %3476 = vmatpush1.msra.mxu0 0.0
    %3477 = vmatprep.subr.mxu0 0.0
    %3478 = vmatpush1.msra.mxu0 0.0
    %3479 = vmatprep.subr.mxu0 0.0
    %3480 = vmatpush1.msra.mxu0 0.0
    %3481 = vmatprep.subr.mxu0 0.0
    %3482 = vmatpush1.msra.mxu0 0.0
    %3483 = vmatprep.subr.mxu0 0.0
    %3484 = vmatpush1.msra.mxu0 0.0
    %3485 = vmatprep.subr.mxu0 0.0
    %3486 = vmatpush1.msra.mxu0 0.0
    %3487 = vmatprep.subr.mxu0 0.0
    %3488 = vmatpush1.msra.mxu0 0.0
    %3489 = vmatprep.subr.mxu0 0.0
    %3490 = vmatpush1.msra.mxu0 0.0
    %3491 = vmatprep.subr.mxu0 0.0
    %3492 = vmatpush1.msra.mxu0 0.0
    %3493 = vmatprep.mubr.f32.mxu0 0.0
    %3494 = vmatmul.mubr.f32.gmra.mrb[0].mxu0 %v3161
    %v3495 = vpop.f32.mrb[0].mxu0
    %v3496 = vadd.f32 0.0, %v3495
    %v3497 = vpop.f32.mrb[0].mxu0
    %v3498 = vadd.f32 0.0, %v3497
    %3499 = vdwg.mxu0
    %v3500 = vadd.f32 %v869, %v3425
    %v3501 = vadd.f32 %v871, %v3427
    %v3502 = vadd.f32 %v940, %v3496
    %v3503 = vadd.f32 %v942, %v3498
    %v3504 = vxor.u32 %v3500, 2147483648
    %v3505 = vmul.f32 %v3504, 1.442695
    %v3506 = vpow.pop %v3505
    %v3507 = vadd.f32 %v3506, 1.0
    %v3508 = vrcp.pop %v3507
    %v3509 = vmul.f32 1.0, %v3508
    %v3510 = vxor.u32 %v3501, 2147483648
    %v3511 = vmul.f32 %v3510, 1.442695
    %v3512 = vpow.pop %v3511
    %v3513 = vadd.f32 %v3512, 1.0
    %v3514 = vrcp.pop %v3513
    %v3515 = vmul.f32 1.0, %v3514
    %v3516 = vtanh.pop %v3502
    %v3517 = vxor.u32 %v3503, 2147483648
    %v3518 = vmul.f32 %v3517, 1.442695
    %v3519 = vpow.pop %v3518
    %v3520 = vadd.f32 %v3519, 1.0
    %v3521 = vrcp.pop %v3520
    %v3522 = vmul.f32 1.0, %v3521
    %v3523 = vmul.f32 %v3515, %v3159
    %v3524 = vmul.f32 %v3509, %v3516
    %v3525 = vadd.f32 %v3523, %v3524
    %v3526 = vtanh.pop %v3525
    %v3527 = vmul.f32 %v3522, %v3526
    %3528 = vmatprep.subr.mxu0 %v1009
    %3529 = vmatpush1.msra.mxu0 %v1008
    %3530 = vmatprep.subr.mxu0 %v1013
    %3531 = vmatpush1.msra.mxu0 %v1012
    %3532 = vmatprep.subr.mxu0 %v1017
    %3533 = vmatpush1.msra.mxu0 %v1016
    %3534 = vmatprep.subr.mxu0 %v1021
    %3535 = vmatpush1.msra.mxu0 %v1020
    %3536 = vmatprep.subr.mxu0 %v1025
    %3537 = vmatpush1.msra.mxu0 %v1024
    %3538 = vmatprep.subr.mxu0 %v1029
    %3539 = vmatpush1.msra.mxu0 %v1028
    %3540 = vmatprep.subr.mxu0 %v1033
    %3541 = vmatpush1.msra.mxu0 %v1032
    %3542 = vmatprep.subr.mxu0 %v1037
    %3543 = vmatpush1.msra.mxu0 %v1036
    %3544 = vmatprep.subr.mxu0 %v1041
    %3545 = vmatpush1.msra.mxu0 %v1040
    %3546 = vmatprep.subr.mxu0 %v1045
    %3547 = vmatpush1.msra.mxu0 %v1044
    %3548 = vmatprep.subr.mxu0 %v1049
    %3549 = vmatpush1.msra.mxu0 %v1048
    %3550 = vmatprep.subr.mxu0 %v1053
    %3551 = vmatpush1.msra.mxu0 %v1052
    %3552 = vmatprep.subr.mxu0 %v1057
    %3553 = vmatpush1.msra.mxu0 %v1056
    %3554 = vmatprep.subr.mxu0 %v1061
    %3555 = vmatpush1.msra.mxu0 %v1060
    %3556 = vmatprep.subr.mxu0 %v1065
    %3557 = vmatpush1.msra.mxu0 %v1064
    %3558 = vmatprep.subr.mxu0 %v1069
    %3559 = vmatpush1.msra.mxu0 %v1068
    %3560 = vmatprep.subr.mxu0 %v1073
    %3561 = vmatpush1.msra.mxu0 %v1072
    %3562 = vmatprep.subr.mxu0 %v1077
    %3563 = vmatpush1.msra.mxu0 %v1076
    %3564 = vmatprep.subr.mxu0 %v1081
    %3565 = vmatpush1.msra.mxu0 %v1080
    %3566 = vmatprep.subr.mxu0 %v1085
    %3567 = vmatpush1.msra.mxu0 %v1084
    %3568 = vmatprep.subr.mxu0 %v1089
    %3569 = vmatpush1.msra.mxu0 %v1088
    %3570 = vmatprep.subr.mxu0 %v1093
    %3571 = vmatpush1.msra.mxu0 %v1092
    %3572 = vmatprep.subr.mxu0 %v1097
    %3573 = vmatpush1.msra.mxu0 %v1096
    %3574 = vmatprep.subr.mxu0 %v1101
    %3575 = vmatpush1.msra.mxu0 %v1100
    %3576 = vmatprep.subr.mxu0 %v1105
    %3577 = vmatpush1.msra.mxu0 %v1104
    %3578 = vmatprep.subr.mxu0 %v1109
    %3579 = vmatpush1.msra.mxu0 %v1108
    %3580 = vmatprep.subr.mxu0 %v1113
    %3581 = vmatpush1.msra.mxu0 %v1112
    %3582 = vmatprep.subr.mxu0 %v1117
    %3583 = vmatpush1.msra.mxu0 %v1116
    %3584 = vmatprep.subr.mxu0 %v1121
    %3585 = vmatpush1.msra.mxu0 %v1120
    %3586 = vmatprep.subr.mxu0 %v1125
    %3587 = vmatpush1.msra.mxu0 %v1124
    %3588 = vmatprep.subr.mxu0 %v1129
    %3589 = vmatpush1.msra.mxu0 %v1128
    %3590 = vmatprep.subr.mxu0 %v1133
    %3591 = vmatpush1.msra.mxu0 %v1132
    %3592 = vmatprep.mubr.f32.mxu0 %v3327
    %3593 = vmatmul.mubr.f32.gmra.mrb[0].mxu0 %v3527
    %v3594 = vpop.f32.mrb[0].mxu0
    %v3595 = vadd.f32 %v1311, %v3594
    %v3596 = vpop.f32.mrb[0].mxu0
    %v3597 = vadd.f32 %v1315, %v3596
    %3598 = vdwg.mxu0
    %3599 = vmatprep.subr.mxu0 %v1011
    %3600 = vmatpush1.msra.mxu0 %v1010
    %3601 = vmatprep.subr.mxu0 %v1015
    %3602 = vmatpush1.msra.mxu0 %v1014
    %3603 = vmatprep.subr.mxu0 %v1019
    %3604 = vmatpush1.msra.mxu0 %v1018
    %3605 = vmatprep.subr.mxu0 %v1023
    %3606 = vmatpush1.msra.mxu0 %v1022
    %3607 = vmatprep.subr.mxu0 %v1027
    %3608 = vmatpush1.msra.mxu0 %v1026
    %3609 = vmatprep.subr.mxu0 %v1031
    %3610 = vmatpush1.msra.mxu0 %v1030
    %3611 = vmatprep.subr.mxu0 %v1035
    %3612 = vmatpush1.msra.mxu0 %v1034
    %3613 = vmatprep.subr.mxu0 %v1039
    %3614 = vmatpush1.msra.mxu0 %v1038
    %3615 = vmatprep.subr.mxu0 %v1043
    %3616 = vmatpush1.msra.mxu0 %v1042
    %3617 = vmatprep.subr.mxu0 %v1047
    %3618 = vmatpush1.msra.mxu0 %v1046
    %3619 = vmatprep.subr.mxu0 %v1051
    %3620 = vmatpush1.msra.mxu0 %v1050
    %3621 = vmatprep.subr.mxu0 %v1055
    %3622 = vmatpush1.msra.mxu0 %v1054
    %3623 = vmatprep.subr.mxu0 %v1059
    %3624 = vmatpush1.msra.mxu0 %v1058
    %3625 = vmatprep.subr.mxu0 %v1063
    %3626 = vmatpush1.msra.mxu0 %v1062
    %3627 = vmatprep.subr.mxu0 %v1067
    %3628 = vmatpush1.msra.mxu0 %v1066
    %3629 = vmatprep.subr.mxu0 %v1071
    %3630 = vmatpush1.msra.mxu0 %v1070
    %3631 = vmatprep.subr.mxu0 %v1075
    %3632 = vmatpush1.msra.mxu0 %v1074
    %3633 = vmatprep.subr.mxu0 %v1079
    %3634 = vmatpush1.msra.mxu0 %v1078
    %3635 = vmatprep.subr.mxu0 %v1083
    %3636 = vmatpush1.msra.mxu0 %v1082
    %3637 = vmatprep.subr.mxu0 %v1087
    %3638 = vmatpush1.msra.mxu0 %v1086
    %3639 = vmatprep.subr.mxu0 %v1091
    %3640 = vmatpush1.msra.mxu0 %v1090
    %3641 = vmatprep.subr.mxu0 %v1095
    %3642 = vmatpush1.msra.mxu0 %v1094
    %3643 = vmatprep.subr.mxu0 %v1099
    %3644 = vmatpush1.msra.mxu0 %v1098
    %3645 = vmatprep.subr.mxu0 %v1103
    %3646 = vmatpush1.msra.mxu0 %v1102
    %3647 = vmatprep.subr.mxu0 %v1107
    %3648 = vmatpush1.msra.mxu0 %v1106
    %3649 = vmatprep.subr.mxu0 %v1111
    %3650 = vmatpush1.msra.mxu0 %v1110
    %3651 = vmatprep.subr.mxu0 %v1115
    %3652 = vmatpush1.msra.mxu0 %v1114
    %3653 = vmatprep.subr.mxu0 %v1119
    %3654 = vmatpush1.msra.mxu0 %v1118
    %3655 = vmatprep.subr.mxu0 %v1123
    %3656 = vmatpush1.msra.mxu0 %v1122
    %3657 = vmatprep.subr.mxu0 %v1127
    %3658 = vmatpush1.msra.mxu0 %v1126
    %3659 = vmatprep.subr.mxu0 %v1131
    %3660 = vmatpush1.msra.mxu0 %v1130
    %3661 = vmatprep.subr.mxu0 %v1135
    %3662 = vmatpush1.msra.mxu0 %v1134
    %3663 = vmatprep.mubr.f32.mxu0 %v3327
    %3664 = vmatmul.mubr.f32.gmra.mrb[0].mxu0 %v3527
    %v3665 = vpop.f32.mrb[0].mxu0
    %v3666 = vadd.f32 %v1319, %v3665
    %v3667 = vpop.f32.mrb[0].mxu0
    %v3668 = vadd.f32 %v1323, %v3667
    %3669 = vdwg.mxu0
    %v3670 = vxor.u32 %v3595, 2147483648
    %v3671 = vmul.f32 %v3670, 1.442695
    %v3672 = vpow.pop %v3671
    %v3673 = vadd.f32 %v3672, 1.0
    %v3674 = vrcp.pop %v3673
    %v3675 = vmul.f32 1.0, %v3674
    %v3676 = vxor.u32 %v3597, 2147483648
    %v3677 = vmul.f32 %v3676, 1.442695
    %v3678 = vpow.pop %v3677
    %v3679 = vadd.f32 %v3678, 1.0
    %v3680 = vrcp.pop %v3679
    %v3681 = vmul.f32 1.0, %v3680
    %v3682 = vtanh.pop %v3666
    %v3683 = vxor.u32 %v3668, 2147483648
    %v3684 = vmul.f32 %v3683, 1.442695
    %v3685 = vpow.pop %v3684
    %v3686 = vadd.f32 %v3685, 1.0
    %v3687 = vrcp.pop %v3686
    %v3688 = vmul.f32 1.0, %v3687
    %v3689 = vmul.f32 %v3681, %v3325
    %v3690 = vmul.f32 %v3675, %v3682
    %v3691 = vadd.f32 %v3689, %v3690
    %v3692 = vtanh.pop %v3691
    %v3693 = vmul.f32 %v3688, %v3692
    %v3694 = vld [vmem:[%s12 + $0x6] sm:$0x1]
    %v3695 = vlaneseq
    %v3696 = vshrl.u32 %v3695, 7
    %v3697 = vsub.s32 0, %v3696
    %v3698 = vrot.slane %v3694, %v3697
    %v3699 = vmul.f32 %v3693, %v3698
    %v3700 = vsel %vm1500, %v3699, 0.0
    %3701 = vadd.xlane.f32.xlu0 %v3700
    %v3702 = vpop.xlane.xlu0 %3701
    %v3703 = vld [vmem:[%s13 + $0x6] sm:$0x1]
    %3705 = vset.pattern.permute.xlu0 0
    %3706 = vperm.xlu0 %3705, %v3703
    %v3707 = vpop.permute.xlu0 %3706
    %v3708 = vlaneseq
    %v3709 = vshrl.u32 %v3708, 7
    %v3710 = vsub.s32 0, %v3709
    %v3711 = vrot.slane %v3707, %v3710
    %v3713 = vadd.f32 %v3702, %v3711
    %3715 = vset.pattern.permute.xlu0 0
    %3716 = vperm.xlu0 %3715, %v3713
    %v3717 = vpop.permute.xlu0 %3716
    %v3718 = vlaneseq
    %v3719 = vshrl.u32 %v3718, 7
    %v3720 = vsub.s32 %v1520, %v3719
    %v3721 = vrot.slane %v3717, %v3720
    %3723 = vst.msk [vmem:[%s14 + $0x6] sm:$0x1] %vm1526, %v3721
    %3724 = vmatprep.subr.mxu0 %v945
    %3725 = vmatpush1.msra.mxu0 %v944
    %3726 = vmatprep.subr.mxu0 %v949
    %3727 = vmatpush1.msra.mxu0 %v948
    %3728 = vmatprep.subr.mxu0 %v953
    %3729 = vmatpush1.msra.mxu0 %v952
    %3730 = vmatprep.subr.mxu0 %v957
    %3731 = vmatpush1.msra.mxu0 %v956
    %3732 = vmatprep.subr.mxu0 %v961
    %3733 = vmatpush1.msra.mxu0 %v960
    %3734 = vmatprep.subr.mxu0 %v965
    %3735 = vmatpush1.msra.mxu0 %v964
    %3736 = vmatprep.subr.mxu0 %v969
    %3737 = vmatpush1.msra.mxu0 %v968
    %3738 = vmatprep.subr.mxu0 %v973
    %3739 = vmatpush1.msra.mxu0 %v972
    %3740 = vmatprep.subr.mxu0 %v977
    %3741 = vmatpush1.msra.mxu0 %v976
    %3742 = vmatprep.subr.mxu0 %v981
    %3743 = vmatpush1.msra.mxu0 %v980
    %3744 = vmatprep.subr.mxu0 %v985
    %3745 = vmatpush1.msra.mxu0 %v984
    %3746 = vmatprep.subr.mxu0 %v989
    %3747 = vmatpush1.msra.mxu0 %v988
    %3748 = vmatprep.subr.mxu0 %v993
    %3749 = vmatpush1.msra.mxu0 %v992
    %3750 = vmatprep.subr.mxu0 %v997
    %3751 = vmatpush1.msra.mxu0 %v996
    %3752 = vmatprep.subr.mxu0 %v1001
    %3753 = vmatpush1.msra.mxu0 %v1000
    %3754 = vmatprep.subr.mxu0 %v1005
    %3755 = vmatpush1.msra.mxu0 %v1004
    %3756 = vmatprep.subr.mxu0 0.0
    %3757 = vmatpush1.msra.mxu0 0.0
    %3758 = vmatprep.subr.mxu0 0.0
    %3759 = vmatpush1.msra.mxu0 0.0
    %3760 = vmatprep.subr.mxu0 0.0
    %3761 = vmatpush1.msra.mxu0 0.0
    %3762 = vmatprep.subr.mxu0 0.0
    %3763 = vmatpush1.msra.mxu0 0.0
    %3764 = vmatprep.subr.mxu0 0.0
    %3765 = vmatpush1.msra.mxu0 0.0
    %3766 = vmatprep.subr.mxu0 0.0
    %3767 = vmatpush1.msra.mxu0 0.0
    %3768 = vmatprep.subr.mxu0 0.0
    %3769 = vmatpush1.msra.mxu0 0.0
    %3770 = vmatprep.subr.mxu0 0.0
    %3771 = vmatpush1.msra.mxu0 0.0
    %3772 = vmatprep.subr.mxu0 0.0
    %3773 = vmatpush1.msra.mxu0 0.0
    %3774 = vmatprep.subr.mxu0 0.0
    %3775 = vmatpush1.msra.mxu0 0.0
    %3776 = vmatprep.subr.mxu0 0.0
    %3777 = vmatpush1.msra.mxu0 0.0
    %3778 = vmatprep.subr.mxu0 0.0
    %3779 = vmatpush1.msra.mxu0 0.0
    %3780 = vmatprep.subr.mxu0 0.0
    %3781 = vmatpush1.msra.mxu0 0.0
    %3782 = vmatprep.subr.mxu0 0.0
    %3783 = vmatpush1.msra.mxu0 0.0
    %3784 = vmatprep.subr.mxu0 0.0
    %3785 = vmatpush1.msra.mxu0 0.0
    %3786 = vmatprep.subr.mxu0 0.0
    %3787 = vmatpush1.msra.mxu0 0.0
    %3788 = vmatprep.mubr.f32.mxu0 0.0
    %3789 = vmatmul.mubr.f32.gmra.mrb[0].mxu0 %v3527
    %v3790 = vpop.f32.mrb[0].mxu0
    %v3791 = vadd.f32 0.0, %v3790
    %v3792 = vpop.f32.mrb[0].mxu0
    %v3793 = vadd.f32 0.0, %v3792
    %3794 = vdwg.mxu0
    %3795 = vmatprep.subr.mxu0 %v947
    %3796 = vmatpush1.msra.mxu0 %v946
    %3797 = vmatprep.subr.mxu0 %v951
    %3798 = vmatpush1.msra.mxu0 %v950
    %3799 = vmatprep.subr.mxu0 %v955
    %3800 = vmatpush1.msra.mxu0 %v954
    %3801 = vmatprep.subr.mxu0 %v959
    %3802 = vmatpush1.msra.mxu0 %v958
    %3803 = vmatprep.subr.mxu0 %v963
    %3804 = vmatpush1.msra.mxu0 %v962
    %3805 = vmatprep.subr.mxu0 %v967
    %3806 = vmatpush1.msra.mxu0 %v966
    %3807 = vmatprep.subr.mxu0 %v971
    %3808 = vmatpush1.msra.mxu0 %v970
    %3809 = vmatprep.subr.mxu0 %v975
    %3810 = vmatpush1.msra.mxu0 %v974
    %3811 = vmatprep.subr.mxu0 %v979
    %3812 = vmatpush1.msra.mxu0 %v978
    %3813 = vmatprep.subr.mxu0 %v983
    %3814 = vmatpush1.msra.mxu0 %v982
    %3815 = vmatprep.subr.mxu0 %v987
    %3816 = vmatpush1.msra.mxu0 %v986
    %3817 = vmatprep.subr.mxu0 %v991
    %3818 = vmatpush1.msra.mxu0 %v990
    %3819 = vmatprep.subr.mxu0 %v995
    %3820 = vmatpush1.msra.mxu0 %v994
    %3821 = vmatprep.subr.mxu0 %v999
    %3822 = vmatpush1.msra.mxu0 %v998
    %3823 = vmatprep.subr.mxu0 %v1003
    %3824 = vmatpush1.msra.mxu0 %v1002
    %3825 = vmatprep.subr.mxu0 %v1007
    %3826 = vmatpush1.msra.mxu0 %v1006
    %3827 = vmatprep.subr.mxu0 0.0
    %3828 = vmatpush1.msra.mxu0 0.0
    %3829 = vmatprep.subr.mxu0 0.0
    %3830 = vmatpush1.msra.mxu0 0.0
    %3831 = vmatprep.subr.mxu0 0.0
    %3832 = vmatpush1.msra.mxu0 0.0
    %3833 = vmatprep.subr.mxu0 0.0
    %3834 = vmatpush1.msra.mxu0 0.0
    %3835 = vmatprep.subr.mxu0 0.0
    %3836 = vmatpush1.msra.mxu0 0.0
    %3837 = vmatprep.subr.mxu0 0.0
    %3838 = vmatpush1.msra.mxu0 0.0
    %3839 = vmatprep.subr.mxu0 0.0
    %3840 = vmatpush1.msra.mxu0 0.0
    %3841 = vmatprep.subr.mxu0 0.0
    %3842 = vmatpush1.msra.mxu0 0.0
    %3843 = vmatprep.subr.mxu0 0.0
    %3844 = vmatpush1.msra.mxu0 0.0
    %3845 = vmatprep.subr.mxu0 0.0
    %3846 = vmatpush1.msra.mxu0 0.0
    %3847 = vmatprep.subr.mxu0 0.0
    %3848 = vmatpush1.msra.mxu0 0.0
    %3849 = vmatprep.subr.mxu0 0.0
    %3850 = vmatpush1.msra.mxu0 0.0
    %3851 = vmatprep.subr.mxu0 0.0
    %3852 = vmatpush1.msra.mxu0 0.0
    %3853 = vmatprep.subr.mxu0 0.0
    %3854 = vmatpush1.msra.mxu0 0.0
    %3855 = vmatprep.subr.mxu0 0.0
    %3856 = vmatpush1.msra.mxu0 0.0
    %3857 = vmatprep.subr.mxu0 0.0
    %3858 = vmatpush1.msra.mxu0 0.0
    %3859 = vmatprep.mubr.f32.mxu0 0.0
    %3860 = vmatmul.mubr.f32.gmra.mrb[0].mxu0 %v3527
    %v3861 = vpop.f32.mrb[0].mxu0
    %v3862 = vadd.f32 0.0, %v3861
    %v3863 = vpop.f32.mrb[0].mxu0
    %v3864 = vadd.f32 0.0, %v3863
    %3865 = vdwg.mxu0
    %v3866 = vadd.f32 %v869, %v3791
    %v3867 = vadd.f32 %v871, %v3793
    %v3868 = vadd.f32 %v940, %v3862
    %v3869 = vadd.f32 %v942, %v3864
    %v3870 = vxor.u32 %v3866, 2147483648
    %v3871 = vmul.f32 %v3870, 1.442695
    %v3872 = vpow.pop %v3871
    %v3873 = vadd.f32 %v3872, 1.0
    %v3874 = vrcp.pop %v3873
    %v3875 = vmul.f32 1.0, %v3874
    %v3876 = vxor.u32 %v3867, 2147483648
    %v3877 = vmul.f32 %v3876, 1.442695
    %v3878 = vpow.pop %v3877
    %v3879 = vadd.f32 %v3878, 1.0
    %v3880 = vrcp.pop %v3879
    %v3881 = vmul.f32 1.0, %v3880
    %v3882 = vtanh.pop %v3868
    %v3883 = vxor.u32 %v3869, 2147483648
    %v3884 = vmul.f32 %v3883, 1.442695
    %v3885 = vpow.pop %v3884
    %v3886 = vadd.f32 %v3885, 1.0
    %v3887 = vrcp.pop %v3886
    %v3888 = vmul.f32 1.0, %v3887
    %v3889 = vmul.f32 %v3881, %v3525
    %v3890 = vmul.f32 %v3875, %v3882
    %v3891 = vadd.f32 %v3889, %v3890
    %v3892 = vtanh.pop %v3891
    %v3893 = vmul.f32 %v3888, %v3892
    %3894 = vmatprep.subr.mxu0 %v1009
    %3895 = vmatpush1.msra.mxu0 %v1008
    %3896 = vmatprep.subr.mxu0 %v1013
    %3897 = vmatpush1.msra.mxu0 %v1012
    %3898 = vmatprep.subr.mxu0 %v1017
    %3899 = vmatpush1.msra.mxu0 %v1016
    %3900 = vmatprep.subr.mxu0 %v1021
    %3901 = vmatpush1.msra.mxu0 %v1020
    %3902 = vmatprep.subr.mxu0 %v1025
    %3903 = vmatpush1.msra.mxu0 %v1024
    %3904 = vmatprep.subr.mxu0 %v1029
    %3905 = vmatpush1.msra.mxu0 %v1028
    %3906 = vmatprep.subr.mxu0 %v1033
    %3907 = vmatpush1.msra.mxu0 %v1032
    %3908 = vmatprep.subr.mxu0 %v1037
    %3909 = vmatpush1.msra.mxu0 %v1036
    %3910 = vmatprep.subr.mxu0 %v1041
    %3911 = vmatpush1.msra.mxu0 %v1040
    %3912 = vmatprep.subr.mxu0 %v1045
    %3913 = vmatpush1.msra.mxu0 %v1044
    %3914 = vmatprep.subr.mxu0 %v1049
    %3915 = vmatpush1.msra.mxu0 %v1048
    %3916 = vmatprep.subr.mxu0 %v1053
    %3917 = vmatpush1.msra.mxu0 %v1052
    %3918 = vmatprep.subr.mxu0 %v1057
    %3919 = vmatpush1.msra.mxu0 %v1056
    %3920 = vmatprep.subr.mxu0 %v1061
    %3921 = vmatpush1.msra.mxu0 %v1060
    %3922 = vmatprep.subr.mxu0 %v1065
    %3923 = vmatpush1.msra.mxu0 %v1064
    %3924 = vmatprep.subr.mxu0 %v1069
    %3925 = vmatpush1.msra.mxu0 %v1068
    %3926 = vmatprep.subr.mxu0 %v1073
    %3927 = vmatpush1.msra.mxu0 %v1072
    %3928 = vmatprep.subr.mxu0 %v1077
    %3929 = vmatpush1.msra.mxu0 %v1076
    %3930 = vmatprep.subr.mxu0 %v1081
    %3931 = vmatpush1.msra.mxu0 %v1080
    %3932 = vmatprep.subr.mxu0 %v1085
    %3933 = vmatpush1.msra.mxu0 %v1084
    %3934 = vmatprep.subr.mxu0 %v1089
    %3935 = vmatpush1.msra.mxu0 %v1088
    %3936 = vmatprep.subr.mxu0 %v1093
    %3937 = vmatpush1.msra.mxu0 %v1092
    %3938 = vmatprep.subr.mxu0 %v1097
    %3939 = vmatpush1.msra.mxu0 %v1096
    %3940 = vmatprep.subr.mxu0 %v1101
    %3941 = vmatpush1.msra.mxu0 %v1100
    %3942 = vmatprep.subr.mxu0 %v1105
    %3943 = vmatpush1.msra.mxu0 %v1104
    %3944 = vmatprep.subr.mxu0 %v1109
    %3945 = vmatpush1.msra.mxu0 %v1108
    %3946 = vmatprep.subr.mxu0 %v1113
    %3947 = vmatpush1.msra.mxu0 %v1112
    %3948 = vmatprep.subr.mxu0 %v1117
    %3949 = vmatpush1.msra.mxu0 %v1116
    %3950 = vmatprep.subr.mxu0 %v1121
    %3951 = vmatpush1.msra.mxu0 %v1120
    %3952 = vmatprep.subr.mxu0 %v1125
    %3953 = vmatpush1.msra.mxu0 %v1124
    %3954 = vmatprep.subr.mxu0 %v1129
    %3955 = vmatpush1.msra.mxu0 %v1128
    %3956 = vmatprep.subr.mxu0 %v1133
    %3957 = vmatpush1.msra.mxu0 %v1132
    %3958 = vmatprep.mubr.f32.mxu0 %v3693
    %3959 = vmatmul.mubr.f32.gmra.mrb[0].mxu0 %v3893
    %v3960 = vpop.f32.mrb[0].mxu0
    %v3961 = vadd.f32 %v1311, %v3960
    %v3962 = vpop.f32.mrb[0].mxu0
    %v3963 = vadd.f32 %v1315, %v3962
    %3964 = vdwg.mxu0
    %3965 = vmatprep.subr.mxu0 %v1011
    %3966 = vmatpush1.msra.mxu0 %v1010
    %3967 = vmatprep.subr.mxu0 %v1015
    %3968 = vmatpush1.msra.mxu0 %v1014
    %3969 = vmatprep.subr.mxu0 %v1019
    %3970 = vmatpush1.msra.mxu0 %v1018
    %3971 = vmatprep.subr.mxu0 %v1023
    %3972 = vmatpush1.msra.mxu0 %v1022
    %3973 = vmatprep.subr.mxu0 %v1027
    %3974 = vmatpush1.msra.mxu0 %v1026
    %3975 = vmatprep.subr.mxu0 %v1031
    %3976 = vmatpush1.msra.mxu0 %v1030
    %3977 = vmatprep.subr.mxu0 %v1035
    %3978 = vmatpush1.msra.mxu0 %v1034
    %3979 = vmatprep.subr.mxu0 %v1039
    %3980 = vmatpush1.msra.mxu0 %v1038
    %3981 = vmatprep.subr.mxu0 %v1043
    %3982 = vmatpush1.msra.mxu0 %v1042
    %3983 = vmatprep.subr.mxu0 %v1047
    %3984 = vmatpush1.msra.mxu0 %v1046
    %3985 = vmatprep.subr.mxu0 %v1051
    %3986 = vmatpush1.msra.mxu0 %v1050
    %3987 = vmatprep.subr.mxu0 %v1055
    %3988 = vmatpush1.msra.mxu0 %v1054
    %3989 = vmatprep.subr.mxu0 %v1059
    %3990 = vmatpush1.msra.mxu0 %v1058
    %3991 = vmatprep.subr.mxu0 %v1063
    %3992 = vmatpush1.msra.mxu0 %v1062
    %3993 = vmatprep.subr.mxu0 %v1067
    %3994 = vmatpush1.msra.mxu0 %v1066
    %3995 = vmatprep.subr.mxu0 %v1071
    %3996 = vmatpush1.msra.mxu0 %v1070
    %3997 = vmatprep.subr.mxu0 %v1075
    %3998 = vmatpush1.msra.mxu0 %v1074
    %3999 = vmatprep.subr.mxu0 %v1079
    %4000 = vmatpush1.msra.mxu0 %v1078
    %4001 = vmatprep.subr.mxu0 %v1083
    %4002 = vmatpush1.msra.mxu0 %v1082
    %4003 = vmatprep.subr.mxu0 %v1087
    %4004 = vmatpush1.msra.mxu0 %v1086
    %4005 = vmatprep.subr.mxu0 %v1091
    %4006 = vmatpush1.msra.mxu0 %v1090
    %4007 = vmatprep.subr.mxu0 %v1095
    %4008 = vmatpush1.msra.mxu0 %v1094
    %4009 = vmatprep.subr.mxu0 %v1099
    %4010 = vmatpush1.msra.mxu0 %v1098
    %4011 = vmatprep.subr.mxu0 %v1103
    %4012 = vmatpush1.msra.mxu0 %v1102
    %4013 = vmatprep.subr.mxu0 %v1107
    %4014 = vmatpush1.msra.mxu0 %v1106
    %4015 = vmatprep.subr.mxu0 %v1111
    %4016 = vmatpush1.msra.mxu0 %v1110
    %4017 = vmatprep.subr.mxu0 %v1115
    %4018 = vmatpush1.msra.mxu0 %v1114
    %4019 = vmatprep.subr.mxu0 %v1119
    %4020 = vmatpush1.msra.mxu0 %v1118
    %4021 = vmatprep.subr.mxu0 %v1123
    %4022 = vmatpush1.msra.mxu0 %v1122
    %4023 = vmatprep.subr.mxu0 %v1127
    %4024 = vmatpush1.msra.mxu0 %v1126
    %4025 = vmatprep.subr.mxu0 %v1131
    %4026 = vmatpush1.msra.mxu0 %v1130
    %4027 = vmatprep.subr.mxu0 %v1135
    %4028 = vmatpush1.msra.mxu0 %v1134
    %4029 = vmatprep.mubr.f32.mxu0 %v3693
    %4030 = vmatmul.mubr.f32.gmra.mrb[0].mxu0 %v3893
    %v4031 = vpop.f32.mrb[0].mxu0
    %v4032 = vadd.f32 %v1319, %v4031
    %v4033 = vpop.f32.mrb[0].mxu0
    %v4034 = vadd.f32 %v1323, %v4033
    %4035 = vdwg.mxu0
    %v4036 = vxor.u32 %v3961, 2147483648
    %v4037 = vmul.f32 %v4036, 1.442695
    %v4038 = vpow.pop %v4037
    %v4039 = vadd.f32 %v4038, 1.0
    %v4040 = vrcp.pop %v4039
    %v4041 = vmul.f32 1.0, %v4040
    %v4042 = vxor.u32 %v3963, 2147483648
    %v4043 = vmul.f32 %v4042, 1.442695
    %v4044 = vpow.pop %v4043
    %v4045 = vadd.f32 %v4044, 1.0
    %v4046 = vrcp.pop %v4045
    %v4047 = vmul.f32 1.0, %v4046
    %v4048 = vtanh.pop %v4032
    %v4049 = vxor.u32 %v4034, 2147483648
    %v4050 = vmul.f32 %v4049, 1.442695
    %v4051 = vpow.pop %v4050
    %v4052 = vadd.f32 %v4051, 1.0
    %v4053 = vrcp.pop %v4052
    %v4054 = vmul.f32 1.0, %v4053
    %v4055 = vmul.f32 %v4047, %v3691
    %v4056 = vmul.f32 %v4041, %v4048
    %v4057 = vadd.f32 %v4055, %v4056
    %v4058 = vtanh.pop %v4057
    %v4059 = vmul.f32 %v4054, %v4058
    %v4060 = vld [vmem:[%s12 + $0x7] sm:$0x1]
    %v4061 = vlaneseq
    %v4062 = vshrl.u32 %v4061, 7
    %v4063 = vsub.s32 0, %v4062
    %v4064 = vrot.slane %v4060, %v4063
    %v4065 = vmul.f32 %v4059, %v4064
    %v4066 = vsel %vm1500, %v4065, 0.0
    %4067 = vadd.xlane.f32.xlu0 %v4066
    %v4068 = vpop.xlane.xlu0 %4067
    %v4069 = vld [vmem:[%s13 + $0x7] sm:$0x1]
    %4071 = vset.pattern.permute.xlu0 0
    %4072 = vperm.xlu0 %4071, %v4069
    %v4073 = vpop.permute.xlu0 %4072
    %v4074 = vlaneseq
    %v4075 = vshrl.u32 %v4074, 7
    %v4076 = vsub.s32 0, %v4075
    %v4077 = vrot.slane %v4073, %v4076
    %v4079 = vadd.f32 %v4068, %v4077
    %4081 = vset.pattern.permute.xlu0 0
    %4082 = vperm.xlu0 %4081, %v4079
    %v4083 = vpop.permute.xlu0 %4082
    %v4084 = vlaneseq
    %v4085 = vshrl.u32 %v4084, 7
    %v4086 = vsub.s32 %v1520, %v4085
    %v4087 = vrot.slane %v4083, %v4086
    %4089 = vst.msk [vmem:[%s14 + $0x7] sm:$0x1] %vm1526, %v4087
    // Predicated region
    $region86: #{wgan_generator_forward.1} parent=1 // pred_check
      _
    $region87: #{wgan_generator_forward.1} parent=1 // pred_check_branch
      %4091 = sbr.rel (0) target = $region89
    $region88: #{wgan_generator_forward.1} parent=1 // pred_region
      _
    $region89: #{wgan_generator_forward.1} parent=1 // pred_fallthru
      _
    // Predicated region
    $region90: #{wgan_generator_forward.1} parent=1 // pred_check
      _
    $region91: #{wgan_generator_forward.1} parent=1 // pred_check_branch
      %4093 = sbr.rel (0) target = $region93
    $region92: #{wgan_generator_forward.1} parent=1 // pred_region
      _
    $region93: #{wgan_generator_forward.1} parent=1 // pred_fallthru
      _
    %4094 = vsyncpa [#allocation3], 1
    %4095 = vsyncpa [#allocation5], 1
    %4096 = vsyncpa [#allocation8], 1
    %4097 = vsyncpa [#allocation11], 1

</llo_original>
